<compile_context>
chip_gen: v5e
topology: v5e:2x2
jax: 0.10.0
libtpu: 0.0.40
codegen_flags: <defaults>
</compile_context>

<pallas_src>
import math

import numpy as np
import jax
import jax.numpy as jnp
from jax import lax
from jax.experimental import pallas as pl
from jax.experimental.pallas import tpu as pltpu


FC_INPUTS = 2 + 2 + 2 + 1   # mrPos + mrVel + drPos + dCharge
N_ACTIONS = 5
IMG = 41                    # 41 -> 19 -> 8 -> 6  => 6*6*32 CNN features
F32 = jnp.float32
BF16 = jnp.bfloat16


# ----------------------------------------------------------------------------
# Fused kernel: whole forward pass for ONE batch element per grid step.
# ----------------------------------------------------------------------------
def _fused_forward_kernel(
    img_ref,   # (1, 12, 192) f32 : zero-padded 48x48 image, 4 rows per slab
    x2_ref,    # (1, 1, 7)    f32 : flat state vector
    w1_ref,    # (240, 384)   bf16: conv1 banded weight   K=(k,col48) N=(s,c1)
    b1_ref,    # (1, 384)     f32
    w2_ref,    # (1920, 256)  bf16: conv2 banded weight   K=(i,s,c1)  N=(q,c2)
    b2_ref,    # (1, 256)     f32
    w3_ref,    # (768, 192)   bf16: conv3 banded weight   K=(m,q,c2)  N=(z,c3)
    b3_ref,    # (1, 192)     f32
    wl1_ref,   # (7, 7)       bf16
    bl1_ref,   # (1, 7)       f32
    wf1c_ref,  # (192, 1536)  bf16: fc1 conv part, block-diag over output row y
    wf1f_ref,  # (7, 256)     bf16: fc1 state part
    bf1_ref,   # (1, 256)     f32
    wf2_ref,   # (256, 5)     bf16
    bf2_ref,   # (1, 5)       f32
    o_ref,     # (1, 1, 5)    f32
    lhs1,      # scratch (32, 240)  f32 : conv1 LHS (rows 0..9 even, 16..25 odd)
    lhs2,      # scratch (8, 1920)  f32 : conv2 LHS (5 K-blocks of 384 lanes)
    lhs3,      # scratch (6, 768)   f32 : conv3 LHS (3 K-blocks of 256 lanes)
):
    # ------------- conv1 (5x5 s2, 1->16) as ONE banded matmul -------------
    # lhs1[u,      k*48+col] = xpad[4u + k,     col]   (even output rows r=2u)
    # lhs1[16 + u, k*48+col] = xpad[4u + 2 + k, col]   (odd  output rows r=2u+1)
    lhs1[0:10, 0:192] = img_ref[0, 0:10, :]
    lhs1[0:10, 192:240] = img_ref[0, 1:11, 0:48]
    lhs1[16:26, 0:96] = img_ref[0, 0:10, 96:192]
    lhs1[16:26, 96:240] = img_ref[0, 1:11, 0:144]
    # rows 10..15 / 26..31 stay uninitialized: their matmul outputs are never read.
    y1 = jnp.dot(lhs1[...].astype(BF16), w1_ref[...],
                 preferred_element_type=F32)                 # (32, 384) = (u|16+u, s*16+c1)
    y1 = jnp.maximum(y1 + b1_ref[...], 0.0)

    # ------------- conv2 (5x5 s2, 16->32) as ONE banded matmul -------------
    # K-block i is the conv1 output rows 2p+i (p=0..7): a contiguous 8-row
    # slice of either the even or the odd group of y1.
    for i in range(5):
        a = i // 2
        base = 0 if (i % 2 == 0) else 16
        lhs2[:, i * 384:(i + 1) * 384] = y1[base + a:base + a + 8, :]
    y2 = jnp.dot(lhs2[...].astype(BF16), w2_ref[...],
                 preferred_element_type=F32)                 # (8, 256) = (p, q*32+c2)
    y2 = jnp.maximum(y2 + b2_ref[...], 0.0)

    # ------------- conv3 (3x3 s1, 32->32) as ONE banded matmul -------------
    for m in range(3):
        lhs3[:, m * 256:(m + 1) * 256] = y2[m:m + 6, :]
    y3 = jnp.dot(lhs3[...].astype(BF16), w3_ref[...],
                 preferred_element_type=F32)                 # (6, 192) = (y, z*32+c3)
    y3 = jnp.maximum(y3 + b3_ref[...], 0.0)

    # ------------- fc1 conv part: one matmul + diagonal-block gather --------
    # p[y, y'*256 + o] = <conv3 row y, fc1 weights of conv3 row y'>; the valid
    # contribution is the block-diagonal y' == y, summed over y.
    p = jnp.dot(y3.astype(BF16), wf1c_ref[...],
                preferred_element_type=F32)                  # (6, 1536)
    acc = bf1_ref[...]                                       # (1, 256)
    for yy in range(6):
        acc = acc + p[yy:yy + 1, yy * 256:(yy + 1) * 256]

    # ------------- l1 branch + fc1 state part -------------
    z2 = jnp.dot(x2_ref[0].astype(BF16), wl1_ref[...],
                 preferred_element_type=F32)
    z2 = jnp.maximum(z2 + bl1_ref[...], 0.0)                 # (1, 7)
    acc = acc + jnp.dot(z2.astype(BF16), wf1f_ref[...],
                        preferred_element_type=F32)
    h = jnp.maximum(acc, 0.0)                                # (1, 256)

    # ------------- fc2 (+ final ReLU, as in the PyTorch module) -------------
    out = jnp.dot(h.astype(BF16), wf2_ref[...],
                  preferred_element_type=F32) + bf2_ref[...]
    o_ref[0] = jnp.maximum(out, 0.0)


# ----------------------------------------------------------------------------
# Parameter init (torch layouts, synthetic) and one-time kernel-layout prep.
# ----------------------------------------------------------------------------
def init_params(key):
    ks = jax.random.split(key, 12)

    def u(k, shape, bound):
        return jax.random.uniform(k, shape, F32, -bound, bound)

    p = {}
    p['cnn1_w'] = u(ks[0], (16, 1, 5, 5), 1.0 / math.sqrt(1 * 5 * 5))
    p['cnn1_b'] = u(ks[1], (16,), 1.0 / math.sqrt(1 * 5 * 5))
    p['cnn2_w'] = u(ks[2], (32, 16, 5, 5), 1.0 / math.sqrt(16 * 5 * 5))
    p['cnn2_b'] = u(ks[3], (32,), 1.0 / math.sqrt(16 * 5 * 5))
    p['cnn3_w'] = u(ks[4], (32, 32, 3, 3), 1.0 / math.sqrt(32 * 3 * 3))
    p['cnn3_b'] = u(ks[5], (32,), 1.0 / math.sqrt(32 * 3 * 3))
    p['l1_w'] = u(ks[6], (FC_INPUTS, FC_INPUTS), 1.0 / math.sqrt(FC_INPUTS))
    p['l1_b'] = u(ks[7], (FC_INPUTS,), 1.0 / math.sqrt(FC_INPUTS))
    fc1_in = 6 * 6 * 32 + FC_INPUTS
    p['fc1_w'] = u(ks[8], (256, fc1_in), math.sqrt(3.0 / fc1_in))
    p['fc1_b'] = u(ks[9], (256,), math.sqrt(3.0 / fc1_in))
    p['fc1_sigma_w'] = jnp.full((256, fc1_in), 0.017, F32)
    p['fc1_sigma_b'] = jnp.full((256,), 0.017, F32)
    p['fc1_eps_w'] = jnp.zeros((256, fc1_in), F32)   # buffer (zeros at init)
    p['fc1_eps_b'] = jnp.zeros((256,), F32)
    p['fc2_w'] = u(ks[10], (N_ACTIONS, 256), math.sqrt(3.0 / 256))
    p['fc2_b'] = u(ks[11], (N_ACTIONS,), math.sqrt(3.0 / 256))
    p['fc2_sigma_w'] = jnp.full((N_ACTIONS, 256), 0.017, F32)
    p['fc2_sigma_b'] = jnp.full((N_ACTIONS,), 0.017, F32)
    p['fc2_eps_w'] = jnp.zeros((N_ACTIONS, 256), F32)
    p['fc2_eps_b'] = jnp.zeros((N_ACTIONS,), F32)
    return p


def prepare_params(params):
    """One-time repack into banded kernel layouts; folds NoisyLinear w+sigma*eps.

    Re-run after any sample_noise()/remove_noise() equivalent.
    """
    def eff(w, sw, ew):
        return np.asarray(w) + np.asarray(sw) * np.asarray(ew)

    w1 = np.asarray(params['cnn1_w'])     # (16, 1, 5, 5)
    b1 = np.asarray(params['cnn1_b'])
    w2 = np.asarray(params['cnn2_w'])     # (32, 16, 5, 5)
    b2 = np.asarray(params['cnn2_b'])
    w3 = np.asarray(params['cnn3_w'])     # (32, 32, 3, 3)
    b3 = np.asarray(params['cnn3_b'])

    # conv1 banded weight: [k*48 + col, s*16 + c1] = w1[c1,0,k, col-2s]
    w1band = np.zeros((240, 384), np.float32)
    for k in range(5):
        for l in range(5):
            vec = w1[:, 0, k, l]
            for s in range(19):
                w1band[k * 48 + 2 * s + l, s * 16:(s + 1) * 16] = vec

    # conv2 banded weight: [i*384 + s*16 + c1, q*32 + c2] = w2[c2,c1,i, s-2q]
    w2band = np.zeros((1920, 256), np.float32)
    for i in range(5):
        for j in range(5):
            blk = w2[:, :, i, j].T            # (c1, c2)
            for q in range(8):
                r0 = i * 384 + (2 * q + j) * 16
                w2band[r0:r0 + 16, q * 32:(q + 1) * 32] = blk

    # conv3 banded weight: [m*256 + q*32 + c2, z*32 + c3] = w3[c3,c2,m, q-z]
    w3band = np.zeros((768, 192), np.float32)
    for m in range(3):
        for n in range(3):
            blk = w3[:, :, m, n].T            # (c2, c3)
            for z in range(6):
                r0 = m * 256 + (z + n) * 32
                w3band[r0:r0 + 32, z * 32:(z + 1) * 32] = blk

    # fc1 NoisyLinear (eps folded; zeros at init): split into conv / state parts.
    wf1 = eff(params['fc1_w'], params['fc1_sigma_w'], params['fc1_eps_w'])
    bf1 = eff(params['fc1_b'], params['fc1_sigma_b'], params['fc1_eps_b'])
    wc = wf1[:, :1152].reshape(256, 32, 6, 6)        # (o, c3, y, z) torch flatten
    wf1big = np.zeros((192, 1536), np.float32)       # [z*32+c3, y*256+o]
    for y in range(6):
        for z in range(6):
            wf1big[z * 32:(z + 1) * 32, y * 256:(y + 1) * 256] = wc[:, :, y, z].T
    wf1f = wf1[:, 1152:].T                           # (7, 256)

    # fc2 NoisyLinear.
    wf2 = eff(params['fc2_w'], params['fc2_sigma_w'], params['fc2_eps_w'])
    bf2 = eff(params['fc2_b'], params['fc2_sigma_b'], params['fc2_eps_b'])

    return {
        'w1band': jnp.asarray(w1band, BF16),
        'b1t': jnp.asarray(np.tile(b1, 24).reshape(1, 384), F32),
        'w2band': jnp.asarray(w2band, BF16),
        'b2t': jnp.asarray(np.tile(b2, 8).reshape(1, 256), F32),
        'w3band': jnp.asarray(w3band, BF16),
        'b3t': jnp.asarray(np.tile(b3, 6).reshape(1, 192), F32),
        'wl1': jnp.asarray(np.asarray(params['l1_w']).T, BF16),
        'bl1': jnp.asarray(np.asarray(params['l1_b']).reshape(1, FC_INPUTS), F32),
        'wf1big': jnp.asarray(wf1big, BF16),
        'wf1f': jnp.asarray(wf1f, BF16),
        'bf1': jnp.asarray(bf1.reshape(1, 256), F32),
        'wf2': jnp.asarray(wf2.T, BF16),
        'bf2': jnp.asarray(bf2.reshape(1, N_ACTIONS), F32),
    }


# ----------------------------------------------------------------------------
# Forward pass.
# ----------------------------------------------------------------------------
def forward(prep, x1, x2):
    """x1: (B, 1, 41, 41) NCHW local-area map, x2: (B, 7) flat state."""
    B, _, H, W = x1.shape
    assert H == IMG and W == IMG, (H, W)

    # Only wrapper-side prep: zero-pad to 48x48 and pack 4 rows per 192-lane
    # slab; the conv1 patch assembly happens in-kernel from this layout.
    xs = x1[:, 0].astype(F32)
    xpad = jnp.pad(xs, ((0, 0), (0, 48 - IMG), (0, 48 - IMG)))   # (B, 48, 48)
    imgr = xpad.reshape(B, 12, 192)
    x2r = x2.astype(F32).reshape(B, 1, FC_INPUTS)

    weights = (
        prep['w1band'], prep['b1t'], prep['w2band'], prep['b2t'],
        prep['w3band'], prep['b3t'], prep['wl1'], prep['bl1'],
        prep['wf1big'], prep['wf1f'], prep['bf1'], prep['wf2'], prep['bf2'],
    )

    def _rep(shape):
        nd = len(shape)
        return pl.BlockSpec(shape, lambda b, _nd=nd: (0,) * _nd)

    in_specs = [
        pl.BlockSpec((1, 12, 192), lambda b: (b, 0, 0)),
        pl.BlockSpec((1, 1, FC_INPUTS), lambda b: (b, 0, 0)),
    ] + [_rep(w.shape) for w in weights]

    out = pl.pallas_call(
        _fused_forward_kernel,
        out_shape=jax.ShapeDtypeStruct((B, 1, N_ACTIONS), F32),
        grid=(B,),
        in_specs=in_specs,
        out_specs=pl.BlockSpec((1, 1, N_ACTIONS), lambda b: (b, 0, 0)),
        scratch_shapes=[
            pltpu.VMEM((32, 240), F32),
            pltpu.VMEM((8, 1920), F32),
            pltpu.VMEM((6, 768), F32),
        ],
        compiler_params=pltpu.CompilerParams(
            dimension_semantics=("parallel",)),
    )(imgr, x2r, *weights)
    return out.reshape(B, N_ACTIONS)


# ----------------------------------------------------------------------------
# Pure-JAX reference (mirrors the PyTorch forward) for validation.
# ----------------------------------------------------------------------------
def reference_forward(params, x1, x2):
    def conv(x, w, b, stride):
        y = lax.conv_general_dilated(
            x, w, (stride, stride), 'VALID',
            dimension_numbers=('NCHW', 'OIHW', 'NCHW'))
        return jax.nn.relu(y + b.reshape(1, -1, 1, 1))

    h = conv(x1, params['cnn1_w'], params['cnn1_b'], 2)
    h = conv(h, params['cnn2_w'], params['cnn2_b'], 2)
    h = conv(h, params['cnn3_w'], params['cnn3_b'], 1)
    z2 = jax.nn.relu(x2 @ params['l1_w'].T + params['l1_b'])
    f = jnp.concatenate([h.reshape(h.shape[0], -1), z2], axis=1)
    w1e = params['fc1_w'] + params['fc1_sigma_w'] * params['fc1_eps_w']
    b1e = params['fc1_b'] + params['fc1_sigma_b'] * params['fc1_eps_b']
    h1 = jax.nn.relu(f @ w1e.T + b1e)
    w2e = params['fc2_w'] + params['fc2_sigma_w'] * params['fc2_eps_w']
    b2e = params['fc2_b'] + params['fc2_sigma_b'] * params['fc2_eps_b']
    return jax.nn.relu(h1 @ w2e.T + b2e)


# TODO(synk): NoisyLinear.sample_noise() (resampling epsilon with a stateful
# torch RNG) is not re-implemented; eps buffers stay at their reset value
# (zeros) and are folded into the weights in prepare_params().
# TODO(synk): loggingLevel==3 activation stashing (self.x1_cnn*) is a host-side
# side effect with no kernel equivalent and is omitted.


if __name__ == "__main__":
    key = jax.random.PRNGKey(0)
    kp, k1, k2 = jax.random.split(key, 3)

    params = init_params(kp)
    prep = prepare_params(params)

    B = 2
    x1 = jax.random.normal(k1, (B, 1, IMG, IMG), F32)   # NCHW local-area map
    x2 = jax.random.normal(k2, (B, FC_INPUTS), F32)     # flat state vector

    fwd = jax.jit(forward)
    out = jax.block_until_ready(fwd(prep, x1, x2))

    assert out.shape == (B, N_ACTIONS), out.shape
    assert bool(jnp.all(jnp.isfinite(out)))

    ref = reference_forward(params, x1, x2)
    tol = 5e-2 * (1.0 + float(jnp.max(jnp.abs(ref))))
    err = float(jnp.max(jnp.abs(out - ref)))
    assert err < tol, (err, tol)

    print("KERNEL_OK")
</pallas_src>

<mosaic_0001>
module attributes {stable_mosaic.version = 11 : i64} {
  func.func @_fused_forward_kernel(%arg0: i32, %arg1: memref<1x12x192xf32, #tpu.memory_space<vmem>>, %arg2: memref<1x1x7xf32, #tpu.memory_space<vmem>>, %arg3: memref<240x384xbf16, #tpu.memory_space<vmem>>, %arg4: memref<1x384xf32, #tpu.memory_space<vmem>>, %arg5: memref<1920x256xbf16, #tpu.memory_space<vmem>>, %arg6: memref<1x256xf32, #tpu.memory_space<vmem>>, %arg7: memref<768x192xbf16, #tpu.memory_space<vmem>>, %arg8: memref<1x192xf32, #tpu.memory_space<vmem>>, %arg9: memref<7x7xbf16, #tpu.memory_space<vmem>>, %arg10: memref<1x7xf32, #tpu.memory_space<vmem>>, %arg11: memref<192x1536xbf16, #tpu.memory_space<vmem>>, %arg12: memref<7x256xbf16, #tpu.memory_space<vmem>>, %arg13: memref<1x256xf32, #tpu.memory_space<vmem>>, %arg14: memref<256x5xbf16, #tpu.memory_space<vmem>>, %arg15: memref<1x5xf32, #tpu.memory_space<vmem>>, %arg16: memref<1x1x5xf32, #tpu.memory_space<vmem>>, %arg17: memref<32x240xf32, #tpu.memory_space<vmem>>, %arg18: memref<8x1920xf32, #tpu.memory_space<vmem>>, %arg19: memref<6x768xf32, #tpu.memory_space<vmem>>) attributes {dimension_semantics = [#tpu.dimension_semantics<parallel>], iteration_bounds = array<i64: 2>, scalar_prefetch = 0 : i64, scratch_operands = 3 : i64, tpu.core_type = #tpu.core_type<tc>, window_params = [{transform_indices = @transform_0, window_bounds = array<i64: 1, 12, 192>}, {transform_indices = @transform_1, window_bounds = array<i64: 1, 1, 7>}, {pipeline_mode = #tpu.pipeline_mode<synchronous>, transform_indices = @transform_2, window_bounds = array<i64: 240, 384>}, {pipeline_mode = #tpu.pipeline_mode<synchronous>, transform_indices = @transform_3, window_bounds = array<i64: 1, 384>}, {pipeline_mode = #tpu.pipeline_mode<synchronous>, transform_indices = @transform_4, window_bounds = array<i64: 1920, 256>}, {pipeline_mode = #tpu.pipeline_mode<synchronous>, transform_indices = @transform_5, window_bounds = array<i64: 1, 256>}, {pipeline_mode = #tpu.pipeline_mode<synchronous>, transform_indices = @transform_6, window_bounds = array<i64: 768, 192>}, {pipeline_mode = #tpu.pipeline_mode<synchronous>, transform_indices = @transform_7, window_bounds = array<i64: 1, 192>}, {pipeline_mode = #tpu.pipeline_mode<synchronous>, transform_indices = @transform_8, window_bounds = array<i64: 7, 7>}, {pipeline_mode = #tpu.pipeline_mode<synchronous>, transform_indices = @transform_9, window_bounds = array<i64: 1, 7>}, {pipeline_mode = #tpu.pipeline_mode<synchronous>, transform_indices = @transform_10, window_bounds = array<i64: 192, 1536>}, {pipeline_mode = #tpu.pipeline_mode<synchronous>, transform_indices = @transform_11, window_bounds = array<i64: 7, 256>}, {pipeline_mode = #tpu.pipeline_mode<synchronous>, transform_indices = @transform_12, window_bounds = array<i64: 1, 256>}, {pipeline_mode = #tpu.pipeline_mode<synchronous>, transform_indices = @transform_13, window_bounds = array<i64: 256, 5>}, {pipeline_mode = #tpu.pipeline_mode<synchronous>, transform_indices = @transform_14, window_bounds = array<i64: 1, 5>}, {transform_indices = @transform_15, window_bounds = array<i64: 1, 1, 5>}]} {
    %c0 = arith.constant 0 : index
    %c0_0 = arith.constant 0 : index
    %c0_1 = arith.constant 0 : index
    %0 = vector.load %arg1[%c0, %c0_0, %c0_1] : memref<1x12x192xf32, #tpu.memory_space<vmem>>, vector<1x10x192xf32>
    %1 = vector.shape_cast %0 : vector<1x10x192xf32> to vector<10x192xf32>
    %c0_2 = arith.constant 0 : index
    %c0_3 = arith.constant 0 : index
    %2 = vector.load %arg17[%c0_2, %c0_3] : memref<32x240xf32, #tpu.memory_space<vmem>>, vector<10x192xf32>
    tpu.vector_store %arg17[%c0_2, %c0_3], %1 {strides = array<i32>} : memref<32x240xf32, #tpu.memory_space<vmem>>, vector<10x192xf32>,
    %c0_4 = arith.constant 0 : index
    %c1 = arith.constant 1 : index
    %c0_5 = arith.constant 0 : index
    %3 = vector.load %arg1[%c0_4, %c1, %c0_5] : memref<1x12x192xf32, #tpu.memory_space<vmem>>, vector<1x10x48xf32>
    %4 = vector.shape_cast %3 : vector<1x10x48xf32> to vector<10x48xf32>
    %c0_6 = arith.constant 0 : index
    %c192 = arith.constant 192 : index
    %5 = vector.load %arg17[%c0_6, %c192] : memref<32x240xf32, #tpu.memory_space<vmem>>, vector<10x48xf32>
    tpu.vector_store %arg17[%c0_6, %c192], %4 {strides = array<i32>} : memref<32x240xf32, #tpu.memory_space<vmem>>, vector<10x48xf32>,
    %c0_7 = arith.constant 0 : index
    %c0_8 = arith.constant 0 : index
    %c96 = arith.constant 96 : index
    %6 = vector.load %arg1[%c0_7, %c0_8, %c96] : memref<1x12x192xf32, #tpu.memory_space<vmem>>, vector<1x10x96xf32>
    %7 = vector.shape_cast %6 : vector<1x10x96xf32> to vector<10x96xf32>
    %c16 = arith.constant 16 : index
    %c0_9 = arith.constant 0 : index
    %8 = vector.load %arg17[%c16, %c0_9] : memref<32x240xf32, #tpu.memory_space<vmem>>, vector<10x96xf32>
    tpu.vector_store %arg17[%c16, %c0_9], %7 {strides = array<i32>} : memref<32x240xf32, #tpu.memory_space<vmem>>, vector<10x96xf32>,
    %c0_10 = arith.constant 0 : index
    %c1_11 = arith.constant 1 : index
    %c0_12 = arith.constant 0 : index
    %9 = vector.load %arg1[%c0_10, %c1_11, %c0_12] : memref<1x12x192xf32, #tpu.memory_space<vmem>>, vector<1x10x144xf32>
    %10 = vector.shape_cast %9 : vector<1x10x144xf32> to vector<10x144xf32>
    %c16_13 = arith.constant 16 : index
    %c96_14 = arith.constant 96 : index
    %11 = vector.load %arg17[%c16_13, %c96_14] : memref<32x240xf32, #tpu.memory_space<vmem>>, vector<10x144xf32>
    tpu.vector_store %arg17[%c16_13, %c96_14], %10 {strides = array<i32>} : memref<32x240xf32, #tpu.memory_space<vmem>>, vector<10x144xf32>,
    %c0_15 = arith.constant 0 : index
    %c0_16 = arith.constant 0 : index
    %12 = vector.load %arg17[%c0_15, %c0_16] : memref<32x240xf32, #tpu.memory_space<vmem>>, vector<32x240xf32>
    %13 = arith.truncf %12 : vector<32x240xf32> to vector<32x240xbf16>
    %c0_17 = arith.constant 0 : index
    %c0_18 = arith.constant 0 : index
    %14 = vector.load %arg3[%c0_17, %c0_18] : memref<240x384xbf16, #tpu.memory_space<vmem>>, vector<240x384xbf16>
    %cst = arith.constant dense<0.000000e+00> : vector<32x384xf32>
    %15 = tpu.matmul %13, %14, %cst {dimension_numbers = #tpu.dot_dimension_numbers<[1], [0], [0], [1], [0, 0, 1, 1], [], []>} : vector<32x240xbf16>, vector<240x384xbf16>, vector<32x384xf32> -> vector<32x384xf32>
    %c0_19 = arith.constant 0 : index
    %c0_20 = arith.constant 0 : index
    %16 = vector.load %arg4[%c0_19, %c0_20] : memref<1x384xf32, #tpu.memory_space<vmem>>, vector<1x384xf32>
    %17 = vector.broadcast %16 : vector<1x384xf32> to vector<32x384xf32>
    %18 = arith.addf %15, %17 : vector<32x384xf32>
    %cst_21 = arith.constant 0.000000e+00 : f32
    %19 = vector.broadcast %cst_21 : f32 to vector<32x384xf32>
    %20 = arith.maximumf %18, %19 : vector<32x384xf32>
    %21 = vector.extract_strided_slice %20 {offsets = [0, 0], sizes = [8, 384], strides = [1, 1]} : vector<32x384xf32> to vector<8x384xf32>
    %c0_22 = arith.constant 0 : index
    %c0_23 = arith.constant 0 : index
    %22 = vector.load %arg18[%c0_22, %c0_23] : memref<8x1920xf32, #tpu.memory_space<vmem>>, vector<8x384xf32>
    tpu.vector_store %arg18[%c0_22, %c0_23], %21 {strides = array<i32>} : memref<8x1920xf32, #tpu.memory_space<vmem>>, vector<8x384xf32>,
    %23 = vector.extract_strided_slice %20 {offsets = [16, 0], sizes = [8, 384], strides = [1, 1]} : vector<32x384xf32> to vector<8x384xf32>
    %c0_24 = arith.constant 0 : index
    %c384 = arith.constant 384 : index
    %24 = vector.load %arg18[%c0_24, %c384] : memref<8x1920xf32, #tpu.memory_space<vmem>>, vector<8x384xf32>
    tpu.vector_store %arg18[%c0_24, %c384], %23 {strides = array<i32>} : memref<8x1920xf32, #tpu.memory_space<vmem>>, vector<8x384xf32>,
    %25 = vector.extract_strided_slice %20 {offsets = [1, 0], sizes = [8, 384], strides = [1, 1]} : vector<32x384xf32> to vector<8x384xf32>
    %c0_25 = arith.constant 0 : index
    %c768 = arith.constant 768 : index
    %26 = vector.load %arg18[%c0_25, %c768] : memref<8x1920xf32, #tpu.memory_space<vmem>>, vector<8x384xf32>
    tpu.vector_store %arg18[%c0_25, %c768], %25 {strides = array<i32>} : memref<8x1920xf32, #tpu.memory_space<vmem>>, vector<8x384xf32>,
    %27 = vector.extract_strided_slice %20 {offsets = [17, 0], sizes = [8, 384], strides = [1, 1]} : vector<32x384xf32> to vector<8x384xf32>
    %c0_26 = arith.constant 0 : index
    %c1152 = arith.constant 1152 : index
    %28 = vector.load %arg18[%c0_26, %c1152] : memref<8x1920xf32, #tpu.memory_space<vmem>>, vector<8x384xf32>
    tpu.vector_store %arg18[%c0_26, %c1152], %27 {strides = array<i32>} : memref<8x1920xf32, #tpu.memory_space<vmem>>, vector<8x384xf32>,
    %29 = vector.extract_strided_slice %20 {offsets = [2, 0], sizes = [8, 384], strides = [1, 1]} : vector<32x384xf32> to vector<8x384xf32>
    %c0_27 = arith.constant 0 : index
    %c1536 = arith.constant 1536 : index
    %30 = vector.load %arg18[%c0_27, %c1536] : memref<8x1920xf32, #tpu.memory_space<vmem>>, vector<8x384xf32>
    tpu.vector_store %arg18[%c0_27, %c1536], %29 {strides = array<i32>} : memref<8x1920xf32, #tpu.memory_space<vmem>>, vector<8x384xf32>,
    %c0_28 = arith.constant 0 : index
    %c0_29 = arith.constant 0 : index
    %31 = vector.load %arg18[%c0_28, %c0_29] : memref<8x1920xf32, #tpu.memory_space<vmem>>, vector<8x1920xf32>
    %32 = arith.truncf %31 : vector<8x1920xf32> to vector<8x1920xbf16>
    %c0_30 = arith.constant 0 : index
    %c0_31 = arith.constant 0 : index
    %33 = vector.load %arg5[%c0_30, %c0_31] : memref<1920x256xbf16, #tpu.memory_space<vmem>>, vector<1920x256xbf16>
    %cst_32 = arith.constant dense<0.000000e+00> : vector<8x256xf32>
    %34 = tpu.matmul %32, %33, %cst_32 {dimension_numbers = #tpu.dot_dimension_numbers<[1], [0], [0], [1], [0, 0, 1, 1], [], []>} : vector<8x1920xbf16>, vector<1920x256xbf16>, vector<8x256xf32> -> vector<8x256xf32>
    %c0_33 = arith.constant 0 : index
    %c0_34 = arith.constant 0 : index
    %35 = vector.load %arg6[%c0_33, %c0_34] : memref<1x256xf32, #tpu.memory_space<vmem>>, vector<1x256xf32>
    %36 = vector.broadcast %35 : vector<1x256xf32> to vector<8x256xf32>
    %37 = arith.addf %34, %36 : vector<8x256xf32>
    %cst_35 = arith.constant 0.000000e+00 : f32
    %38 = vector.broadcast %cst_35 : f32 to vector<8x256xf32>
    %39 = arith.maximumf %37, %38 : vector<8x256xf32>
    %40 = vector.extract_strided_slice %39 {offsets = [0, 0], sizes = [6, 256], strides = [1, 1]} : vector<8x256xf32> to vector<6x256xf32>
    %c0_36 = arith.constant 0 : index
    %c0_37 = arith.constant 0 : index
    %41 = vector.load %arg19[%c0_36, %c0_37] : memref<6x768xf32, #tpu.memory_space<vmem>>, vector<6x256xf32>
    tpu.vector_store %arg19[%c0_36, %c0_37], %40 {strides = array<i32>} : memref<6x768xf32, #tpu.memory_space<vmem>>, vector<6x256xf32>,
    %42 = vector.extract_strided_slice %39 {offsets = [1, 0], sizes = [6, 256], strides = [1, 1]} : vector<8x256xf32> to vector<6x256xf32>
    %c0_38 = arith.constant 0 : index
    %c256 = arith.constant 256 : index
    %43 = vector.load %arg19[%c0_38, %c256] : memref<6x768xf32, #tpu.memory_space<vmem>>, vector<6x256xf32>
    tpu.vector_store %arg19[%c0_38, %c256], %42 {strides = array<i32>} : memref<6x768xf32, #tpu.memory_space<vmem>>, vector<6x256xf32>,
    %44 = vector.extract_strided_slice %39 {offsets = [2, 0], sizes = [6, 256], strides = [1, 1]} : vector<8x256xf32> to vector<6x256xf32>
    %c0_39 = arith.constant 0 : index
    %c512 = arith.constant 512 : index
    %45 = vector.load %arg19[%c0_39, %c512] : memref<6x768xf32, #tpu.memory_space<vmem>>, vector<6x256xf32>
    tpu.vector_store %arg19[%c0_39, %c512], %44 {strides = array<i32>} : memref<6x768xf32, #tpu.memory_space<vmem>>, vector<6x256xf32>,
    %c0_40 = arith.constant 0 : index
    %c0_41 = arith.constant 0 : index
    %46 = vector.load %arg19[%c0_40, %c0_41] : memref<6x768xf32, #tpu.memory_space<vmem>>, vector<6x768xf32>
    %47 = arith.truncf %46 : vector<6x768xf32> to vector<6x768xbf16>
    %c0_42 = arith.constant 0 : index
    %c0_43 = arith.constant 0 : index
    %48 = vector.load %arg7[%c0_42, %c0_43] : memref<768x192xbf16, #tpu.memory_space<vmem>>, vector<768x192xbf16>
    %cst_44 = arith.constant dense<0.000000e+00> : vector<6x192xf32>
    %49 = tpu.matmul %47, %48, %cst_44 {dimension_numbers = #tpu.dot_dimension_numbers<[1], [0], [0], [1], [0, 0, 1, 1], [], []>} : vector<6x768xbf16>, vector<768x192xbf16>, vector<6x192xf32> -> vector<6x192xf32>
    %c0_45 = arith.constant 0 : index
    %c0_46 = arith.constant 0 : index
    %50 = vector.load %arg8[%c0_45, %c0_46] : memref<1x192xf32, #tpu.memory_space<vmem>>, vector<1x192xf32>
    %51 = vector.broadcast %50 : vector<1x192xf32> to vector<6x192xf32>
    %52 = arith.addf %49, %51 : vector<6x192xf32>
    %cst_47 = arith.constant 0.000000e+00 : f32
    %53 = vector.broadcast %cst_47 : f32 to vector<6x192xf32>
    %54 = arith.maximumf %52, %53 : vector<6x192xf32>
    %55 = arith.truncf %54 : vector<6x192xf32> to vector<6x192xbf16>
    %c0_48 = arith.constant 0 : index
    %c0_49 = arith.constant 0 : index
    %56 = vector.load %arg11[%c0_48, %c0_49] : memref<192x1536xbf16, #tpu.memory_space<vmem>>, vector<192x1536xbf16>
    %cst_50 = arith.constant dense<0.000000e+00> : vector<6x1536xf32>
    %57 = tpu.matmul %55, %56, %cst_50 {dimension_numbers = #tpu.dot_dimension_numbers<[1], [0], [0], [1], [0, 0, 1, 1], [], []>} : vector<6x192xbf16>, vector<192x1536xbf16>, vector<6x1536xf32> -> vector<6x1536xf32>
    %c0_51 = arith.constant 0 : index
    %c0_52 = arith.constant 0 : index
    %58 = vector.load %arg13[%c0_51, %c0_52] : memref<1x256xf32, #tpu.memory_space<vmem>>, vector<1x256xf32>
    %59 = vector.extract_strided_slice %57 {offsets = [0, 0], sizes = [1, 256], strides = [1, 1]} : vector<6x1536xf32> to vector<1x256xf32>
    %60 = arith.addf %58, %59 : vector<1x256xf32>
    %61 = vector.extract_strided_slice %57 {offsets = [1, 256], sizes = [1, 256], strides = [1, 1]} : vector<6x1536xf32> to vector<1x256xf32>
    %62 = arith.addf %60, %61 : vector<1x256xf32>
    %63 = vector.extract_strided_slice %57 {offsets = [2, 512], sizes = [1, 256], strides = [1, 1]} : vector<6x1536xf32> to vector<1x256xf32>
    %64 = arith.addf %62, %63 : vector<1x256xf32>
    %65 = vector.extract_strided_slice %57 {offsets = [3, 768], sizes = [1, 256], strides = [1, 1]} : vector<6x1536xf32> to vector<1x256xf32>
    %66 = arith.addf %64, %65 : vector<1x256xf32>
    %67 = vector.extract_strided_slice %57 {offsets = [4, 1024], sizes = [1, 256], strides = [1, 1]} : vector<6x1536xf32> to vector<1x256xf32>
    %68 = arith.addf %66, %67 : vector<1x256xf32>
    %69 = vector.extract_strided_slice %57 {offsets = [5, 1280], sizes = [1, 256], strides = [1, 1]} : vector<6x1536xf32> to vector<1x256xf32>
    %70 = arith.addf %68, %69 : vector<1x256xf32>
    %c0_53 = arith.constant 0 : index
    %c0_54 = arith.constant 0 : index
    %c0_55 = arith.constant 0 : index
    %71 = vector.load %arg2[%c0_53, %c0_54, %c0_55] : memref<1x1x7xf32, #tpu.memory_space<vmem>>, vector<1x1x7xf32>
    %72 = vector.shape_cast %71 : vector<1x1x7xf32> to vector<1x7xf32>
    %73 = arith.truncf %72 : vector<1x7xf32> to vector<1x7xbf16>
    %c0_56 = arith.constant 0 : index
    %c0_57 = arith.constant 0 : index
    %74 = vector.load %arg9[%c0_56, %c0_57] : memref<7x7xbf16, #tpu.memory_space<vmem>>, vector<7x7xbf16>
    %cst_58 = arith.constant dense<0.000000e+00> : vector<1x7xf32>
    %75 = tpu.matmul %73, %74, %cst_58 {dimension_numbers = #tpu.dot_dimension_numbers<[1], [0], [0], [1], [0, 0, 1, 1], [], []>} : vector<1x7xbf16>, vector<7x7xbf16>, vector<1x7xf32> -> vector<1x7xf32>
    %c0_59 = arith.constant 0 : index
    %c0_60 = arith.constant 0 : index
    %76 = vector.load %arg10[%c0_59, %c0_60] : memref<1x7xf32, #tpu.memory_space<vmem>>, vector<1x7xf32>
    %77 = arith.addf %75, %76 : vector<1x7xf32>
    %cst_61 = arith.constant 0.000000e+00 : f32
    %78 = vector.broadcast %cst_61 : f32 to vector<1x7xf32>
    %79 = arith.maximumf %77, %78 : vector<1x7xf32>
    %80 = arith.truncf %79 : vector<1x7xf32> to vector<1x7xbf16>
    %c0_62 = arith.constant 0 : index
    %c0_63 = arith.constant 0 : index
    %81 = vector.load %arg12[%c0_62, %c0_63] : memref<7x256xbf16, #tpu.memory_space<vmem>>, vector<7x256xbf16>
    %cst_64 = arith.constant dense<0.000000e+00> : vector<1x256xf32>
    %82 = tpu.matmul %80, %81, %cst_64 {dimension_numbers = #tpu.dot_dimension_numbers<[1], [0], [0], [1], [0, 0, 1, 1], [], []>} : vector<1x7xbf16>, vector<7x256xbf16>, vector<1x256xf32> -> vector<1x256xf32>
    %83 = arith.addf %70, %82 : vector<1x256xf32>
    %cst_65 = arith.constant 0.000000e+00 : f32
    %84 = vector.broadcast %cst_65 : f32 to vector<1x256xf32>
    %85 = arith.maximumf %83, %84 : vector<1x256xf32>
    %86 = arith.truncf %85 : vector<1x256xf32> to vector<1x256xbf16>
    %c0_66 = arith.constant 0 : index
    %c0_67 = arith.constant 0 : index
    %87 = vector.load %arg14[%c0_66, %c0_67] : memref<256x5xbf16, #tpu.memory_space<vmem>>, vector<256x5xbf16>
    %cst_68 = arith.constant dense<0.000000e+00> : vector<1x5xf32>
    %88 = tpu.matmul %86, %87, %cst_68 {dimension_numbers = #tpu.dot_dimension_numbers<[1], [0], [0], [1], [0, 0, 1, 1], [], []>} : vector<1x256xbf16>, vector<256x5xbf16>, vector<1x5xf32> -> vector<1x5xf32>
    %c0_69 = arith.constant 0 : index
    %c0_70 = arith.constant 0 : index
    %89 = vector.load %arg15[%c0_69, %c0_70] : memref<1x5xf32, #tpu.memory_space<vmem>>, vector<1x5xf32>
    %90 = arith.addf %88, %89 : vector<1x5xf32>
    %cst_71 = arith.constant 0.000000e+00 : f32
    %91 = vector.broadcast %cst_71 : f32 to vector<1x5xf32>
    %92 = arith.maximumf %90, %91 : vector<1x5xf32>
    %c0_72 = arith.constant 0 : index
    %c0_73 = arith.constant 0 : index
    %c0_74 = arith.constant 0 : index
    %93 = vector.load %arg16[%c0_72, %c0_73, %c0_74] : memref<1x1x5xf32, #tpu.memory_space<vmem>>, vector<1x1x5xf32>
    %94 = vector.shape_cast %93 : vector<1x1x5xf32> to vector<1x5xf32>
    %95 = vector.shape_cast %92 : vector<1x5xf32> to vector<1x1x5xf32>
    tpu.vector_store %arg16[%c0_72, %c0_73, %c0_74], %95 {strides = array<i32>} : memref<1x1x5xf32, #tpu.memory_space<vmem>>, vector<1x1x5xf32>,
    return
  }
  func.func @transform_0(%arg0: i32) -> (i32, i32, i32) {
    %c0_i32 = arith.constant 0 : i32
    %c0_i32_0 = arith.constant 0 : i32
    %c0_i32_1 = arith.constant 0 : i32
    return %arg0, %c0_i32, %c0_i32_0 : i32, i32, i32
  }
  func.func @transform_1(%arg0: i32) -> (i32, i32, i32) {
    %c0_i32 = arith.constant 0 : i32
    %c0_i32_0 = arith.constant 0 : i32
    %c0_i32_1 = arith.constant 0 : i32
    return %arg0, %c0_i32, %c0_i32_0 : i32, i32, i32
  }
  func.func @transform_2(%arg0: i32) -> (i32, i32) {
    %c0_i32 = arith.constant 0 : i32
    %c0_i32_0 = arith.constant 0 : i32
    %c0_i32_1 = arith.constant 0 : i32
    return %c0_i32, %c0_i32_0 : i32, i32
  }
  func.func @transform_3(%arg0: i32) -> (i32, i32) {
    %c0_i32 = arith.constant 0 : i32
    %c0_i32_0 = arith.constant 0 : i32
    %c0_i32_1 = arith.constant 0 : i32
    return %c0_i32, %c0_i32_0 : i32, i32
  }
  func.func @transform_4(%arg0: i32) -> (i32, i32) {
    %c0_i32 = arith.constant 0 : i32
    %c0_i32_0 = arith.constant 0 : i32
    %c0_i32_1 = arith.constant 0 : i32
    return %c0_i32, %c0_i32_0 : i32, i32
  }
  func.func @transform_5(%arg0: i32) -> (i32, i32) {
    %c0_i32 = arith.constant 0 : i32
    %c0_i32_0 = arith.constant 0 : i32
    %c0_i32_1 = arith.constant 0 : i32
    return %c0_i32, %c0_i32_0 : i32, i32
  }
  func.func @transform_6(%arg0: i32) -> (i32, i32) {
    %c0_i32 = arith.constant 0 : i32
    %c0_i32_0 = arith.constant 0 : i32
    %c0_i32_1 = arith.constant 0 : i32
    return %c0_i32, %c0_i32_0 : i32, i32
  }
  func.func @transform_7(%arg0: i32) -> (i32, i32) {
    %c0_i32 = arith.constant 0 : i32
    %c0_i32_0 = arith.constant 0 : i32
    %c0_i32_1 = arith.constant 0 : i32
    return %c0_i32, %c0_i32_0 : i32, i32
  }
  func.func @transform_8(%arg0: i32) -> (i32, i32) {
    %c0_i32 = arith.constant 0 : i32
    %c0_i32_0 = arith.constant 0 : i32
    %c0_i32_1 = arith.constant 0 : i32
    return %c0_i32, %c0_i32_0 : i32, i32
  }
  func.func @transform_9(%arg0: i32) -> (i32, i32) {
    %c0_i32 = arith.constant 0 : i32
    %c0_i32_0 = arith.constant 0 : i32
    %c0_i32_1 = arith.constant 0 : i32
    return %c0_i32, %c0_i32_0 : i32, i32
  }
  func.func @transform_10(%arg0: i32) -> (i32, i32) {
    %c0_i32 = arith.constant 0 : i32
    %c0_i32_0 = arith.constant 0 : i32
    %c0_i32_1 = arith.constant 0 : i32
    return %c0_i32, %c0_i32_0 : i32, i32
  }
  func.func @transform_11(%arg0: i32) -> (i32, i32) {
    %c0_i32 = arith.constant 0 : i32
    %c0_i32_0 = arith.constant 0 : i32
    %c0_i32_1 = arith.constant 0 : i32
    return %c0_i32, %c0_i32_0 : i32, i32
  }
  func.func @transform_12(%arg0: i32) -> (i32, i32) {
    %c0_i32 = arith.constant 0 : i32
    %c0_i32_0 = arith.constant 0 : i32
    %c0_i32_1 = arith.constant 0 : i32
    return %c0_i32, %c0_i32_0 : i32, i32
  }
  func.func @transform_13(%arg0: i32) -> (i32, i32) {
    %c0_i32 = arith.constant 0 : i32
    %c0_i32_0 = arith.constant 0 : i32
    %c0_i32_1 = arith.constant 0 : i32
    return %c0_i32, %c0_i32_0 : i32, i32
  }
  func.func @transform_14(%arg0: i32) -> (i32, i32) {
    %c0_i32 = arith.constant 0 : i32
    %c0_i32_0 = arith.constant 0 : i32
    %c0_i32_1 = arith.constant 0 : i32
    return %c0_i32, %c0_i32_0 : i32, i32
  }
  func.func @transform_15(%arg0: i32) -> (i32, i32, i32) {
    %c0_i32 = arith.constant 0 : i32
    %c0_i32_0 = arith.constant 0 : i32
    %c0_i32_1 = arith.constant 0 : i32
    return %arg0, %c0_i32, %c0_i32_0 : i32, i32, i32
  }
}

</mosaic_0001>

<llo_original>
// kernel: forward.1
$region0: #{forward.1}
  #allocation0 [shape = 'u32[]', space=smem, size = 0x4, offset = 0x4, fixed_abs, tag = 'smem constant byte address 0x4 - core index']
  #allocation1 [shape = 'u32[72,128]{1,0:T(1,128)}', space=vmem, size = 0x9000, scoped, tag = 'internal scratch']
  #allocation2 [shape = 'f32[32,240]{1,0:T(8,128)}', space=vmem, size = 0x8000, scoped, tag = 'scratch operand']
  #allocation3 [shape = 'f32[8,1920]{1,0:T(8,128)}', space=vmem, size = 0xf000, scoped, tag = 'scratch operand']
  #allocation4 [shape = 'f32[6,768]{1,0:T(8,128)}', space=vmem, size = 0x6000, scoped, tag = 'scratch operand']
  %s0 = inlined_call_operand.vmem [shape: f32[2,12,192], index: 0, kind: input, shape index: {}]
  %s1 = inlined_call_operand.vmem [shape: f32[2,1,7], index: 1, kind: input, shape index: {}]
  %s2 = inlined_call_operand.vmem [shape: bf16[240,384], index: 2, kind: input, shape index: {}]
  %s3 = inlined_call_operand.vmem [shape: f32[1,384], index: 3, kind: input, shape index: {}]
  %s4 = inlined_call_operand.hbm [shape: bf16[1920,256], index: 4, kind: input, shape index: {}]
  %s5 = inlined_call_operand.vmem [shape: f32[1,256], index: 5, kind: input, shape index: {}]
  %s6 = inlined_call_operand.vmem [shape: bf16[768,192], index: 6, kind: input, shape index: {}]
  %s7 = inlined_call_operand.vmem [shape: f32[1,192], index: 7, kind: input, shape index: {}]
  %s8 = inlined_call_operand.vmem [shape: bf16[7,7], index: 8, kind: input, shape index: {}]
  %s9 = inlined_call_operand.vmem [shape: f32[1,7], index: 9, kind: input, shape index: {}]
  %s10 = inlined_call_operand.vmem [shape: bf16[192,1536], index: 10, kind: input, shape index: {}]
  %s11 = inlined_call_operand.vmem [shape: bf16[7,256], index: 11, kind: input, shape index: {}]
  %s12 = inlined_call_operand.vmem [shape: f32[1,256], index: 12, kind: input, shape index: {}]
  %s13 = inlined_call_operand.vmem [shape: bf16[256,5], index: 13, kind: input, shape index: {}]
  %s14 = inlined_call_operand.vmem [shape: f32[1,5], index: 14, kind: input, shape index: {}]
  %s15 = inlined_call_operand.hbm [shape: f32[2,1,5], index: 15, kind: output, shape index: {}]
  %s16 = sld [smem:[#allocation0]]
  $region97: #{forward.1} parent=0
    _
  %s18 = ssub.s32 1, %s16
  %s19 = scalar_select 0, %s18, %s16
  $region1: #{forward.1} parent=0
    #allocation5 [shape = 'u8[983040]{0}', space=vmem, size = 0xf0000, scoped, tag = 'input window, operand 4, single buffered']
    #allocation6 [shape = 's32[2]{0}', space=sflag, size = 0x8, scoped, tag = 'scoped memory for forward.1']
    #allocation7 [shape = 's32[2]{0}', space=sflag, size = 0x8, scoped, tag = 'scoped memory for forward.1']
    #allocation8 [shape = 'u8[1024]{0}', space=vmem, size = 0x400, scoped, tag = 'output window, operand 0']
    %20 = vsyncpa [#allocation6], 0
    %21 = vsyncpa [#allocation7], 0
    %s22 = scalar_lea.sflag [#allocation7], 1
    %23 = vsyncpa %s22, 0
    loop: start=0, step=1, limit=4
    $region2: #{forward.1} parent=1 // loop_pre_header
      _
    $region3: #{forward.1} parent=1 // loop_header
      %s25 = sphi 0, %s29
      %p26 = scmp.ge.s32.totalorder %s25, 4
      %s35 = sphi 0, %s37
      %s38 = sphi 0, %s35
      %s39 = sphi 0, %s38
      %s55 = sphi 0, %s39
      %s61 = sphi 0, %s63
      %s64 = sphi 0, %s61
      %s65 = sphi 0, %s64
      %s81 = sphi 0, %s65
      %s85 = sphi 0, %s85
      %s87 = sphi 0, %s85
      %s88 = sphi 0, %s87
      %s102 = sphi 0, %s88
      %s106 = sphi 0, %s106
      %s108 = sphi 0, %s106
      %s109 = sphi 0, %s108
      %s123 = sphi 0, %s109
      %s127 = sphi 0, %s127
      %s129 = sphi 0, %s127
      %s130 = sphi 0, %s129
      %s144 = sphi 0, %s130
      %s148 = sphi 0, %s148
      %s150 = sphi 0, %s148
      %s151 = sphi 0, %s150
      %s165 = sphi 0, %s151
      %s169 = sphi 0, %s169
      %s171 = sphi 0, %s169
      %s172 = sphi 0, %s171
      %s186 = sphi 0, %s172
      %s190 = sphi 0, %s190
      %s192 = sphi 0, %s190
      %s193 = sphi 0, %s192
      %s207 = sphi 0, %s193
      %s211 = sphi 0, %s211
      %s213 = sphi 0, %s211
      %s214 = sphi 0, %s213
      %s228 = sphi 0, %s214
      %s232 = sphi 0, %s232
      %s234 = sphi 0, %s232
      %s235 = sphi 0, %s234
      %s249 = sphi 0, %s235
      %s253 = sphi 0, %s253
      %s255 = sphi 0, %s253
      %s256 = sphi 0, %s255
      %s270 = sphi 0, %s256
      %s274 = sphi 0, %s274
      %s276 = sphi 0, %s274
      %s277 = sphi 0, %s276
      %s291 = sphi 0, %s277
      %s295 = sphi 0, %s295
      %s297 = sphi 0, %s295
      %s298 = sphi 0, %s297
      %s312 = sphi 0, %s298
      %s316 = sphi 0, %s316
      %s318 = sphi 0, %s316
      %s319 = sphi 0, %s318
      %s333 = sphi 0, %s319
      %s337 = sphi 0, %s337
      %s339 = sphi 0, %s337
      %s340 = sphi 0, %s339
      %s354 = sphi 0, %s340
      %s360 = sphi 0, %s362
      %s363 = sphi 0, %s360
      %s364 = sphi 0, %s363
      %s380 = sphi 0, %s364
    $region4: #{forward.1} parent=1 // loop_header_branch
      %28 = sbr.rel (%p26) target = $region8
    $region5: #{forward.1} parent=1 // loop_body
      %s30 = ssub.s32 %s25, 1
      %s31 = ssub.s32 %s25, 2
      %s32 = sadd.s32 %s25, 1
      %s33 = ssub.s32 %s25, %s32
      %p34 = scmp.eq.s32.totalorder %s33, 0
      %s36 = sadd.s32 %s35, 1
      %s37 = scalar_select %p34, %s35, %s36
      %p40 = pneg %p34
      %p41 = scmp.eq.s32.totalorder %s25, 1
      %p42 = por %p40, %p41
      %p43 = scmp.ne.s32.totalorder %s35, %s38
      %p44 = scmp.eq.s32.totalorder %s25, 0
      %p45 = por %p43, %p44
      %p46 = scmp.ne.s32.totalorder %s35, %s38
      %p47 = scmp.eq.s32.totalorder %s30, 1
      %p48 = por %p46, %p47
      %p49 = scmp.ne.s32.totalorder %s38, %s39
      %p50 = scmp.eq.s32.totalorder %s30, 0
      %p51 = por %p49, %p50
      %p52 = scmp.ne.s32.totalorder %s38, %s39
      %p53 = scmp.eq.s32.totalorder %s31, 1
      %p54 = por %p52, %p53
      %p56 = scmp.ne.s32.totalorder %s39, %s55
      %p57 = scmp.eq.s32.totalorder %s31, 0
      %p58 = por %p56, %p57
      %s59 = ssub.s32 %s25, %s32
      %p60 = scmp.eq.s32.totalorder %s59, 0
      %s62 = sadd.s32 %s61, 1
      %s63 = scalar_select %p60, %s61, %s62
      %p66 = pneg %p60
      %p67 = scmp.eq.s32.totalorder %s25, 1
      %p68 = por %p66, %p67
      %p69 = scmp.ne.s32.totalorder %s61, %s64
      %p70 = scmp.eq.s32.totalorder %s25, 0
      %p71 = por %p69, %p70
      %p72 = scmp.ne.s32.totalorder %s61, %s64
      %p73 = scmp.eq.s32.totalorder %s30, 1
      %p74 = por %p72, %p73
      %p75 = scmp.ne.s32.totalorder %s64, %s65
      %p76 = scmp.eq.s32.totalorder %s30, 0
      %p77 = por %p75, %p76
      %p78 = scmp.ne.s32.totalorder %s64, %s65
      %p79 = scmp.eq.s32.totalorder %s31, 1
      %p80 = por %p78, %p79
      %p82 = scmp.ne.s32.totalorder %s65, %s81
      %p83 = scmp.eq.s32.totalorder %s31, 0
      %p84 = por %p82, %p83
      %s86 = sadd.s32 %s85, 1
      %p89 = scmp.eq.s32.totalorder %s25, 1
      %p90 = scmp.ne.s32.totalorder %s85, %s87
      %p91 = scmp.eq.s32.totalorder %s25, 0
      %p92 = por %p90, %p91
      %p93 = scmp.ne.s32.totalorder %s85, %s87
      %p94 = scmp.eq.s32.totalorder %s30, 1
      %p95 = por %p93, %p94
      %p96 = scmp.ne.s32.totalorder %s87, %s88
      %p97 = scmp.eq.s32.totalorder %s30, 0
      %p98 = por %p96, %p97
      %p99 = scmp.ne.s32.totalorder %s87, %s88
      %p100 = scmp.eq.s32.totalorder %s31, 1
      %p101 = por %p99, %p100
      %p103 = scmp.ne.s32.totalorder %s88, %s102
      %p104 = scmp.eq.s32.totalorder %s31, 0
      %p105 = por %p103, %p104
      %s107 = sadd.s32 %s106, 1
      %p110 = scmp.eq.s32.totalorder %s25, 1
      %p111 = scmp.ne.s32.totalorder %s106, %s108
      %p112 = scmp.eq.s32.totalorder %s25, 0
      %p113 = por %p111, %p112
      %p114 = scmp.ne.s32.totalorder %s106, %s108
      %p115 = scmp.eq.s32.totalorder %s30, 1
      %p116 = por %p114, %p115
      %p117 = scmp.ne.s32.totalorder %s108, %s109
      %p118 = scmp.eq.s32.totalorder %s30, 0
      %p119 = por %p117, %p118
      %p120 = scmp.ne.s32.totalorder %s108, %s109
      %p121 = scmp.eq.s32.totalorder %s31, 1
      %p122 = por %p120, %p121
      %p124 = scmp.ne.s32.totalorder %s109, %s123
      %p125 = scmp.eq.s32.totalorder %s31, 0
      %p126 = por %p124, %p125
      %s128 = sadd.s32 %s127, 1
      %p131 = scmp.eq.s32.totalorder %s25, 1
      %p132 = scmp.ne.s32.totalorder %s127, %s129
      %p133 = scmp.eq.s32.totalorder %s25, 0
      %p134 = por %p132, %p133
      %p135 = scmp.ne.s32.totalorder %s127, %s129
      %p136 = scmp.eq.s32.totalorder %s30, 1
      %p137 = por %p135, %p136
      %p138 = scmp.ne.s32.totalorder %s129, %s130
      %p139 = scmp.eq.s32.totalorder %s30, 0
      %p140 = por %p138, %p139
      %p141 = scmp.ne.s32.totalorder %s129, %s130
      %p142 = scmp.eq.s32.totalorder %s31, 1
      %p143 = por %p141, %p142
      %p145 = scmp.ne.s32.totalorder %s130, %s144
      %p146 = scmp.eq.s32.totalorder %s31, 0
      %p147 = por %p145, %p146
      %s149 = sadd.s32 %s148, 1
      %p152 = scmp.eq.s32.totalorder %s25, 1
      %p153 = scmp.ne.s32.totalorder %s148, %s150
      %p154 = scmp.eq.s32.totalorder %s25, 0
      %p155 = por %p153, %p154
      %p156 = scmp.ne.s32.totalorder %s148, %s150
      %p157 = scmp.eq.s32.totalorder %s30, 1
      %p158 = por %p156, %p157
      %p159 = scmp.ne.s32.totalorder %s150, %s151
      %p160 = scmp.eq.s32.totalorder %s30, 0
      %p161 = por %p159, %p160
      %p162 = scmp.ne.s32.totalorder %s150, %s151
      %p163 = scmp.eq.s32.totalorder %s31, 1
      %p164 = por %p162, %p163
      %p166 = scmp.ne.s32.totalorder %s151, %s165
      %p167 = scmp.eq.s32.totalorder %s31, 0
      %p168 = por %p166, %p167
      %s170 = sadd.s32 %s169, 1
      %p173 = scmp.eq.s32.totalorder %s25, 1
      %p174 = scmp.ne.s32.totalorder %s169, %s171
      %p175 = scmp.eq.s32.totalorder %s25, 0
      %p176 = por %p174, %p175
      %p177 = scmp.ne.s32.totalorder %s169, %s171
      %p178 = scmp.eq.s32.totalorder %s30, 1
      %p179 = por %p177, %p178
      %p180 = scmp.ne.s32.totalorder %s171, %s172
      %p181 = scmp.eq.s32.totalorder %s30, 0
      %p182 = por %p180, %p181
      %p183 = scmp.ne.s32.totalorder %s171, %s172
      %p184 = scmp.eq.s32.totalorder %s31, 1
      %p185 = por %p183, %p184
      %p187 = scmp.ne.s32.totalorder %s172, %s186
      %p188 = scmp.eq.s32.totalorder %s31, 0
      %p189 = por %p187, %p188
      %s191 = sadd.s32 %s190, 1
      %p194 = scmp.eq.s32.totalorder %s25, 1
      %p195 = scmp.ne.s32.totalorder %s190, %s192
      %p196 = scmp.eq.s32.totalorder %s25, 0
      %p197 = por %p195, %p196
      %p198 = scmp.ne.s32.totalorder %s190, %s192
      %p199 = scmp.eq.s32.totalorder %s30, 1
      %p200 = por %p198, %p199
      %p201 = scmp.ne.s32.totalorder %s192, %s193
      %p202 = scmp.eq.s32.totalorder %s30, 0
      %p203 = por %p201, %p202
      %p204 = scmp.ne.s32.totalorder %s192, %s193
      %p205 = scmp.eq.s32.totalorder %s31, 1
      %p206 = por %p204, %p205
      %p208 = scmp.ne.s32.totalorder %s193, %s207
      %p209 = scmp.eq.s32.totalorder %s31, 0
      %p210 = por %p208, %p209
      %s212 = sadd.s32 %s211, 1
      %p215 = scmp.eq.s32.totalorder %s25, 1
      %p216 = scmp.ne.s32.totalorder %s211, %s213
      %p217 = scmp.eq.s32.totalorder %s25, 0
      %p218 = por %p216, %p217
      %p219 = scmp.ne.s32.totalorder %s211, %s213
      %p220 = scmp.eq.s32.totalorder %s30, 1
      %p221 = por %p219, %p220
      %p222 = scmp.ne.s32.totalorder %s213, %s214
      %p223 = scmp.eq.s32.totalorder %s30, 0
      %p224 = por %p222, %p223
      %p225 = scmp.ne.s32.totalorder %s213, %s214
      %p226 = scmp.eq.s32.totalorder %s31, 1
      %p227 = por %p225, %p226
      %p229 = scmp.ne.s32.totalorder %s214, %s228
      %p230 = scmp.eq.s32.totalorder %s31, 0
      %p231 = por %p229, %p230
      %s233 = sadd.s32 %s232, 1
      %p236 = scmp.eq.s32.totalorder %s25, 1
      %p237 = scmp.ne.s32.totalorder %s232, %s234
      %p238 = scmp.eq.s32.totalorder %s25, 0
      %p239 = por %p237, %p238
      %p240 = scmp.ne.s32.totalorder %s232, %s234
      %p241 = scmp.eq.s32.totalorder %s30, 1
      %p242 = por %p240, %p241
      %p243 = scmp.ne.s32.totalorder %s234, %s235
      %p244 = scmp.eq.s32.totalorder %s30, 0
      %p245 = por %p243, %p244
      %p246 = scmp.ne.s32.totalorder %s234, %s235
      %p247 = scmp.eq.s32.totalorder %s31, 1
      %p248 = por %p246, %p247
      %p250 = scmp.ne.s32.totalorder %s235, %s249
      %p251 = scmp.eq.s32.totalorder %s31, 0
      %p252 = por %p250, %p251
      %s254 = sadd.s32 %s253, 1
      %p257 = scmp.eq.s32.totalorder %s25, 1
      %p258 = scmp.ne.s32.totalorder %s253, %s255
      %p259 = scmp.eq.s32.totalorder %s25, 0
      %p260 = por %p258, %p259
      %p261 = scmp.ne.s32.totalorder %s253, %s255
      %p262 = scmp.eq.s32.totalorder %s30, 1
      %p263 = por %p261, %p262
      %p264 = scmp.ne.s32.totalorder %s255, %s256
      %p265 = scmp.eq.s32.totalorder %s30, 0
      %p266 = por %p264, %p265
      %p267 = scmp.ne.s32.totalorder %s255, %s256
      %p268 = scmp.eq.s32.totalorder %s31, 1
      %p269 = por %p267, %p268
      %p271 = scmp.ne.s32.totalorder %s256, %s270
      %p272 = scmp.eq.s32.totalorder %s31, 0
      %p273 = por %p271, %p272
      %s275 = sadd.s32 %s274, 1
      %p278 = scmp.eq.s32.totalorder %s25, 1
      %p279 = scmp.ne.s32.totalorder %s274, %s276
      %p280 = scmp.eq.s32.totalorder %s25, 0
      %p281 = por %p279, %p280
      %p282 = scmp.ne.s32.totalorder %s274, %s276
      %p283 = scmp.eq.s32.totalorder %s30, 1
      %p284 = por %p282, %p283
      %p285 = scmp.ne.s32.totalorder %s276, %s277
      %p286 = scmp.eq.s32.totalorder %s30, 0
      %p287 = por %p285, %p286
      %p288 = scmp.ne.s32.totalorder %s276, %s277
      %p289 = scmp.eq.s32.totalorder %s31, 1
      %p290 = por %p288, %p289
      %p292 = scmp.ne.s32.totalorder %s277, %s291
      %p293 = scmp.eq.s32.totalorder %s31, 0
      %p294 = por %p292, %p293
      %s296 = sadd.s32 %s295, 1
      %p299 = scmp.eq.s32.totalorder %s25, 1
      %p300 = scmp.ne.s32.totalorder %s295, %s297
      %p301 = scmp.eq.s32.totalorder %s25, 0
      %p302 = por %p300, %p301
      %p303 = scmp.ne.s32.totalorder %s295, %s297
      %p304 = scmp.eq.s32.totalorder %s30, 1
      %p305 = por %p303, %p304
      %p306 = scmp.ne.s32.totalorder %s297, %s298
      %p307 = scmp.eq.s32.totalorder %s30, 0
      %p308 = por %p306, %p307
      %p309 = scmp.ne.s32.totalorder %s297, %s298
      %p310 = scmp.eq.s32.totalorder %s31, 1
      %p311 = por %p309, %p310
      %p313 = scmp.ne.s32.totalorder %s298, %s312
      %p314 = scmp.eq.s32.totalorder %s31, 0
      %p315 = por %p313, %p314
      %s317 = sadd.s32 %s316, 1
      %p320 = scmp.eq.s32.totalorder %s25, 1
      %p321 = scmp.ne.s32.totalorder %s316, %s318
      %p322 = scmp.eq.s32.totalorder %s25, 0
      %p323 = por %p321, %p322
      %p324 = scmp.ne.s32.totalorder %s316, %s318
      %p325 = scmp.eq.s32.totalorder %s30, 1
      %p326 = por %p324, %p325
      %p327 = scmp.ne.s32.totalorder %s318, %s319
      %p328 = scmp.eq.s32.totalorder %s30, 0
      %p329 = por %p327, %p328
      %p330 = scmp.ne.s32.totalorder %s318, %s319
      %p331 = scmp.eq.s32.totalorder %s31, 1
      %p332 = por %p330, %p331
      %p334 = scmp.ne.s32.totalorder %s319, %s333
      %p335 = scmp.eq.s32.totalorder %s31, 0
      %p336 = por %p334, %p335
      %s338 = sadd.s32 %s337, 1
      %p341 = scmp.eq.s32.totalorder %s25, 1
      %p342 = scmp.ne.s32.totalorder %s337, %s339
      %p343 = scmp.eq.s32.totalorder %s25, 0
      %p344 = por %p342, %p343
      %p345 = scmp.ne.s32.totalorder %s337, %s339
      %p346 = scmp.eq.s32.totalorder %s30, 1
      %p347 = por %p345, %p346
      %p348 = scmp.ne.s32.totalorder %s339, %s340
      %p349 = scmp.eq.s32.totalorder %s30, 0
      %p350 = por %p348, %p349
      %p351 = scmp.ne.s32.totalorder %s339, %s340
      %p352 = scmp.eq.s32.totalorder %s31, 1
      %p353 = por %p351, %p352
      %p355 = scmp.ne.s32.totalorder %s340, %s354
      %p356 = scmp.eq.s32.totalorder %s31, 0
      %p357 = por %p355, %p356
      %s358 = ssub.s32 %s25, %s32
      %p359 = scmp.eq.s32.totalorder %s358, 0
      %s361 = sadd.s32 %s360, 1
      %s362 = scalar_select %p359, %s360, %s361
      %p365 = pneg %p359
      %p366 = scmp.eq.s32.totalorder %s25, 1
      %p367 = por %p365, %p366
      %p368 = scmp.ne.s32.totalorder %s360, %s363
      %p369 = scmp.eq.s32.totalorder %s25, 0
      %p370 = por %p368, %p369
      %p371 = scmp.ne.s32.totalorder %s360, %s363
      %p372 = scmp.eq.s32.totalorder %s30, 1
      %p373 = por %p371, %p372
      %p374 = scmp.ne.s32.totalorder %s363, %s364
      %p375 = scmp.eq.s32.totalorder %s30, 0
      %p376 = por %p374, %p375
      %p377 = scmp.ne.s32.totalorder %s363, %s364
      %p378 = scmp.eq.s32.totalorder %s31, 1
      %p379 = por %p377, %p378
      %p381 = scmp.ne.s32.totalorder %s364, %s380
      %p382 = scmp.eq.s32.totalorder %s31, 0
      %p383 = por %p381, %p382
      %p384 = scmp.le.s32.totalorder 1, %s25
      %p385 = scmp.lt.s32.totalorder %s25, 3
      %p386 = pnand %p384, %p385
      %p387 = pneg %p386
      // Predicated region
      $region9: #{forward.1} parent=5 // pred_check
        _
      $region10: #{forward.1} parent=5 // pred_check_branch
        %389 = sbr.rel (%p386) target = $region12
      $region11: #{forward.1} parent=5 // pred_region
        %s390 = ssub.s32 %s25, 1
        // Predicated region
        $region13: #{forward.1} parent=11 // pred_check
          %p391 = pneg %p98
        $region14: #{forward.1} parent=11 // pred_check_branch
          %393 = sbr.rel (%p391) target = $region16
        $region15: #{forward.1} parent=11 // pred_region
          _
        $region16: #{forward.1} parent=11 // pred_fallthru
          _
        // Predicated region
        $region17: #{forward.1} parent=11 // pred_check
          %p394 = pneg %p119
        $region18: #{forward.1} parent=11 // pred_check_branch
          %396 = sbr.rel (%p394) target = $region20
        $region19: #{forward.1} parent=11 // pred_region
          _
        $region20: #{forward.1} parent=11 // pred_fallthru
          _
        // Predicated region
        $region21: #{forward.1} parent=11 // pred_check
          %p397 = pneg %p140
        $region22: #{forward.1} parent=11 // pred_check_branch
          %399 = sbr.rel (%p397) target = $region24
        $region23: #{forward.1} parent=11 // pred_region
          %401 = vsyncadd [#allocation6], 0
          %s402 = sshll.u32 %s4, 4
          %s403 = int_to_ptr.hbm [resolvable:$true] %s402
          %s404 = sshll.u32 [#allocation5], 4
          %s405 = int_to_ptr.vmem [resolvable:$true] %s404
          %410 = dma.hbm_to_vmem [thread:$0]  %s403, 30720, %s405, [#allocation6], 128, 128, 8
        $region24: #{forward.1} parent=11 // pred_fallthru
          _
        // Predicated region
        $region25: #{forward.1} parent=11 // pred_check
          %p411 = pneg %p161
        $region26: #{forward.1} parent=11 // pred_check_branch
          %413 = sbr.rel (%p411) target = $region28
        $region27: #{forward.1} parent=11 // pred_region
          _
        $region28: #{forward.1} parent=11 // pred_fallthru
          _
        // Predicated region
        $region29: #{forward.1} parent=11 // pred_check
          %p414 = pneg %p182
        $region30: #{forward.1} parent=11 // pred_check_branch
          %416 = sbr.rel (%p414) target = $region32
        $region31: #{forward.1} parent=11 // pred_region
          _
        $region32: #{forward.1} parent=11 // pred_fallthru
          _
        // Predicated region
        $region33: #{forward.1} parent=11 // pred_check
          %p417 = pneg %p203
        $region34: #{forward.1} parent=11 // pred_check_branch
          %419 = sbr.rel (%p417) target = $region36
        $region35: #{forward.1} parent=11 // pred_region
          _
        $region36: #{forward.1} parent=11 // pred_fallthru
          _
        // Predicated region
        $region37: #{forward.1} parent=11 // pred_check
          %p420 = pneg %p224
        $region38: #{forward.1} parent=11 // pred_check_branch
          %422 = sbr.rel (%p420) target = $region40
        $region39: #{forward.1} parent=11 // pred_region
          _
        $region40: #{forward.1} parent=11 // pred_fallthru
          _
        // Predicated region
        $region41: #{forward.1} parent=11 // pred_check
          %p423 = pneg %p245
        $region42: #{forward.1} parent=11 // pred_check_branch
          %425 = sbr.rel (%p423) target = $region44
        $region43: #{forward.1} parent=11 // pred_region
          _
        $region44: #{forward.1} parent=11 // pred_fallthru
          _
        // Predicated region
        $region45: #{forward.1} parent=11 // pred_check
          %p426 = pneg %p266
        $region46: #{forward.1} parent=11 // pred_check_branch
          %428 = sbr.rel (%p426) target = $region48
        $region47: #{forward.1} parent=11 // pred_region
          _
        $region48: #{forward.1} parent=11 // pred_fallthru
          _
        // Predicated region
        $region49: #{forward.1} parent=11 // pred_check
          %p429 = pneg %p287
        $region50: #{forward.1} parent=11 // pred_check_branch
          %431 = sbr.rel (%p429) target = $region52
        $region51: #{forward.1} parent=11 // pred_region
          _
        $region52: #{forward.1} parent=11 // pred_fallthru
          _
        // Predicated region
        $region53: #{forward.1} parent=11 // pred_check
          %p432 = pneg %p308
        $region54: #{forward.1} parent=11 // pred_check_branch
          %434 = sbr.rel (%p432) target = $region56
        $region55: #{forward.1} parent=11 // pred_region
          _
        $region56: #{forward.1} parent=11 // pred_fallthru
          _
        // Predicated region
        $region57: #{forward.1} parent=11 // pred_check
          %p435 = pneg %p329
        $region58: #{forward.1} parent=11 // pred_check_branch
          %437 = sbr.rel (%p435) target = $region60
        $region59: #{forward.1} parent=11 // pred_region
          _
        $region60: #{forward.1} parent=11 // pred_fallthru
          _
        // Predicated region
        $region61: #{forward.1} parent=11 // pred_check
          %p438 = pneg %p350
        $region62: #{forward.1} parent=11 // pred_check_branch
          %440 = sbr.rel (%p438) target = $region64
        $region63: #{forward.1} parent=11 // pred_region
          _
        $region64: #{forward.1} parent=11 // pred_fallthru
          _
      $region12: #{forward.1} parent=5 // pred_fallthru
        _
      %p441 = scmp.lt.s32.totalorder %s25, 2
      // Predicated region
      $region65: #{forward.1} parent=5 // pred_check
        %p442 = pneg %p441
      $region66: #{forward.1} parent=5 // pred_check_branch
        %444 = sbr.rel (%p442) target = $region68
      $region67: #{forward.1} parent=5 // pred_region
        // Predicated region
        $region69: #{forward.1} parent=67 // pred_check
          %p445 = pneg %p45
        $region70: #{forward.1} parent=67 // pred_check_branch
          %447 = sbr.rel (%p445) target = $region72
        $region71: #{forward.1} parent=67 // pred_region
          %p448 = scmp.lt.s32.totalorder %s25, 1
          %s449 = scalar_select %p448, %s25, 1
          %s450 = smul.addr %s449, 4
          %s451 = smul.addr %s450, 8
          %s452 = scalar_lea.vmem %s0, %s451
        $region72: #{forward.1} parent=67 // pred_fallthru
          _
        // Predicated region
        $region73: #{forward.1} parent=67 // pred_check
          %p453 = pneg %p71
        $region74: #{forward.1} parent=67 // pred_check_branch
          %455 = sbr.rel (%p453) target = $region76
        $region75: #{forward.1} parent=67 // pred_region
          %p456 = scmp.lt.s32.totalorder %s25, 1
          %s457 = scalar_select %p456, %s25, 1
          %s458 = scalar_lea.vmem %s1, %s457
        $region76: #{forward.1} parent=67 // pred_fallthru
          _
      $region68: #{forward.1} parent=5 // pred_fallthru
        _
      %p459 = scmp.le.s32.totalorder 1, %s25
      %p460 = scmp.lt.s32.totalorder %s25, 3
      %p461 = pnand %p459, %p460
      %p462 = pneg %p461
      // Predicated region
      $region77: #{forward.1} parent=5 // pred_check
        _
      $region78: #{forward.1} parent=5 // pred_check_branch
        %464 = sbr.rel (%p461) target = $region80
      $region79: #{forward.1} parent=5 // pred_region
        %s465 = ssub.s32 %s25, 1
        // Predicated region
        $region81: #{forward.1} parent=79 // pred_check
          %p466 = pneg %p140
        $region82: #{forward.1} parent=79 // pred_check_branch
          %468 = sbr.rel (%p466) target = $region84
        $region83: #{forward.1} parent=79 // pred_region
          %470 = dma.done [#allocation6], 30720
        $region84: #{forward.1} parent=79 // pred_fallthru
          _
        %p471 = scmp.lt.s32.totalorder %s30, 1
        %s472 = scalar_select %p471, %s30, 1
        %s473 = smul.addr %s472, 4
        %s474 = smul.addr %s473, 8
        %s475 = scalar_lea.vmem %s0, %s474
        %p476 = pneg %p51
        %p477 = pneg %p48
        %p478 = scmp.lt.s32.totalorder %s30, 1
        %s479 = scalar_select %p478, %s30, 1
        %s480 = scalar_lea.vmem %s1, %s479
        %p481 = pneg %p77
        %p482 = pneg %p74
        %p483 = pneg %p98
        %p484 = pneg %p95
        %p485 = pneg %p119
        %p486 = pneg %p116
        %p487 = pneg %p140
        %p488 = pneg %p137
        %p489 = pneg %p161
        %p490 = pneg %p158
        %p491 = pneg %p182
        %p492 = pneg %p179
        %p493 = pneg %p203
        %p494 = pneg %p200
        %p495 = pneg %p224
        %p496 = pneg %p221
        %p497 = pneg %p245
        %p498 = pneg %p242
        %p499 = pneg %p266
        %p500 = pneg %p263
        %p501 = pneg %p287
        %p502 = pneg %p284
        %p503 = pneg %p308
        %p504 = pneg %p305
        %p505 = pneg %p329
        %p506 = pneg %p326
        %p507 = pneg %p350
        %p508 = pneg %p347
        %p509 = pneg %p376
        %p510 = pneg %p373
        %s511 = sand.u32 %s363, 1
        %s512 = scalar_lea.sflag [#allocation7], %s511
        %s513 = sand.u32 %s363, 1
        %s514 = scalar_lea.vmem [#allocation8], %s513
        %p515 = scmp.lt.s32.totalorder %s30, 1
        %s516 = scalar_select %p515, %s30, 1
        %s517 = smul.addr %s516, 4
        %s518 = smul.addr %s517, 8
        %s519 = scalar_lea.vmem %s0, %s518
        %p520 = scmp.lt.s32.totalorder %s30, 1
        %s521 = scalar_select %p520, %s30, 1
        %s522 = scalar_lea.vmem %s1, %s521
        %v524 = vld [vmem:[%s519] sm:$0xff]
        %v525 = vld [vmem:[%s519 + $0x8] sm:$0xff]
        %v526 = vld [vmem:[%s519 + $0x10] sm:$0x3]
        %v527 = vld [vmem:[%s519 + $0x18] sm:$0x3]
        %528 = vst [vmem:[#allocation2] sm:$0xff] %v524
        %vm529 = vcmask 523264
        %530 = vst.msk [vmem:[#allocation2 + $0x8] sm:$0xff] %vm529, %v525
        %531 = vst [vmem:[#allocation2 + $0x10] sm:$0x3] %v526
        %vm532 = vcmask 517120
        %533 = vst.msk [vmem:[#allocation2 + $0x18] sm:$0x3] %vm532, %v527
        %v534 = vld [vmem:[%s519] sm:$0xfe]
        %v535 = vld [vmem:[%s519 + $0x10] sm:$0x7]
        %vm538 = vcmask 1046528
        %v539 = vrot.slane %v534, 1
        %v540 = vrot.slane %v535, 1
        %v541 = vsel %vm538, %v539, %v540
        %542 = vrot.lane.b32.xlu0 %v541, 64
        %v543 = vpop.permute.xlu0 %542
        %544 = vrot.lane.b32.xlu0 %v540, 64
        %v545 = vpop.permute.xlu0 %544
        %vm548 = vcmask 916992
        %549 = vst.msk [vmem:[#allocation2 + $0x8] sm:$0xff] %vm548, %v543
        %vm550 = vcmask 910848
        %551 = vst.msk [vmem:[#allocation2 + $0x18] sm:$0x3] %vm550, %v545
        %v552 = vld [vmem:[%s519] sm:$0xff]
        %v553 = vld [vmem:[%s519 + $0x8] sm:$0xff]
        %v554 = vld [vmem:[%s519 + $0x10] sm:$0x3]
        %v555 = vld [vmem:[%s519 + $0x18] sm:$0x3]
        %560 = vrot.lane.b32.xlu0 %v552, 32
        %v561 = vpop.permute.xlu0 %560
        %562 = vrot.lane.b32.xlu0 %v553, 32
        %v563 = vpop.permute.xlu0 %562
        %564 = vrot.lane.b32.xlu0 %v554, 32
        %v565 = vpop.permute.xlu0 %564
        %566 = vrot.lane.b32.xlu0 %v555, 32
        %v567 = vpop.permute.xlu0 %566
        %vm568 = vcmask 261120
        %v569 = vsel %vm568, %v561, %v563
        %v570 = vsel %vm568, %v565, %v567
        %vm573 = vcmask 785408
        %574 = vst.msk [vmem:[#allocation2 + $0x20] sm:$0xff] %vm573, %v569
        %vm575 = vcmask 779264
        %576 = vst.msk [vmem:[#allocation2 + $0x30] sm:$0x3] %vm575, %v570
        %v577 = vld [vmem:[%s519] sm:$0xfe]
        %v578 = vld [vmem:[%s519 + $0x8] sm:$0xfe]
        %v579 = vld [vmem:[%s519 + $0x10] sm:$0x7]
        %v580 = vld [vmem:[%s519 + $0x18] sm:$0x7]
        %v585 = vrot.slane %v577, 1
        %v586 = vrot.slane %v579, 1
        %v587 = vsel %vm538, %v585, %v586
        %v588 = vrot.slane %v578, 1
        %v589 = vrot.slane %v580, 1
        %v590 = vsel %vm538, %v588, %v589
        %591 = vrot.lane.b32.xlu0 %v587, 96
        %v592 = vpop.permute.xlu0 %591
        %593 = vrot.lane.b32.xlu0 %v590, 96
        %v594 = vpop.permute.xlu0 %593
        %595 = vrot.lane.b32.xlu0 %v586, 96
        %v596 = vpop.permute.xlu0 %595
        %597 = vrot.lane.b32.xlu0 %v589, 96
        %v598 = vpop.permute.xlu0 %597
        %v599 = vsel %vm573, %v592, %v594
        %v600 = vsel %vm573, %v596, %v598
        %vm605 = vcmask 1048320
        %606 = vst.msk [vmem:[#allocation2 + $0x20] sm:$0xff] %vm605, %v592
        %vm607 = vcmask 916480
        %608 = vst.msk [vmem:[#allocation2 + $0x28] sm:$0xff] %vm607, %v599
        %vm609 = vcmask 1042176
        %610 = vst.msk [vmem:[#allocation2 + $0x30] sm:$0x3] %vm609, %v596
        %vm611 = vcmask 910336
        %612 = vst.msk [vmem:[#allocation2 + $0x38] sm:$0x3] %vm611, %v600
        %v613 = vld [vmem:[#allocation2] sm:$0xff]
        %v614 = vld [vmem:[#allocation2 + $0x8] sm:$0xff]
        %v615 = vld [vmem:[#allocation2 + $0x10] sm:$0xff]
        %v616 = vld [vmem:[#allocation2 + $0x18] sm:$0xff]
        %v617 = vld [vmem:[#allocation2 + $0x20] sm:$0xff]
        %v618 = vld [vmem:[#allocation2 + $0x28] sm:$0xff]
        %v619 = vld [vmem:[#allocation2 + $0x30] sm:$0xff]
        %v620 = vld [vmem:[#allocation2 + $0x38] sm:$0xff]
        %v621 = vpack.c.bf16 %v615, %v613
        %v622 = vpack.c.bf16 %v616, %v614
        %v623 = vpack.c.bf16 %v619, %v617
        %v624 = vpack.c.bf16 %v620, %v618
        %v625 = vld [vmem:[%s2] sm:$0xff]
        %v626 = vld [vmem:[%s2 + $0x8] sm:$0xf]
        %v627 = vld [vmem:[%s2 + $0xc] sm:$0xff]
        %v628 = vld [vmem:[%s2 + $0x14] sm:$0xf]
        %v629 = vld [vmem:[%s2 + $0x18] sm:$0xff]
        %v630 = vld [vmem:[%s2 + $0x20] sm:$0xf]
        %v631 = vld [vmem:[%s2 + $0x24] sm:$0xff]
        %v632 = vld [vmem:[%s2 + $0x2c] sm:$0xf]
        %v633 = vld [vmem:[%s2 + $0x30] sm:$0xff]
        %v634 = vld [vmem:[%s2 + $0x38] sm:$0xf]
        %v635 = vld [vmem:[%s2 + $0x3c] sm:$0xff]
        %v636 = vld [vmem:[%s2 + $0x44] sm:$0xf]
        %v637 = vld [vmem:[%s2 + $0x48] sm:$0xff]
        %v638 = vld [vmem:[%s2 + $0x50] sm:$0xf]
        %v639 = vld [vmem:[%s2 + $0x54] sm:$0xff]
        %v640 = vld [vmem:[%s2 + $0x5c] sm:$0xf]
        %v641 = vld [vmem:[%s2 + $0x60] sm:$0xff]
        %v642 = vld [vmem:[%s2 + $0x68] sm:$0xf]
        %v643 = vld [vmem:[%s2 + $0x6c] sm:$0xff]
        %v644 = vld [vmem:[%s2 + $0x74] sm:$0xf]
        %v645 = vld [vmem:[%s2 + $0x78] sm:$0xff]
        %v646 = vld [vmem:[%s2 + $0x80] sm:$0xf]
        %v647 = vld [vmem:[%s2 + $0x84] sm:$0xff]
        %v648 = vld [vmem:[%s2 + $0x8c] sm:$0xf]
        %v649 = vld [vmem:[%s2 + $0x90] sm:$0xff]
        %v650 = vld [vmem:[%s2 + $0x98] sm:$0xf]
        %v651 = vld [vmem:[%s2 + $0x9c] sm:$0xff]
        %v652 = vld [vmem:[%s2 + $0xa4] sm:$0xf]
        %v653 = vld [vmem:[%s2 + $0xa8] sm:$0xff]
        %v654 = vld [vmem:[%s2 + $0xb0] sm:$0xf]
        %v655 = vld [vmem:[%s2 + $0xb4] sm:$0xff]
        %v656 = vld [vmem:[%s2 + $0xbc] sm:$0xf]
        %v657 = vld [vmem:[%s2 + $0xc0] sm:$0xff]
        %v658 = vld [vmem:[%s2 + $0xc8] sm:$0xf]
        %v659 = vld [vmem:[%s2 + $0xcc] sm:$0xff]
        %v660 = vld [vmem:[%s2 + $0xd4] sm:$0xf]
        %v661 = vld [vmem:[%s2 + $0xd8] sm:$0xff]
        %v662 = vld [vmem:[%s2 + $0xe0] sm:$0xf]
        %v663 = vld [vmem:[%s2 + $0xe4] sm:$0xff]
        %v664 = vld [vmem:[%s2 + $0xec] sm:$0xf]
        %v665 = vld [vmem:[%s2 + $0xf0] sm:$0xff]
        %v666 = vld [vmem:[%s2 + $0xf8] sm:$0xf]
        %v667 = vld [vmem:[%s2 + $0xfc] sm:$0xff]
        %v668 = vld [vmem:[%s2 + $0x104] sm:$0xf]
        %v669 = vld [vmem:[%s2 + $0x108] sm:$0xff]
        %v670 = vld [vmem:[%s2 + $0x110] sm:$0xf]
        %v671 = vld [vmem:[%s2 + $0x114] sm:$0xff]
        %v672 = vld [vmem:[%s2 + $0x11c] sm:$0xf]
        %v673 = vld [vmem:[%s2 + $0x120] sm:$0xff]
        %v674 = vld [vmem:[%s2 + $0x128] sm:$0xf]
        %v675 = vld [vmem:[%s2 + $0x12c] sm:$0xff]
        %v676 = vld [vmem:[%s2 + $0x134] sm:$0xf]
        %v677 = vld [vmem:[%s2 + $0x138] sm:$0xff]
        %v678 = vld [vmem:[%s2 + $0x140] sm:$0xf]
        %v679 = vld [vmem:[%s2 + $0x144] sm:$0xff]
        %v680 = vld [vmem:[%s2 + $0x14c] sm:$0xf]
        %v681 = vld [vmem:[%s2 + $0x150] sm:$0xff]
        %v682 = vld [vmem:[%s2 + $0x158] sm:$0xf]
        %v683 = vld [vmem:[%s2 + $0x15c] sm:$0xff]
        %v684 = vld [vmem:[%s2 + $0x164] sm:$0xf]
        %v685 = vld [vmem:[%s3] sm:$0x7]
        %v687 = vperm.slane %v685, 0
        %v688 = vperm.slane %v685, 1
        %v689 = vperm.slane %v685, 2
        %v753 = vunpack.c.l.b16 %v625
        %v754 = vunpack.c.h.b16 %v625
        %v755 = vunpack.c.l.b16 %v626
        %v756 = vunpack.c.l.b16 %v627
        %v757 = vunpack.c.h.b16 %v627
        %v758 = vunpack.c.l.b16 %v628
        %v759 = vunpack.c.l.b16 %v629
        %v760 = vunpack.c.h.b16 %v629
        %v761 = vunpack.c.l.b16 %v630
        %v762 = vunpack.c.l.b16 %v631
        %v763 = vunpack.c.h.b16 %v631
        %v764 = vunpack.c.l.b16 %v632
        %v765 = vunpack.c.l.b16 %v633
        %v766 = vunpack.c.h.b16 %v633
        %v767 = vunpack.c.l.b16 %v634
        %v768 = vunpack.c.l.b16 %v635
        %v769 = vunpack.c.h.b16 %v635
        %v770 = vunpack.c.l.b16 %v636
        %v771 = vunpack.c.l.b16 %v637
        %v772 = vunpack.c.h.b16 %v637
        %v773 = vunpack.c.l.b16 %v638
        %v774 = vunpack.c.l.b16 %v639
        %v775 = vunpack.c.h.b16 %v639
        %v776 = vunpack.c.l.b16 %v640
        %v777 = vunpack.c.l.b16 %v641
        %v778 = vunpack.c.h.b16 %v641
        %v779 = vunpack.c.l.b16 %v642
        %v780 = vunpack.c.l.b16 %v643
        %v781 = vunpack.c.h.b16 %v643
        %v782 = vunpack.c.l.b16 %v644
        %v783 = vunpack.c.l.b16 %v645
        %v784 = vunpack.c.h.b16 %v645
        %v785 = vunpack.c.l.b16 %v646
        %v786 = vunpack.c.l.b16 %v647
        %v787 = vunpack.c.h.b16 %v647
        %v788 = vunpack.c.l.b16 %v648
        %v789 = vunpack.c.l.b16 %v649
        %v790 = vunpack.c.h.b16 %v649
        %v791 = vunpack.c.l.b16 %v650
        %v792 = vunpack.c.l.b16 %v651
        %v793 = vunpack.c.h.b16 %v651
        %v794 = vunpack.c.l.b16 %v652
        %v795 = vunpack.c.l.b16 %v653
        %v796 = vunpack.c.h.b16 %v653
        %v797 = vunpack.c.l.b16 %v654
        %v798 = vunpack.c.l.b16 %v655
        %v799 = vunpack.c.h.b16 %v655
        %v800 = vunpack.c.l.b16 %v656
        %v801 = vunpack.c.l.b16 %v657
        %v802 = vunpack.c.h.b16 %v657
        %v803 = vunpack.c.l.b16 %v658
        %v804 = vunpack.c.l.b16 %v659
        %v805 = vunpack.c.h.b16 %v659
        %v806 = vunpack.c.l.b16 %v660
        %v807 = vunpack.c.l.b16 %v661
        %v808 = vunpack.c.h.b16 %v661
        %v809 = vunpack.c.l.b16 %v662
        %v810 = vunpack.c.l.b16 %v663
        %v811 = vunpack.c.h.b16 %v663
        %v812 = vunpack.c.l.b16 %v664
        %v813 = vunpack.c.l.b16 %v665
        %v814 = vunpack.c.h.b16 %v665
        %v815 = vunpack.c.l.b16 %v666
        %v816 = vunpack.c.l.b16 %v667
        %v817 = vunpack.c.h.b16 %v667
        %v818 = vunpack.c.l.b16 %v668
        %v819 = vunpack.c.l.b16 %v669
        %v820 = vunpack.c.h.b16 %v669
        %v821 = vunpack.c.l.b16 %v670
        %v822 = vunpack.c.l.b16 %v671
        %v823 = vunpack.c.h.b16 %v671
        %v824 = vunpack.c.l.b16 %v672
        %v825 = vunpack.c.l.b16 %v673
        %v826 = vunpack.c.h.b16 %v673
        %v827 = vunpack.c.l.b16 %v674
        %v828 = vunpack.c.l.b16 %v675
        %v829 = vunpack.c.h.b16 %v675
        %v830 = vunpack.c.l.b16 %v676
        %v831 = vunpack.c.l.b16 %v677
        %v832 = vunpack.c.h.b16 %v677
        %v833 = vunpack.c.l.b16 %v678
        %v834 = vunpack.c.l.b16 %v679
        %v835 = vunpack.c.h.b16 %v679
        %v836 = vunpack.c.l.b16 %v680
        %v837 = vunpack.c.l.b16 %v681
        %v838 = vunpack.c.h.b16 %v681
        %v839 = vunpack.c.l.b16 %v682
        %v840 = vunpack.c.l.b16 %v683
        %v841 = vunpack.c.h.b16 %v683
        %v842 = vunpack.c.l.b16 %v684
        %v843 = vpack.c.b16 %v756, %v753
        %v844 = vpack.c.b16 %v757, %v754
        %v845 = vpack.c.b16 %v758, %v755
        %v846 = vpack.c.b16 %v762, %v759
        %v847 = vpack.c.b16 %v763, %v760
        %v848 = vpack.c.b16 %v764, %v761
        %v849 = vpack.c.b16 %v768, %v765
        %v850 = vpack.c.b16 %v769, %v766
        %v851 = vpack.c.b16 %v770, %v767
        %v852 = vpack.c.b16 %v774, %v771
        %v853 = vpack.c.b16 %v775, %v772
        %v854 = vpack.c.b16 %v776, %v773
        %v855 = vpack.c.b16 %v780, %v777
        %v856 = vpack.c.b16 %v781, %v778
        %v857 = vpack.c.b16 %v782, %v779
        %v858 = vpack.c.b16 %v786, %v783
        %v859 = vpack.c.b16 %v787, %v784
        %v860 = vpack.c.b16 %v788, %v785
        %v861 = vpack.c.b16 %v792, %v789
        %v862 = vpack.c.b16 %v793, %v790
        %v863 = vpack.c.b16 %v794, %v791
        %v864 = vpack.c.b16 %v798, %v795
        %v865 = vpack.c.b16 %v799, %v796
        %v866 = vpack.c.b16 %v800, %v797
        %v867 = vpack.c.b16 %v804, %v801
        %v868 = vpack.c.b16 %v805, %v802
        %v869 = vpack.c.b16 %v806, %v803
        %v870 = vpack.c.b16 %v810, %v807
        %v871 = vpack.c.b16 %v811, %v808
        %v872 = vpack.c.b16 %v812, %v809
        %v873 = vpack.c.b16 %v816, %v813
        %v874 = vpack.c.b16 %v817, %v814
        %v875 = vpack.c.b16 %v818, %v815
        %v876 = vpack.c.b16 %v822, %v819
        %v877 = vpack.c.b16 %v823, %v820
        %v878 = vpack.c.b16 %v824, %v821
        %v879 = vpack.c.b16 %v828, %v825
        %v880 = vpack.c.b16 %v829, %v826
        %v881 = vpack.c.b16 %v830, %v827
        %v882 = vpack.c.b16 %v834, %v831
        %v883 = vpack.c.b16 %v835, %v832
        %v884 = vpack.c.b16 %v836, %v833
        %v885 = vpack.c.b16 %v840, %v837
        %v886 = vpack.c.b16 %v841, %v838
        %v887 = vpack.c.b16 %v842, %v839
        %v934 = vsel %vm607, %v622, 0
        %v937 = vsel %vm607, %v624, 0
        %939 = vmatpush.bf16.msra.mxu0 %v864
        %940 = vmatpush.bf16.msra.mxu0 %v861
        %941 = vmatpush.bf16.msra.mxu0 %v858
        %942 = vmatpush.bf16.msra.mxu0 %v855
        %943 = vmatpush.bf16.msra.mxu0 %v852
        %944 = vmatpush.bf16.msra.mxu0 %v849
        %945 = vmatpush.bf16.msra.mxu0 %v846
        %946 = vmatpush.bf16.msra.mxu0 %v843
        %947 = vmatmul.bf16.gmra.mxu0 %v621
        %v948 = vpop.f32.mrf.mxu0
        %v949 = vadd.f32 %v687, %v948
        %v950 = vpop.f32.mrf.mxu0
        %v951 = vadd.f32 %v687, %v950
        %952 = vmatmul.bf16.gmra.mxu0 %v623
        %v953 = vpop.f32.mrf.mxu0
        %v954 = vadd.f32 %v687, %v953
        %v955 = vpop.f32.mrf.mxu0
        %v956 = vadd.f32 %v687, %v955
        %957 = vdwg.mxu0
        %958 = vmatpush.bf16.msra.mxu0 0
        %959 = vmatpush.bf16.msra.mxu0 %v885
        %960 = vmatpush.bf16.msra.mxu0 %v882
        %961 = vmatpush.bf16.msra.mxu0 %v879
        %962 = vmatpush.bf16.msra.mxu0 %v876
        %963 = vmatpush.bf16.msra.mxu0 %v873
        %964 = vmatpush.bf16.msra.mxu0 %v870
        %965 = vmatpush.bf16.msra.mxu0 %v867
        %966 = vmatmul.bf16.gmra.mxu0 %v934
        %v967 = vpop.f32.mrf.mxu0
        %v968 = vadd.f32 %v949, %v967
        %v969 = vpop.f32.mrf.mxu0
        %v970 = vadd.f32 %v951, %v969
        %971 = vmatmul.bf16.gmra.mxu0 %v937
        %v972 = vpop.f32.mrf.mxu0
        %v973 = vadd.f32 %v954, %v972
        %v974 = vpop.f32.mrf.mxu0
        %v975 = vadd.f32 %v956, %v974
        %976 = vdwg.mxu0
        %977 = vmatpush.bf16.msra.mxu0 %v865
        %978 = vmatpush.bf16.msra.mxu0 %v862
        %979 = vmatpush.bf16.msra.mxu0 %v859
        %980 = vmatpush.bf16.msra.mxu0 %v856
        %981 = vmatpush.bf16.msra.mxu0 %v853
        %982 = vmatpush.bf16.msra.mxu0 %v850
        %983 = vmatpush.bf16.msra.mxu0 %v847
        %984 = vmatpush.bf16.msra.mxu0 %v844
        %985 = vmatmul.bf16.gmra.mxu0 %v621
        %v986 = vpop.f32.mrf.mxu0
        %v987 = vadd.f32 %v688, %v986
        %v988 = vpop.f32.mrf.mxu0
        %v989 = vadd.f32 %v688, %v988
        %990 = vmatmul.bf16.gmra.mxu0 %v623
        %v991 = vpop.f32.mrf.mxu0
        %v992 = vadd.f32 %v688, %v991
        %v993 = vpop.f32.mrf.mxu0
        %v994 = vadd.f32 %v688, %v993
        %995 = vdwg.mxu0
        %996 = vmatpush.bf16.msra.mxu0 0
        %997 = vmatpush.bf16.msra.mxu0 %v886
        %998 = vmatpush.bf16.msra.mxu0 %v883
        %999 = vmatpush.bf16.msra.mxu0 %v880
        %1000 = vmatpush.bf16.msra.mxu0 %v877
        %1001 = vmatpush.bf16.msra.mxu0 %v874
        %1002 = vmatpush.bf16.msra.mxu0 %v871
        %1003 = vmatpush.bf16.msra.mxu0 %v868
        %1004 = vmatmul.bf16.gmra.mxu0 %v934
        %v1005 = vpop.f32.mrf.mxu0
        %v1006 = vadd.f32 %v987, %v1005
        %v1007 = vpop.f32.mrf.mxu0
        %v1008 = vadd.f32 %v989, %v1007
        %1009 = vmatmul.bf16.gmra.mxu0 %v937
        %v1010 = vpop.f32.mrf.mxu0
        %v1011 = vadd.f32 %v992, %v1010
        %v1012 = vpop.f32.mrf.mxu0
        %v1013 = vadd.f32 %v994, %v1012
        %1014 = vdwg.mxu0
        %1015 = vmatpush.bf16.msra.mxu0 %v866
        %1016 = vmatpush.bf16.msra.mxu0 %v863
        %1017 = vmatpush.bf16.msra.mxu0 %v860
        %1018 = vmatpush.bf16.msra.mxu0 %v857
        %1019 = vmatpush.bf16.msra.mxu0 %v854
        %1020 = vmatpush.bf16.msra.mxu0 %v851
        %1021 = vmatpush.bf16.msra.mxu0 %v848
        %1022 = vmatpush.bf16.msra.mxu0 %v845
        %1023 = vmatmul.bf16.gmra.mxu0 %v621
        %v1024 = vpop.f32.mrf.mxu0
        %v1025 = vadd.f32 %v689, %v1024
        %v1026 = vpop.f32.mrf.mxu0
        %v1027 = vadd.f32 %v689, %v1026
        %1028 = vmatmul.bf16.gmra.mxu0 %v623
        %v1029 = vpop.f32.mrf.mxu0
        %v1030 = vadd.f32 %v689, %v1029
        %v1031 = vpop.f32.mrf.mxu0
        %v1032 = vadd.f32 %v689, %v1031
        %1033 = vdwg.mxu0
        %1034 = vmatpush.bf16.msra.mxu0 0
        %1035 = vmatpush.bf16.msra.mxu0 %v887
        %1036 = vmatpush.bf16.msra.mxu0 %v884
        %1037 = vmatpush.bf16.msra.mxu0 %v881
        %1038 = vmatpush.bf16.msra.mxu0 %v878
        %1039 = vmatpush.bf16.msra.mxu0 %v875
        %1040 = vmatpush.bf16.msra.mxu0 %v872
        %1041 = vmatpush.bf16.msra.mxu0 %v869
        %1042 = vmatmul.bf16.gmra.mxu0 %v934
        %v1043 = vpop.f32.mrf.mxu0
        %v1044 = vadd.f32 %v1025, %v1043
        %v1045 = vpop.f32.mrf.mxu0
        %v1046 = vadd.f32 %v1027, %v1045
        %1047 = vmatmul.bf16.gmra.mxu0 %v937
        %v1048 = vpop.f32.mrf.mxu0
        %v1049 = vadd.f32 %v1030, %v1048
        %v1050 = vpop.f32.mrf.mxu0
        %v1051 = vadd.f32 %v1032, %v1050
        %1052 = vdwg.mxu0
        %v1053 = vmax.f32 %v968, 0.0
        %v1054 = vmax.f32 %v1006, 0.0
        %v1055 = vmax.f32 %v1044, 0.0
        %v1056 = vmax.f32 %v970, 0.0
        %v1057 = vmax.f32 %v1008, 0.0
        %v1058 = vmax.f32 %v1046, 0.0
        %v1059 = vmax.f32 %v973, 0.0
        %v1060 = vmax.f32 %v1011, 0.0
        %v1061 = vmax.f32 %v1049, 0.0
        %v1062 = vmax.f32 %v975, 0.0
        %v1063 = vmax.f32 %v1013, 0.0
        %v1064 = vmax.f32 %v1051, 0.0
        %1065 = vst [vmem:[#allocation3] sm:$0xff] %v1053
        %1066 = vst [vmem:[#allocation3 + $0x8] sm:$0xff] %v1054
        %1067 = vst [vmem:[#allocation3 + $0x10] sm:$0xff] %v1055
        %1068 = vst [vmem:[#allocation3 + $0x18] sm:$0xff] %v1059
        %1069 = vst [vmem:[#allocation3 + $0x20] sm:$0xff] %v1060
        %1070 = vst [vmem:[#allocation3 + $0x28] sm:$0xff] %v1061
        %v1077 = vrot.slane %v1053, 1
        %v1078 = vrot.slane %v1056, 1
        %v1079 = vsel %vm538, %v1077, %v1078
        %v1080 = vrot.slane %v1054, 1
        %v1081 = vrot.slane %v1057, 1
        %v1082 = vsel %vm538, %v1080, %v1081
        %v1083 = vrot.slane %v1055, 1
        %v1084 = vrot.slane %v1058, 1
        %v1085 = vsel %vm538, %v1083, %v1084
        %1089 = vst [vmem:[#allocation3 + $0x30] sm:$0xff] %v1079
        %1090 = vst [vmem:[#allocation3 + $0x38] sm:$0xff] %v1082
        %1091 = vst [vmem:[#allocation3 + $0x40] sm:$0xff] %v1085
        %v1098 = vrot.slane %v1059, 1
        %v1099 = vrot.slane %v1062, 1
        %v1100 = vsel %vm538, %v1098, %v1099
        %v1101 = vrot.slane %v1060, 1
        %v1102 = vrot.slane %v1063, 1
        %v1103 = vsel %vm538, %v1101, %v1102
        %v1104 = vrot.slane %v1061, 1
        %v1105 = vrot.slane %v1064, 1
        %v1106 = vsel %vm538, %v1104, %v1105
        %1110 = vst [vmem:[#allocation3 + $0x48] sm:$0xff] %v1100
        %1111 = vst [vmem:[#allocation3 + $0x50] sm:$0xff] %v1103
        %1112 = vst [vmem:[#allocation3 + $0x58] sm:$0xff] %v1106
        %vm1113 = vcmask 1045504
        %v1114 = vrot.slane %v1053, 2
        %v1115 = vrot.slane %v1056, 2
        %v1116 = vsel %vm1113, %v1114, %v1115
        %v1117 = vrot.slane %v1054, 2
        %v1118 = vrot.slane %v1057, 2
        %v1119 = vsel %vm1113, %v1117, %v1118
        %v1120 = vrot.slane %v1055, 2
        %v1121 = vrot.slane %v1058, 2
        %v1122 = vsel %vm1113, %v1120, %v1121
        %1126 = vst [vmem:[#allocation3 + $0x60] sm:$0xff] %v1116
        %1127 = vst [vmem:[#allocation3 + $0x68] sm:$0xff] %v1119
        %1128 = vst [vmem:[#allocation3 + $0x70] sm:$0xff] %v1122
        %v1129 = vld [vmem:[#allocation3] sm:$0xff]
        %v1130 = vld [vmem:[#allocation3 + $0x8] sm:$0xff]
        %v1131 = vld [vmem:[#allocation3 + $0x10] sm:$0xff]
        %v1132 = vld [vmem:[#allocation3 + $0x18] sm:$0xff]
        %v1133 = vld [vmem:[#allocation3 + $0x20] sm:$0xff]
        %v1134 = vld [vmem:[#allocation3 + $0x28] sm:$0xff]
        %v1135 = vld [vmem:[#allocation3 + $0x30] sm:$0xff]
        %v1136 = vld [vmem:[#allocation3 + $0x38] sm:$0xff]
        %v1137 = vld [vmem:[#allocation3 + $0x40] sm:$0xff]
        %v1138 = vld [vmem:[#allocation3 + $0x48] sm:$0xff]
        %v1139 = vld [vmem:[#allocation3 + $0x50] sm:$0xff]
        %v1140 = vld [vmem:[#allocation3 + $0x58] sm:$0xff]
        %v1141 = vld [vmem:[#allocation3 + $0x60] sm:$0xff]
        %v1142 = vld [vmem:[#allocation3 + $0x68] sm:$0xff]
        %v1143 = vld [vmem:[#allocation3 + $0x70] sm:$0xff]
        %v1144 = vpack.c.bf16 %v1129, %v1129
        %v1145 = vpack.c.bf16 %v1130, %v1130
        %v1146 = vpack.c.bf16 %v1131, %v1131
        %v1147 = vpack.c.bf16 %v1132, %v1132
        %v1148 = vpack.c.bf16 %v1133, %v1133
        %v1149 = vpack.c.bf16 %v1134, %v1134
        %v1150 = vpack.c.bf16 %v1135, %v1135
        %v1151 = vpack.c.bf16 %v1136, %v1136
        %v1152 = vpack.c.bf16 %v1137, %v1137
        %v1153 = vpack.c.bf16 %v1138, %v1138
        %v1154 = vpack.c.bf16 %v1139, %v1139
        %v1155 = vpack.c.bf16 %v1140, %v1140
        %v1156 = vpack.c.bf16 %v1141, %v1141
        %v1157 = vpack.c.bf16 %v1142, %v1142
        %v1158 = vpack.c.bf16 %v1143, %v1143
        %v1159 = vld [vmem:[#allocation5] sm:$0xff]
        %v1160 = vld [vmem:[#allocation5 + $0x8] sm:$0xff]
        %v1161 = vld [vmem:[#allocation5 + $0x10] sm:$0xff]
        %v1162 = vld [vmem:[#allocation5 + $0x18] sm:$0xff]
        %v1163 = vld [vmem:[#allocation5 + $0x20] sm:$0xff]
        %v1164 = vld [vmem:[#allocation5 + $0x28] sm:$0xff]
        %v1165 = vld [vmem:[#allocation5 + $0x30] sm:$0xff]
        %v1166 = vld [vmem:[#allocation5 + $0x38] sm:$0xff]
        %v1167 = vld [vmem:[#allocation5 + $0x40] sm:$0xff]
        %v1168 = vld [vmem:[#allocation5 + $0x48] sm:$0xff]
        %v1169 = vld [vmem:[#allocation5 + $0x50] sm:$0xff]
        %v1170 = vld [vmem:[#allocation5 + $0x58] sm:$0xff]
        %v1171 = vld [vmem:[#allocation5 + $0x60] sm:$0xff]
        %v1172 = vld [vmem:[#allocation5 + $0x68] sm:$0xff]
        %v1173 = vld [vmem:[#allocation5 + $0x70] sm:$0xff]
        %v1174 = vld [vmem:[#allocation5 + $0x78] sm:$0xff]
        %v1175 = vld [vmem:[#allocation5 + $0x80] sm:$0xff]
        %v1176 = vld [vmem:[#allocation5 + $0x88] sm:$0xff]
        %v1177 = vld [vmem:[#allocation5 + $0x90] sm:$0xff]
        %v1178 = vld [vmem:[#allocation5 + $0x98] sm:$0xff]
        %v1179 = vld [vmem:[#allocation5 + $0xa0] sm:$0xff]
        %v1180 = vld [vmem:[#allocation5 + $0xa8] sm:$0xff]
        %v1181 = vld [vmem:[#allocation5 + $0xb0] sm:$0xff]
        %v1182 = vld [vmem:[#allocation5 + $0xb8] sm:$0xff]
        %v1183 = vld [vmem:[#allocation5 + $0xc0] sm:$0xff]
        %v1184 = vld [vmem:[#allocation5 + $0xc8] sm:$0xff]
        %v1185 = vld [vmem:[#allocation5 + $0xd0] sm:$0xff]
        %v1186 = vld [vmem:[#allocation5 + $0xd8] sm:$0xff]
        %v1187 = vld [vmem:[#allocation5 + $0xe0] sm:$0xff]
        %v1188 = vld [vmem:[#allocation5 + $0xe8] sm:$0xff]
        %v1189 = vld [vmem:[#allocation5 + $0xf0] sm:$0xff]
        %v1190 = vld [vmem:[#allocation5 + $0xf8] sm:$0xff]
        %v1191 = vld [vmem:[#allocation5 + $0x100] sm:$0xff]
        %v1192 = vld [vmem:[#allocation5 + $0x108] sm:$0xff]
        %v1193 = vld [vmem:[#allocation5 + $0x110] sm:$0xff]
        %v1194 = vld [vmem:[#allocation5 + $0x118] sm:$0xff]
        %v1195 = vld [vmem:[#allocation5 + $0x120] sm:$0xff]
        %v1196 = vld [vmem:[#allocation5 + $0x128] sm:$0xff]
        %v1197 = vld [vmem:[#allocation5 + $0x130] sm:$0xff]
        %v1198 = vld [vmem:[#allocation5 + $0x138] sm:$0xff]
        %v1199 = vld [vmem:[#allocation5 + $0x140] sm:$0xff]
        %v1200 = vld [vmem:[#allocation5 + $0x148] sm:$0xff]
        %v1201 = vld [vmem:[#allocation5 + $0x150] sm:$0xff]
        %v1202 = vld [vmem:[#allocation5 + $0x158] sm:$0xff]
        %v1203 = vld [vmem:[#allocation5 + $0x160] sm:$0xff]
        %v1204 = vld [vmem:[#allocation5 + $0x168] sm:$0xff]
        %v1205 = vld [vmem:[#allocation5 + $0x170] sm:$0xff]
        %v1206 = vld [vmem:[#allocation5 + $0x178] sm:$0xff]
        %v1207 = vld [vmem:[#allocation5 + $0x180] sm:$0xff]
        %v1208 = vld [vmem:[#allocation5 + $0x188] sm:$0xff]
        %v1209 = vld [vmem:[#allocation5 + $0x190] sm:$0xff]
        %v1210 = vld [vmem:[#allocation5 + $0x198] sm:$0xff]
        %v1211 = vld [vmem:[#allocation5 + $0x1a0] sm:$0xff]
        %v1212 = vld [vmem:[#allocation5 + $0x1a8] sm:$0xff]
        %v1213 = vld [vmem:[#allocation5 + $0x1b0] sm:$0xff]
        %v1214 = vld [vmem:[#allocation5 + $0x1b8] sm:$0xff]
        %v1215 = vld [vmem:[#allocation5 + $0x1c0] sm:$0xff]
        %v1216 = vld [vmem:[#allocation5 + $0x1c8] sm:$0xff]
        %v1217 = vld [vmem:[#allocation5 + $0x1d0] sm:$0xff]
        %v1218 = vld [vmem:[#allocation5 + $0x1d8] sm:$0xff]
        %v1219 = vld [vmem:[#allocation5 + $0x1e0] sm:$0xff]
        %v1220 = vld [vmem:[#allocation5 + $0x1e8] sm:$0xff]
        %v1221 = vld [vmem:[#allocation5 + $0x1f0] sm:$0xff]
        %v1222 = vld [vmem:[#allocation5 + $0x1f8] sm:$0xff]
        %v1223 = vld [vmem:[#allocation5 + $0x200] sm:$0xff]
        %v1224 = vld [vmem:[#allocation5 + $0x208] sm:$0xff]
        %v1225 = vld [vmem:[#allocation5 + $0x210] sm:$0xff]
        %v1226 = vld [vmem:[#allocation5 + $0x218] sm:$0xff]
        %v1227 = vld [vmem:[#allocation5 + $0x220] sm:$0xff]
        %v1228 = vld [vmem:[#allocation5 + $0x228] sm:$0xff]
        %v1229 = vld [vmem:[#allocation5 + $0x230] sm:$0xff]
        %v1230 = vld [vmem:[#allocation5 + $0x238] sm:$0xff]
        %v1231 = vld [vmem:[#allocation5 + $0x240] sm:$0xff]
        %v1232 = vld [vmem:[#allocation5 + $0x248] sm:$0xff]
        %v1233 = vld [vmem:[#allocation5 + $0x250] sm:$0xff]
        %v1234 = vld [vmem:[#allocation5 + $0x258] sm:$0xff]
        %v1235 = vld [vmem:[#allocation5 + $0x260] sm:$0xff]
        %v1236 = vld [vmem:[#allocation5 + $0x268] sm:$0xff]
        %v1237 = vld [vmem:[#allocation5 + $0x270] sm:$0xff]
        %v1238 = vld [vmem:[#allocation5 + $0x278] sm:$0xff]
        %v1239 = vld [vmem:[#allocation5 + $0x280] sm:$0xff]
        %v1240 = vld [vmem:[#allocation5 + $0x288] sm:$0xff]
        %v1241 = vld [vmem:[#allocation5 + $0x290] sm:$0xff]
        %v1242 = vld [vmem:[#allocation5 + $0x298] sm:$0xff]
        %v1243 = vld [vmem:[#allocation5 + $0x2a0] sm:$0xff]
        %v1244 = vld [vmem:[#allocation5 + $0x2a8] sm:$0xff]
        %v1245 = vld [vmem:[#allocation5 + $0x2b0] sm:$0xff]
        %v1246 = vld [vmem:[#allocation5 + $0x2b8] sm:$0xff]
        %v1247 = vld [vmem:[#allocation5 + $0x2c0] sm:$0xff]
        %v1248 = vld [vmem:[#allocation5 + $0x2c8] sm:$0xff]
        %v1249 = vld [vmem:[#allocation5 + $0x2d0] sm:$0xff]
        %v1250 = vld [vmem:[#allocation5 + $0x2d8] sm:$0xff]
        %v1251 = vld [vmem:[#allocation5 + $0x2e0] sm:$0xff]
        %v1252 = vld [vmem:[#allocation5 + $0x2e8] sm:$0xff]
        %v1253 = vld [vmem:[#allocation5 + $0x2f0] sm:$0xff]
        %v1254 = vld [vmem:[#allocation5 + $0x2f8] sm:$0xff]
        %v1255 = vld [vmem:[#allocation5 + $0x300] sm:$0xff]
        %v1256 = vld [vmem:[#allocation5 + $0x308] sm:$0xff]
        %v1257 = vld [vmem:[#allocation5 + $0x310] sm:$0xff]
        %v1258 = vld [vmem:[#allocation5 + $0x318] sm:$0xff]
        %v1259 = vld [vmem:[#allocation5 + $0x320] sm:$0xff]
        %v1260 = vld [vmem:[#allocation5 + $0x328] sm:$0xff]
        %v1261 = vld [vmem:[#allocation5 + $0x330] sm:$0xff]
        %v1262 = vld [vmem:[#allocation5 + $0x338] sm:$0xff]
        %v1263 = vld [vmem:[#allocation5 + $0x340] sm:$0xff]
        %v1264 = vld [vmem:[#allocation5 + $0x348] sm:$0xff]
        %v1265 = vld [vmem:[#allocation5 + $0x350] sm:$0xff]
        %v1266 = vld [vmem:[#allocation5 + $0x358] sm:$0xff]
        %v1267 = vld [vmem:[#allocation5 + $0x360] sm:$0xff]
        %v1268 = vld [vmem:[#allocation5 + $0x368] sm:$0xff]
        %v1269 = vld [vmem:[#allocation5 + $0x370] sm:$0xff]
        %v1270 = vld [vmem:[#allocation5 + $0x378] sm:$0xff]
        %v1271 = vld [vmem:[#allocation5 + $0x380] sm:$0xff]
        %v1272 = vld [vmem:[#allocation5 + $0x388] sm:$0xff]
        %v1273 = vld [vmem:[#allocation5 + $0x390] sm:$0xff]
        %v1274 = vld [vmem:[#allocation5 + $0x398] sm:$0xff]
        %v1275 = vld [vmem:[#allocation5 + $0x3a0] sm:$0xff]
        %v1276 = vld [vmem:[#allocation5 + $0x3a8] sm:$0xff]
        %v1277 = vld [vmem:[#allocation5 + $0x3b0] sm:$0xff]
        %v1278 = vld [vmem:[#allocation5 + $0x3b8] sm:$0xff]
        %v1279 = vld [vmem:[#allocation5 + $0x3c0] sm:$0xff]
        %v1280 = vld [vmem:[#allocation5 + $0x3c8] sm:$0xff]
        %v1281 = vld [vmem:[#allocation5 + $0x3d0] sm:$0xff]
        %v1282 = vld [vmem:[#allocation5 + $0x3d8] sm:$0xff]
        %v1283 = vld [vmem:[#allocation5 + $0x3e0] sm:$0xff]
        %v1284 = vld [vmem:[#allocation5 + $0x3e8] sm:$0xff]
        %v1285 = vld [vmem:[#allocation5 + $0x3f0] sm:$0xff]
        %v1286 = vld [vmem:[#allocation5 + $0x3f8] sm:$0xff]
        %v1287 = vld [vmem:[#allocation5 + $0x400] sm:$0xff]
        %v1288 = vld [vmem:[#allocation5 + $0x408] sm:$0xff]
        %v1289 = vld [vmem:[#allocation5 + $0x410] sm:$0xff]
        %v1290 = vld [vmem:[#allocation5 + $0x418] sm:$0xff]
        %v1291 = vld [vmem:[#allocation5 + $0x420] sm:$0xff]
        %v1292 = vld [vmem:[#allocation5 + $0x428] sm:$0xff]
        %v1293 = vld [vmem:[#allocation5 + $0x430] sm:$0xff]
        %v1294 = vld [vmem:[#allocation5 + $0x438] sm:$0xff]
        %v1295 = vld [vmem:[#allocation5 + $0x440] sm:$0xff]
        %v1296 = vld [vmem:[#allocation5 + $0x448] sm:$0xff]
        %v1297 = vld [vmem:[#allocation5 + $0x450] sm:$0xff]
        %v1298 = vld [vmem:[#allocation5 + $0x458] sm:$0xff]
        %v1299 = vld [vmem:[#allocation5 + $0x460] sm:$0xff]
        %v1300 = vld [vmem:[#allocation5 + $0x468] sm:$0xff]
        %v1301 = vld [vmem:[#allocation5 + $0x470] sm:$0xff]
        %v1302 = vld [vmem:[#allocation5 + $0x478] sm:$0xff]
        %v1303 = vld [vmem:[#allocation5 + $0x480] sm:$0xff]
        %v1304 = vld [vmem:[#allocation5 + $0x488] sm:$0xff]
        %v1305 = vld [vmem:[#allocation5 + $0x490] sm:$0xff]
        %v1306 = vld [vmem:[#allocation5 + $0x498] sm:$0xff]
        %v1307 = vld [vmem:[#allocation5 + $0x4a0] sm:$0xff]
        %v1308 = vld [vmem:[#allocation5 + $0x4a8] sm:$0xff]
        %v1309 = vld [vmem:[#allocation5 + $0x4b0] sm:$0xff]
        %v1310 = vld [vmem:[#allocation5 + $0x4b8] sm:$0xff]
        %v1311 = vld [vmem:[#allocation5 + $0x4c0] sm:$0xff]
        %v1312 = vld [vmem:[#allocation5 + $0x4c8] sm:$0xff]
        %v1313 = vld [vmem:[#allocation5 + $0x4d0] sm:$0xff]
        %v1314 = vld [vmem:[#allocation5 + $0x4d8] sm:$0xff]
        %v1315 = vld [vmem:[#allocation5 + $0x4e0] sm:$0xff]
        %v1316 = vld [vmem:[#allocation5 + $0x4e8] sm:$0xff]
        %v1317 = vld [vmem:[#allocation5 + $0x4f0] sm:$0xff]
        %v1318 = vld [vmem:[#allocation5 + $0x4f8] sm:$0xff]
        %v1319 = vld [vmem:[#allocation5 + $0x500] sm:$0xff]
        %v1320 = vld [vmem:[#allocation5 + $0x508] sm:$0xff]
        %v1321 = vld [vmem:[#allocation5 + $0x510] sm:$0xff]
        %v1322 = vld [vmem:[#allocation5 + $0x518] sm:$0xff]
        %v1323 = vld [vmem:[#allocation5 + $0x520] sm:$0xff]
        %v1324 = vld [vmem:[#allocation5 + $0x528] sm:$0xff]
        %v1325 = vld [vmem:[#allocation5 + $0x530] sm:$0xff]
        %v1326 = vld [vmem:[#allocation5 + $0x538] sm:$0xff]
        %v1327 = vld [vmem:[#allocation5 + $0x540] sm:$0xff]
        %v1328 = vld [vmem:[#allocation5 + $0x548] sm:$0xff]
        %v1329 = vld [vmem:[#allocation5 + $0x550] sm:$0xff]
        %v1330 = vld [vmem:[#allocation5 + $0x558] sm:$0xff]
        %v1331 = vld [vmem:[#allocation5 + $0x560] sm:$0xff]
        %v1332 = vld [vmem:[#allocation5 + $0x568] sm:$0xff]
        %v1333 = vld [vmem:[#allocation5 + $0x570] sm:$0xff]
        %v1334 = vld [vmem:[#allocation5 + $0x578] sm:$0xff]
        %v1335 = vld [vmem:[#allocation5 + $0x580] sm:$0xff]
        %v1336 = vld [vmem:[#allocation5 + $0x588] sm:$0xff]
        %v1337 = vld [vmem:[#allocation5 + $0x590] sm:$0xff]
        %v1338 = vld [vmem:[#allocation5 + $0x598] sm:$0xff]
        %v1339 = vld [vmem:[#allocation5 + $0x5a0] sm:$0xff]
        %v1340 = vld [vmem:[#allocation5 + $0x5a8] sm:$0xff]
        %v1341 = vld [vmem:[#allocation5 + $0x5b0] sm:$0xff]
        %v1342 = vld [vmem:[#allocation5 + $0x5b8] sm:$0xff]
        %v1343 = vld [vmem:[#allocation5 + $0x5c0] sm:$0xff]
        %v1344 = vld [vmem:[#allocation5 + $0x5c8] sm:$0xff]
        %v1345 = vld [vmem:[#allocation5 + $0x5d0] sm:$0xff]
        %v1346 = vld [vmem:[#allocation5 + $0x5d8] sm:$0xff]
        %v1347 = vld [vmem:[#allocation5 + $0x5e0] sm:$0xff]
        %v1348 = vld [vmem:[#allocation5 + $0x5e8] sm:$0xff]
        %v1349 = vld [vmem:[#allocation5 + $0x5f0] sm:$0xff]
        %v1350 = vld [vmem:[#allocation5 + $0x5f8] sm:$0xff]
        %v1351 = vld [vmem:[#allocation5 + $0x600] sm:$0xff]
        %v1352 = vld [vmem:[#allocation5 + $0x608] sm:$0xff]
        %v1353 = vld [vmem:[#allocation5 + $0x610] sm:$0xff]
        %v1354 = vld [vmem:[#allocation5 + $0x618] sm:$0xff]
        %v1355 = vld [vmem:[#allocation5 + $0x620] sm:$0xff]
        %v1356 = vld [vmem:[#allocation5 + $0x628] sm:$0xff]
        %v1357 = vld [vmem:[#allocation5 + $0x630] sm:$0xff]
        %v1358 = vld [vmem:[#allocation5 + $0x638] sm:$0xff]
        %v1359 = vld [vmem:[#allocation5 + $0x640] sm:$0xff]
        %v1360 = vld [vmem:[#allocation5 + $0x648] sm:$0xff]
        %v1361 = vld [vmem:[#allocation5 + $0x650] sm:$0xff]
        %v1362 = vld [vmem:[#allocation5 + $0x658] sm:$0xff]
        %v1363 = vld [vmem:[#allocation5 + $0x660] sm:$0xff]
        %v1364 = vld [vmem:[#allocation5 + $0x668] sm:$0xff]
        %v1365 = vld [vmem:[#allocation5 + $0x670] sm:$0xff]
        %v1366 = vld [vmem:[#allocation5 + $0x678] sm:$0xff]
        %v1367 = vld [vmem:[#allocation5 + $0x680] sm:$0xff]
        %v1368 = vld [vmem:[#allocation5 + $0x688] sm:$0xff]
        %v1369 = vld [vmem:[#allocation5 + $0x690] sm:$0xff]
        %v1370 = vld [vmem:[#allocation5 + $0x698] sm:$0xff]
        %v1371 = vld [vmem:[#allocation5 + $0x6a0] sm:$0xff]
        %v1372 = vld [vmem:[#allocation5 + $0x6a8] sm:$0xff]
        %v1373 = vld [vmem:[#allocation5 + $0x6b0] sm:$0xff]
        %v1374 = vld [vmem:[#allocation5 + $0x6b8] sm:$0xff]
        %v1375 = vld [vmem:[#allocation5 + $0x6c0] sm:$0xff]
        %v1376 = vld [vmem:[#allocation5 + $0x6c8] sm:$0xff]
        %v1377 = vld [vmem:[#allocation5 + $0x6d0] sm:$0xff]
        %v1378 = vld [vmem:[#allocation5 + $0x6d8] sm:$0xff]
        %v1379 = vld [vmem:[#allocation5 + $0x6e0] sm:$0xff]
        %v1380 = vld [vmem:[#allocation5 + $0x6e8] sm:$0xff]
        %v1381 = vld [vmem:[#allocation5 + $0x6f0] sm:$0xff]
        %v1382 = vld [vmem:[#allocation5 + $0x6f8] sm:$0xff]
        %v1383 = vld [vmem:[#allocation5 + $0x700] sm:$0xff]
        %v1384 = vld [vmem:[#allocation5 + $0x708] sm:$0xff]
        %v1385 = vld [vmem:[#allocation5 + $0x710] sm:$0xff]
        %v1386 = vld [vmem:[#allocation5 + $0x718] sm:$0xff]
        %v1387 = vld [vmem:[#allocation5 + $0x720] sm:$0xff]
        %v1388 = vld [vmem:[#allocation5 + $0x728] sm:$0xff]
        %v1389 = vld [vmem:[#allocation5 + $0x730] sm:$0xff]
        %v1390 = vld [vmem:[#allocation5 + $0x738] sm:$0xff]
        %v1391 = vld [vmem:[#allocation5 + $0x740] sm:$0xff]
        %v1392 = vld [vmem:[#allocation5 + $0x748] sm:$0xff]
        %v1393 = vld [vmem:[#allocation5 + $0x750] sm:$0xff]
        %v1394 = vld [vmem:[#allocation5 + $0x758] sm:$0xff]
        %v1395 = vld [vmem:[#allocation5 + $0x760] sm:$0xff]
        %v1396 = vld [vmem:[#allocation5 + $0x768] sm:$0xff]
        %v1397 = vld [vmem:[#allocation5 + $0x770] sm:$0xff]
        %v1398 = vld [vmem:[#allocation5 + $0x778] sm:$0xff]
        %v1399 = vld [vmem:[%s5] sm:$0x3]
        %v1401 = vperm.slane %v1399, 0
        %v1402 = vperm.slane %v1399, 1
        %v1645 = vunpack.c.l.b16 %v1159
        %v1646 = vunpack.c.h.b16 %v1159
        %v1647 = vunpack.c.l.b16 %v1160
        %v1648 = vunpack.c.h.b16 %v1160
        %v1649 = vunpack.c.l.b16 %v1161
        %v1650 = vunpack.c.h.b16 %v1161
        %v1651 = vunpack.c.l.b16 %v1162
        %v1652 = vunpack.c.h.b16 %v1162
        %v1653 = vunpack.c.l.b16 %v1163
        %v1654 = vunpack.c.h.b16 %v1163
        %v1655 = vunpack.c.l.b16 %v1164
        %v1656 = vunpack.c.h.b16 %v1164
        %v1657 = vunpack.c.l.b16 %v1165
        %v1658 = vunpack.c.h.b16 %v1165
        %v1659 = vunpack.c.l.b16 %v1166
        %v1660 = vunpack.c.h.b16 %v1166
        %v1661 = vunpack.c.l.b16 %v1167
        %v1662 = vunpack.c.h.b16 %v1167
        %v1663 = vunpack.c.l.b16 %v1168
        %v1664 = vunpack.c.h.b16 %v1168
        %v1665 = vunpack.c.l.b16 %v1169
        %v1666 = vunpack.c.h.b16 %v1169
        %v1667 = vunpack.c.l.b16 %v1170
        %v1668 = vunpack.c.h.b16 %v1170
        %v1669 = vunpack.c.l.b16 %v1171
        %v1670 = vunpack.c.h.b16 %v1171
        %v1671 = vunpack.c.l.b16 %v1172
        %v1672 = vunpack.c.h.b16 %v1172
        %v1673 = vunpack.c.l.b16 %v1173
        %v1674 = vunpack.c.h.b16 %v1173
        %v1675 = vunpack.c.l.b16 %v1174
        %v1676 = vunpack.c.h.b16 %v1174
        %v1677 = vunpack.c.l.b16 %v1175
        %v1678 = vunpack.c.h.b16 %v1175
        %v1679 = vunpack.c.l.b16 %v1176
        %v1680 = vunpack.c.h.b16 %v1176
        %v1681 = vunpack.c.l.b16 %v1177
        %v1682 = vunpack.c.h.b16 %v1177
        %v1683 = vunpack.c.l.b16 %v1178
        %v1684 = vunpack.c.h.b16 %v1178
        %v1685 = vunpack.c.l.b16 %v1179
        %v1686 = vunpack.c.h.b16 %v1179
        %v1687 = vunpack.c.l.b16 %v1180
        %v1688 = vunpack.c.h.b16 %v1180
        %v1689 = vunpack.c.l.b16 %v1181
        %v1690 = vunpack.c.h.b16 %v1181
        %v1691 = vunpack.c.l.b16 %v1182
        %v1692 = vunpack.c.h.b16 %v1182
        %v1693 = vunpack.c.l.b16 %v1183
        %v1694 = vunpack.c.h.b16 %v1183
        %v1695 = vunpack.c.l.b16 %v1184
        %v1696 = vunpack.c.h.b16 %v1184
        %v1697 = vunpack.c.l.b16 %v1185
        %v1698 = vunpack.c.h.b16 %v1185
        %v1699 = vunpack.c.l.b16 %v1186
        %v1700 = vunpack.c.h.b16 %v1186
        %v1701 = vunpack.c.l.b16 %v1187
        %v1702 = vunpack.c.h.b16 %v1187
        %v1703 = vunpack.c.l.b16 %v1188
        %v1704 = vunpack.c.h.b16 %v1188
        %v1705 = vunpack.c.l.b16 %v1189
        %v1706 = vunpack.c.h.b16 %v1189
        %v1707 = vunpack.c.l.b16 %v1190
        %v1708 = vunpack.c.h.b16 %v1190
        %v1709 = vunpack.c.l.b16 %v1191
        %v1710 = vunpack.c.h.b16 %v1191
        %v1711 = vunpack.c.l.b16 %v1192
        %v1712 = vunpack.c.h.b16 %v1192
        %v1713 = vunpack.c.l.b16 %v1193
        %v1714 = vunpack.c.h.b16 %v1193
        %v1715 = vunpack.c.l.b16 %v1194
        %v1716 = vunpack.c.h.b16 %v1194
        %v1717 = vunpack.c.l.b16 %v1195
        %v1718 = vunpack.c.h.b16 %v1195
        %v1719 = vunpack.c.l.b16 %v1196
        %v1720 = vunpack.c.h.b16 %v1196
        %v1721 = vunpack.c.l.b16 %v1197
        %v1722 = vunpack.c.h.b16 %v1197
        %v1723 = vunpack.c.l.b16 %v1198
        %v1724 = vunpack.c.h.b16 %v1198
        %v1725 = vunpack.c.l.b16 %v1199
        %v1726 = vunpack.c.h.b16 %v1199
        %v1727 = vunpack.c.l.b16 %v1200
        %v1728 = vunpack.c.h.b16 %v1200
        %v1729 = vunpack.c.l.b16 %v1201
        %v1730 = vunpack.c.h.b16 %v1201
        %v1731 = vunpack.c.l.b16 %v1202
        %v1732 = vunpack.c.h.b16 %v1202
        %v1733 = vunpack.c.l.b16 %v1203
        %v1734 = vunpack.c.h.b16 %v1203
        %v1735 = vunpack.c.l.b16 %v1204
        %v1736 = vunpack.c.h.b16 %v1204
        %v1737 = vunpack.c.l.b16 %v1205
        %v1738 = vunpack.c.h.b16 %v1205
        %v1739 = vunpack.c.l.b16 %v1206
        %v1740 = vunpack.c.h.b16 %v1206
        %v1741 = vunpack.c.l.b16 %v1207
        %v1742 = vunpack.c.h.b16 %v1207
        %v1743 = vunpack.c.l.b16 %v1208
        %v1744 = vunpack.c.h.b16 %v1208
        %v1745 = vunpack.c.l.b16 %v1209
        %v1746 = vunpack.c.h.b16 %v1209
        %v1747 = vunpack.c.l.b16 %v1210
        %v1748 = vunpack.c.h.b16 %v1210
        %v1749 = vunpack.c.l.b16 %v1211
        %v1750 = vunpack.c.h.b16 %v1211
        %v1751 = vunpack.c.l.b16 %v1212
        %v1752 = vunpack.c.h.b16 %v1212
        %v1753 = vunpack.c.l.b16 %v1213
        %v1754 = vunpack.c.h.b16 %v1213
        %v1755 = vunpack.c.l.b16 %v1214
        %v1756 = vunpack.c.h.b16 %v1214
        %v1757 = vunpack.c.l.b16 %v1215
        %v1758 = vunpack.c.h.b16 %v1215
        %v1759 = vunpack.c.l.b16 %v1216
        %v1760 = vunpack.c.h.b16 %v1216
        %v1761 = vunpack.c.l.b16 %v1217
        %v1762 = vunpack.c.h.b16 %v1217
        %v1763 = vunpack.c.l.b16 %v1218
        %v1764 = vunpack.c.h.b16 %v1218
        %v1765 = vunpack.c.l.b16 %v1219
        %v1766 = vunpack.c.h.b16 %v1219
        %v1767 = vunpack.c.l.b16 %v1220
        %v1768 = vunpack.c.h.b16 %v1220
        %v1769 = vunpack.c.l.b16 %v1221
        %v1770 = vunpack.c.h.b16 %v1221
        %v1771 = vunpack.c.l.b16 %v1222
        %v1772 = vunpack.c.h.b16 %v1222
        %v1773 = vunpack.c.l.b16 %v1223
        %v1774 = vunpack.c.h.b16 %v1223
        %v1775 = vunpack.c.l.b16 %v1224
        %v1776 = vunpack.c.h.b16 %v1224
        %v1777 = vunpack.c.l.b16 %v1225
        %v1778 = vunpack.c.h.b16 %v1225
        %v1779 = vunpack.c.l.b16 %v1226
        %v1780 = vunpack.c.h.b16 %v1226
        %v1781 = vunpack.c.l.b16 %v1227
        %v1782 = vunpack.c.h.b16 %v1227
        %v1783 = vunpack.c.l.b16 %v1228
        %v1784 = vunpack.c.h.b16 %v1228
        %v1785 = vunpack.c.l.b16 %v1229
        %v1786 = vunpack.c.h.b16 %v1229
        %v1787 = vunpack.c.l.b16 %v1230
        %v1788 = vunpack.c.h.b16 %v1230
        %v1789 = vunpack.c.l.b16 %v1231
        %v1790 = vunpack.c.h.b16 %v1231
        %v1791 = vunpack.c.l.b16 %v1232
        %v1792 = vunpack.c.h.b16 %v1232
        %v1793 = vunpack.c.l.b16 %v1233
        %v1794 = vunpack.c.h.b16 %v1233
        %v1795 = vunpack.c.l.b16 %v1234
        %v1796 = vunpack.c.h.b16 %v1234
        %v1797 = vunpack.c.l.b16 %v1235
        %v1798 = vunpack.c.h.b16 %v1235
        %v1799 = vunpack.c.l.b16 %v1236
        %v1800 = vunpack.c.h.b16 %v1236
        %v1801 = vunpack.c.l.b16 %v1237
        %v1802 = vunpack.c.h.b16 %v1237
        %v1803 = vunpack.c.l.b16 %v1238
        %v1804 = vunpack.c.h.b16 %v1238
        %v1805 = vunpack.c.l.b16 %v1239
        %v1806 = vunpack.c.h.b16 %v1239
        %v1807 = vunpack.c.l.b16 %v1240
        %v1808 = vunpack.c.h.b16 %v1240
        %v1809 = vunpack.c.l.b16 %v1241
        %v1810 = vunpack.c.h.b16 %v1241
        %v1811 = vunpack.c.l.b16 %v1242
        %v1812 = vunpack.c.h.b16 %v1242
        %v1813 = vunpack.c.l.b16 %v1243
        %v1814 = vunpack.c.h.b16 %v1243
        %v1815 = vunpack.c.l.b16 %v1244
        %v1816 = vunpack.c.h.b16 %v1244
        %v1817 = vunpack.c.l.b16 %v1245
        %v1818 = vunpack.c.h.b16 %v1245
        %v1819 = vunpack.c.l.b16 %v1246
        %v1820 = vunpack.c.h.b16 %v1246
        %v1821 = vunpack.c.l.b16 %v1247
        %v1822 = vunpack.c.h.b16 %v1247
        %v1823 = vunpack.c.l.b16 %v1248
        %v1824 = vunpack.c.h.b16 %v1248
        %v1825 = vunpack.c.l.b16 %v1249
        %v1826 = vunpack.c.h.b16 %v1249
        %v1827 = vunpack.c.l.b16 %v1250
        %v1828 = vunpack.c.h.b16 %v1250
        %v1829 = vunpack.c.l.b16 %v1251
        %v1830 = vunpack.c.h.b16 %v1251
        %v1831 = vunpack.c.l.b16 %v1252
        %v1832 = vunpack.c.h.b16 %v1252
        %v1833 = vunpack.c.l.b16 %v1253
        %v1834 = vunpack.c.h.b16 %v1253
        %v1835 = vunpack.c.l.b16 %v1254
        %v1836 = vunpack.c.h.b16 %v1254
        %v1837 = vunpack.c.l.b16 %v1255
        %v1838 = vunpack.c.h.b16 %v1255
        %v1839 = vunpack.c.l.b16 %v1256
        %v1840 = vunpack.c.h.b16 %v1256
        %v1841 = vunpack.c.l.b16 %v1257
        %v1842 = vunpack.c.h.b16 %v1257
        %v1843 = vunpack.c.l.b16 %v1258
        %v1844 = vunpack.c.h.b16 %v1258
        %v1845 = vunpack.c.l.b16 %v1259
        %v1846 = vunpack.c.h.b16 %v1259
        %v1847 = vunpack.c.l.b16 %v1260
        %v1848 = vunpack.c.h.b16 %v1260
        %v1849 = vunpack.c.l.b16 %v1261
        %v1850 = vunpack.c.h.b16 %v1261
        %v1851 = vunpack.c.l.b16 %v1262
        %v1852 = vunpack.c.h.b16 %v1262
        %v1853 = vunpack.c.l.b16 %v1263
        %v1854 = vunpack.c.h.b16 %v1263
        %v1855 = vunpack.c.l.b16 %v1264
        %v1856 = vunpack.c.h.b16 %v1264
        %v1857 = vunpack.c.l.b16 %v1265
        %v1858 = vunpack.c.h.b16 %v1265
        %v1859 = vunpack.c.l.b16 %v1266
        %v1860 = vunpack.c.h.b16 %v1266
        %v1861 = vunpack.c.l.b16 %v1267
        %v1862 = vunpack.c.h.b16 %v1267
        %v1863 = vunpack.c.l.b16 %v1268
        %v1864 = vunpack.c.h.b16 %v1268
        %v1865 = vunpack.c.l.b16 %v1269
        %v1866 = vunpack.c.h.b16 %v1269
        %v1867 = vunpack.c.l.b16 %v1270
        %v1868 = vunpack.c.h.b16 %v1270
        %v1869 = vunpack.c.l.b16 %v1271
        %v1870 = vunpack.c.h.b16 %v1271
        %v1871 = vunpack.c.l.b16 %v1272
        %v1872 = vunpack.c.h.b16 %v1272
        %v1873 = vunpack.c.l.b16 %v1273
        %v1874 = vunpack.c.h.b16 %v1273
        %v1875 = vunpack.c.l.b16 %v1274
        %v1876 = vunpack.c.h.b16 %v1274
        %v1877 = vunpack.c.l.b16 %v1275
        %v1878 = vunpack.c.h.b16 %v1275
        %v1879 = vunpack.c.l.b16 %v1276
        %v1880 = vunpack.c.h.b16 %v1276
        %v1881 = vunpack.c.l.b16 %v1277
        %v1882 = vunpack.c.h.b16 %v1277
        %v1883 = vunpack.c.l.b16 %v1278
        %v1884 = vunpack.c.h.b16 %v1278
        %v1885 = vunpack.c.l.b16 %v1279
        %v1886 = vunpack.c.h.b16 %v1279
        %v1887 = vunpack.c.l.b16 %v1280
        %v1888 = vunpack.c.h.b16 %v1280
        %v1889 = vunpack.c.l.b16 %v1281
        %v1890 = vunpack.c.h.b16 %v1281
        %v1891 = vunpack.c.l.b16 %v1282
        %v1892 = vunpack.c.h.b16 %v1282
        %v1893 = vunpack.c.l.b16 %v1283
        %v1894 = vunpack.c.h.b16 %v1283
        %v1895 = vunpack.c.l.b16 %v1284
        %v1896 = vunpack.c.h.b16 %v1284
        %v1897 = vunpack.c.l.b16 %v1285
        %v1898 = vunpack.c.h.b16 %v1285
        %v1899 = vunpack.c.l.b16 %v1286
        %v1900 = vunpack.c.h.b16 %v1286
        %v1901 = vunpack.c.l.b16 %v1287
        %v1902 = vunpack.c.h.b16 %v1287
        %v1903 = vunpack.c.l.b16 %v1288
        %v1904 = vunpack.c.h.b16 %v1288
        %v1905 = vunpack.c.l.b16 %v1289
        %v1906 = vunpack.c.h.b16 %v1289
        %v1907 = vunpack.c.l.b16 %v1290
        %v1908 = vunpack.c.h.b16 %v1290
        %v1909 = vunpack.c.l.b16 %v1291
        %v1910 = vunpack.c.h.b16 %v1291
        %v1911 = vunpack.c.l.b16 %v1292
        %v1912 = vunpack.c.h.b16 %v1292
        %v1913 = vunpack.c.l.b16 %v1293
        %v1914 = vunpack.c.h.b16 %v1293
        %v1915 = vunpack.c.l.b16 %v1294
        %v1916 = vunpack.c.h.b16 %v1294
        %v1917 = vunpack.c.l.b16 %v1295
        %v1918 = vunpack.c.h.b16 %v1295
        %v1919 = vunpack.c.l.b16 %v1296
        %v1920 = vunpack.c.h.b16 %v1296
        %v1921 = vunpack.c.l.b16 %v1297
        %v1922 = vunpack.c.h.b16 %v1297
        %v1923 = vunpack.c.l.b16 %v1298
        %v1924 = vunpack.c.h.b16 %v1298
        %v1925 = vunpack.c.l.b16 %v1299
        %v1926 = vunpack.c.h.b16 %v1299
        %v1927 = vunpack.c.l.b16 %v1300
        %v1928 = vunpack.c.h.b16 %v1300
        %v1929 = vunpack.c.l.b16 %v1301
        %v1930 = vunpack.c.h.b16 %v1301
        %v1931 = vunpack.c.l.b16 %v1302
        %v1932 = vunpack.c.h.b16 %v1302
        %v1933 = vunpack.c.l.b16 %v1303
        %v1934 = vunpack.c.h.b16 %v1303
        %v1935 = vunpack.c.l.b16 %v1304
        %v1936 = vunpack.c.h.b16 %v1304
        %v1937 = vunpack.c.l.b16 %v1305
        %v1938 = vunpack.c.h.b16 %v1305
        %v1939 = vunpack.c.l.b16 %v1306
        %v1940 = vunpack.c.h.b16 %v1306
        %v1941 = vunpack.c.l.b16 %v1307
        %v1942 = vunpack.c.h.b16 %v1307
        %v1943 = vunpack.c.l.b16 %v1308
        %v1944 = vunpack.c.h.b16 %v1308
        %v1945 = vunpack.c.l.b16 %v1309
        %v1946 = vunpack.c.h.b16 %v1309
        %v1947 = vunpack.c.l.b16 %v1310
        %v1948 = vunpack.c.h.b16 %v1310
        %v1949 = vunpack.c.l.b16 %v1311
        %v1950 = vunpack.c.h.b16 %v1311
        %v1951 = vunpack.c.l.b16 %v1312
        %v1952 = vunpack.c.h.b16 %v1312
        %v1953 = vunpack.c.l.b16 %v1313
        %v1954 = vunpack.c.h.b16 %v1313
        %v1955 = vunpack.c.l.b16 %v1314
        %v1956 = vunpack.c.h.b16 %v1314
        %v1957 = vunpack.c.l.b16 %v1315
        %v1958 = vunpack.c.h.b16 %v1315
        %v1959 = vunpack.c.l.b16 %v1316
        %v1960 = vunpack.c.h.b16 %v1316
        %v1961 = vunpack.c.l.b16 %v1317
        %v1962 = vunpack.c.h.b16 %v1317
        %v1963 = vunpack.c.l.b16 %v1318
        %v1964 = vunpack.c.h.b16 %v1318
        %v1965 = vunpack.c.l.b16 %v1319
        %v1966 = vunpack.c.h.b16 %v1319
        %v1967 = vunpack.c.l.b16 %v1320
        %v1968 = vunpack.c.h.b16 %v1320
        %v1969 = vunpack.c.l.b16 %v1321
        %v1970 = vunpack.c.h.b16 %v1321
        %v1971 = vunpack.c.l.b16 %v1322
        %v1972 = vunpack.c.h.b16 %v1322
        %v1973 = vunpack.c.l.b16 %v1323
        %v1974 = vunpack.c.h.b16 %v1323
        %v1975 = vunpack.c.l.b16 %v1324
        %v1976 = vunpack.c.h.b16 %v1324
        %v1977 = vunpack.c.l.b16 %v1325
        %v1978 = vunpack.c.h.b16 %v1325
        %v1979 = vunpack.c.l.b16 %v1326
        %v1980 = vunpack.c.h.b16 %v1326
        %v1981 = vunpack.c.l.b16 %v1327
        %v1982 = vunpack.c.h.b16 %v1327
        %v1983 = vunpack.c.l.b16 %v1328
        %v1984 = vunpack.c.h.b16 %v1328
        %v1985 = vunpack.c.l.b16 %v1329
        %v1986 = vunpack.c.h.b16 %v1329
        %v1987 = vunpack.c.l.b16 %v1330
        %v1988 = vunpack.c.h.b16 %v1330
        %v1989 = vunpack.c.l.b16 %v1331
        %v1990 = vunpack.c.h.b16 %v1331
        %v1991 = vunpack.c.l.b16 %v1332
        %v1992 = vunpack.c.h.b16 %v1332
        %v1993 = vunpack.c.l.b16 %v1333
        %v1994 = vunpack.c.h.b16 %v1333
        %v1995 = vunpack.c.l.b16 %v1334
        %v1996 = vunpack.c.h.b16 %v1334
        %v1997 = vunpack.c.l.b16 %v1335
        %v1998 = vunpack.c.h.b16 %v1335
        %v1999 = vunpack.c.l.b16 %v1336
        %v2000 = vunpack.c.h.b16 %v1336
        %v2001 = vunpack.c.l.b16 %v1337
        %v2002 = vunpack.c.h.b16 %v1337
        %v2003 = vunpack.c.l.b16 %v1338
        %v2004 = vunpack.c.h.b16 %v1338
        %v2005 = vunpack.c.l.b16 %v1339
        %v2006 = vunpack.c.h.b16 %v1339
        %v2007 = vunpack.c.l.b16 %v1340
        %v2008 = vunpack.c.h.b16 %v1340
        %v2009 = vunpack.c.l.b16 %v1341
        %v2010 = vunpack.c.h.b16 %v1341
        %v2011 = vunpack.c.l.b16 %v1342
        %v2012 = vunpack.c.h.b16 %v1342
        %v2013 = vunpack.c.l.b16 %v1343
        %v2014 = vunpack.c.h.b16 %v1343
        %v2015 = vunpack.c.l.b16 %v1344
        %v2016 = vunpack.c.h.b16 %v1344
        %v2017 = vunpack.c.l.b16 %v1345
        %v2018 = vunpack.c.h.b16 %v1345
        %v2019 = vunpack.c.l.b16 %v1346
        %v2020 = vunpack.c.h.b16 %v1346
        %v2021 = vunpack.c.l.b16 %v1347
        %v2022 = vunpack.c.h.b16 %v1347
        %v2023 = vunpack.c.l.b16 %v1348
        %v2024 = vunpack.c.h.b16 %v1348
        %v2025 = vunpack.c.l.b16 %v1349
        %v2026 = vunpack.c.h.b16 %v1349
        %v2027 = vunpack.c.l.b16 %v1350
        %v2028 = vunpack.c.h.b16 %v1350
        %v2029 = vunpack.c.l.b16 %v1351
        %v2030 = vunpack.c.h.b16 %v1351
        %v2031 = vunpack.c.l.b16 %v1352
        %v2032 = vunpack.c.h.b16 %v1352
        %v2033 = vunpack.c.l.b16 %v1353
        %v2034 = vunpack.c.h.b16 %v1353
        %v2035 = vunpack.c.l.b16 %v1354
        %v2036 = vunpack.c.h.b16 %v1354
        %v2037 = vunpack.c.l.b16 %v1355
        %v2038 = vunpack.c.h.b16 %v1355
        %v2039 = vunpack.c.l.b16 %v1356
        %v2040 = vunpack.c.h.b16 %v1356
        %v2041 = vunpack.c.l.b16 %v1357
        %v2042 = vunpack.c.h.b16 %v1357
        %v2043 = vunpack.c.l.b16 %v1358
        %v2044 = vunpack.c.h.b16 %v1358
        %v2045 = vunpack.c.l.b16 %v1359
        %v2046 = vunpack.c.h.b16 %v1359
        %v2047 = vunpack.c.l.b16 %v1360
        %v2048 = vunpack.c.h.b16 %v1360
        %v2049 = vunpack.c.l.b16 %v1361
        %v2050 = vunpack.c.h.b16 %v1361
        %v2051 = vunpack.c.l.b16 %v1362
        %v2052 = vunpack.c.h.b16 %v1362
        %v2053 = vunpack.c.l.b16 %v1363
        %v2054 = vunpack.c.h.b16 %v1363
        %v2055 = vunpack.c.l.b16 %v1364
        %v2056 = vunpack.c.h.b16 %v1364
        %v2057 = vunpack.c.l.b16 %v1365
        %v2058 = vunpack.c.h.b16 %v1365
        %v2059 = vunpack.c.l.b16 %v1366
        %v2060 = vunpack.c.h.b16 %v1366
        %v2061 = vunpack.c.l.b16 %v1367
        %v2062 = vunpack.c.h.b16 %v1367
        %v2063 = vunpack.c.l.b16 %v1368
        %v2064 = vunpack.c.h.b16 %v1368
        %v2065 = vunpack.c.l.b16 %v1369
        %v2066 = vunpack.c.h.b16 %v1369
        %v2067 = vunpack.c.l.b16 %v1370
        %v2068 = vunpack.c.h.b16 %v1370
        %v2069 = vunpack.c.l.b16 %v1371
        %v2070 = vunpack.c.h.b16 %v1371
        %v2071 = vunpack.c.l.b16 %v1372
        %v2072 = vunpack.c.h.b16 %v1372
        %v2073 = vunpack.c.l.b16 %v1373
        %v2074 = vunpack.c.h.b16 %v1373
        %v2075 = vunpack.c.l.b16 %v1374
        %v2076 = vunpack.c.h.b16 %v1374
        %v2077 = vunpack.c.l.b16 %v1375
        %v2078 = vunpack.c.h.b16 %v1375
        %v2079 = vunpack.c.l.b16 %v1376
        %v2080 = vunpack.c.h.b16 %v1376
        %v2081 = vunpack.c.l.b16 %v1377
        %v2082 = vunpack.c.h.b16 %v1377
        %v2083 = vunpack.c.l.b16 %v1378
        %v2084 = vunpack.c.h.b16 %v1378
        %v2085 = vunpack.c.l.b16 %v1379
        %v2086 = vunpack.c.h.b16 %v1379
        %v2087 = vunpack.c.l.b16 %v1380
        %v2088 = vunpack.c.h.b16 %v1380
        %v2089 = vunpack.c.l.b16 %v1381
        %v2090 = vunpack.c.h.b16 %v1381
        %v2091 = vunpack.c.l.b16 %v1382
        %v2092 = vunpack.c.h.b16 %v1382
        %v2093 = vunpack.c.l.b16 %v1383
        %v2094 = vunpack.c.h.b16 %v1383
        %v2095 = vunpack.c.l.b16 %v1384
        %v2096 = vunpack.c.h.b16 %v1384
        %v2097 = vunpack.c.l.b16 %v1385
        %v2098 = vunpack.c.h.b16 %v1385
        %v2099 = vunpack.c.l.b16 %v1386
        %v2100 = vunpack.c.h.b16 %v1386
        %v2101 = vunpack.c.l.b16 %v1387
        %v2102 = vunpack.c.h.b16 %v1387
        %v2103 = vunpack.c.l.b16 %v1388
        %v2104 = vunpack.c.h.b16 %v1388
        %v2105 = vunpack.c.l.b16 %v1389
        %v2106 = vunpack.c.h.b16 %v1389
        %v2107 = vunpack.c.l.b16 %v1390
        %v2108 = vunpack.c.h.b16 %v1390
        %v2109 = vunpack.c.l.b16 %v1391
        %v2110 = vunpack.c.h.b16 %v1391
        %v2111 = vunpack.c.l.b16 %v1392
        %v2112 = vunpack.c.h.b16 %v1392
        %v2113 = vunpack.c.l.b16 %v1393
        %v2114 = vunpack.c.h.b16 %v1393
        %v2115 = vunpack.c.l.b16 %v1394
        %v2116 = vunpack.c.h.b16 %v1394
        %v2117 = vunpack.c.l.b16 %v1395
        %v2118 = vunpack.c.h.b16 %v1395
        %v2119 = vunpack.c.l.b16 %v1396
        %v2120 = vunpack.c.h.b16 %v1396
        %v2121 = vunpack.c.l.b16 %v1397
        %v2122 = vunpack.c.h.b16 %v1397
        %v2123 = vunpack.c.l.b16 %v1398
        %v2124 = vunpack.c.h.b16 %v1398
        %v2125 = vpack.c.b16 %v1647, %v1645
        %v2126 = vpack.c.b16 %v1648, %v1646
        %v2127 = vpack.c.b16 %v1651, %v1649
        %v2128 = vpack.c.b16 %v1652, %v1650
        %v2129 = vpack.c.b16 %v1655, %v1653
        %v2130 = vpack.c.b16 %v1656, %v1654
        %v2131 = vpack.c.b16 %v1659, %v1657
        %v2132 = vpack.c.b16 %v1660, %v1658
        %v2133 = vpack.c.b16 %v1663, %v1661
        %v2134 = vpack.c.b16 %v1664, %v1662
        %v2135 = vpack.c.b16 %v1667, %v1665
        %v2136 = vpack.c.b16 %v1668, %v1666
        %v2137 = vpack.c.b16 %v1671, %v1669
        %v2138 = vpack.c.b16 %v1672, %v1670
        %v2139 = vpack.c.b16 %v1675, %v1673
        %v2140 = vpack.c.b16 %v1676, %v1674
        %v2141 = vpack.c.b16 %v1679, %v1677
        %v2142 = vpack.c.b16 %v1680, %v1678
        %v2143 = vpack.c.b16 %v1683, %v1681
        %v2144 = vpack.c.b16 %v1684, %v1682
        %v2145 = vpack.c.b16 %v1687, %v1685
        %v2146 = vpack.c.b16 %v1688, %v1686
        %v2147 = vpack.c.b16 %v1691, %v1689
        %v2148 = vpack.c.b16 %v1692, %v1690
        %v2149 = vpack.c.b16 %v1695, %v1693
        %v2150 = vpack.c.b16 %v1696, %v1694
        %v2151 = vpack.c.b16 %v1699, %v1697
        %v2152 = vpack.c.b16 %v1700, %v1698
        %v2153 = vpack.c.b16 %v1703, %v1701
        %v2154 = vpack.c.b16 %v1704, %v1702
        %v2155 = vpack.c.b16 %v1707, %v1705
        %v2156 = vpack.c.b16 %v1708, %v1706
        %v2157 = vpack.c.b16 %v1711, %v1709
        %v2158 = vpack.c.b16 %v1712, %v1710
        %v2159 = vpack.c.b16 %v1715, %v1713
        %v2160 = vpack.c.b16 %v1716, %v1714
        %v2161 = vpack.c.b16 %v1719, %v1717
        %v2162 = vpack.c.b16 %v1720, %v1718
        %v2163 = vpack.c.b16 %v1723, %v1721
        %v2164 = vpack.c.b16 %v1724, %v1722
        %v2165 = vpack.c.b16 %v1727, %v1725
        %v2166 = vpack.c.b16 %v1728, %v1726
        %v2167 = vpack.c.b16 %v1731, %v1729
        %v2168 = vpack.c.b16 %v1732, %v1730
        %v2169 = vpack.c.b16 %v1735, %v1733
        %v2170 = vpack.c.b16 %v1736, %v1734
        %v2171 = vpack.c.b16 %v1739, %v1737
        %v2172 = vpack.c.b16 %v1740, %v1738
        %v2173 = vpack.c.b16 %v1743, %v1741
        %v2174 = vpack.c.b16 %v1744, %v1742
        %v2175 = vpack.c.b16 %v1747, %v1745
        %v2176 = vpack.c.b16 %v1748, %v1746
        %v2177 = vpack.c.b16 %v1751, %v1749
        %v2178 = vpack.c.b16 %v1752, %v1750
        %v2179 = vpack.c.b16 %v1755, %v1753
        %v2180 = vpack.c.b16 %v1756, %v1754
        %v2181 = vpack.c.b16 %v1759, %v1757
        %v2182 = vpack.c.b16 %v1760, %v1758
        %v2183 = vpack.c.b16 %v1763, %v1761
        %v2184 = vpack.c.b16 %v1764, %v1762
        %v2185 = vpack.c.b16 %v1767, %v1765
        %v2186 = vpack.c.b16 %v1768, %v1766
        %v2187 = vpack.c.b16 %v1771, %v1769
        %v2188 = vpack.c.b16 %v1772, %v1770
        %v2189 = vpack.c.b16 %v1775, %v1773
        %v2190 = vpack.c.b16 %v1776, %v1774
        %v2191 = vpack.c.b16 %v1779, %v1777
        %v2192 = vpack.c.b16 %v1780, %v1778
        %v2193 = vpack.c.b16 %v1783, %v1781
        %v2194 = vpack.c.b16 %v1784, %v1782
        %v2195 = vpack.c.b16 %v1787, %v1785
        %v2196 = vpack.c.b16 %v1788, %v1786
        %v2197 = vpack.c.b16 %v1791, %v1789
        %v2198 = vpack.c.b16 %v1792, %v1790
        %v2199 = vpack.c.b16 %v1795, %v1793
        %v2200 = vpack.c.b16 %v1796, %v1794
        %v2201 = vpack.c.b16 %v1799, %v1797
        %v2202 = vpack.c.b16 %v1800, %v1798
        %v2203 = vpack.c.b16 %v1803, %v1801
        %v2204 = vpack.c.b16 %v1804, %v1802
        %v2205 = vpack.c.b16 %v1807, %v1805
        %v2206 = vpack.c.b16 %v1808, %v1806
        %v2207 = vpack.c.b16 %v1811, %v1809
        %v2208 = vpack.c.b16 %v1812, %v1810
        %v2209 = vpack.c.b16 %v1815, %v1813
        %v2210 = vpack.c.b16 %v1816, %v1814
        %v2211 = vpack.c.b16 %v1819, %v1817
        %v2212 = vpack.c.b16 %v1820, %v1818
        %v2213 = vpack.c.b16 %v1823, %v1821
        %v2214 = vpack.c.b16 %v1824, %v1822
        %v2215 = vpack.c.b16 %v1827, %v1825
        %v2216 = vpack.c.b16 %v1828, %v1826
        %v2217 = vpack.c.b16 %v1831, %v1829
        %v2218 = vpack.c.b16 %v1832, %v1830
        %v2219 = vpack.c.b16 %v1835, %v1833
        %v2220 = vpack.c.b16 %v1836, %v1834
        %v2221 = vpack.c.b16 %v1839, %v1837
        %v2222 = vpack.c.b16 %v1840, %v1838
        %v2223 = vpack.c.b16 %v1843, %v1841
        %v2224 = vpack.c.b16 %v1844, %v1842
        %v2225 = vpack.c.b16 %v1847, %v1845
        %v2226 = vpack.c.b16 %v1848, %v1846
        %v2227 = vpack.c.b16 %v1851, %v1849
        %v2228 = vpack.c.b16 %v1852, %v1850
        %v2229 = vpack.c.b16 %v1855, %v1853
        %v2230 = vpack.c.b16 %v1856, %v1854
        %v2231 = vpack.c.b16 %v1859, %v1857
        %v2232 = vpack.c.b16 %v1860, %v1858
        %v2233 = vpack.c.b16 %v1863, %v1861
        %v2234 = vpack.c.b16 %v1864, %v1862
        %v2235 = vpack.c.b16 %v1867, %v1865
        %v2236 = vpack.c.b16 %v1868, %v1866
        %v2237 = vpack.c.b16 %v1871, %v1869
        %v2238 = vpack.c.b16 %v1872, %v1870
        %v2239 = vpack.c.b16 %v1875, %v1873
        %v2240 = vpack.c.b16 %v1876, %v1874
        %v2241 = vpack.c.b16 %v1879, %v1877
        %v2242 = vpack.c.b16 %v1880, %v1878
        %v2243 = vpack.c.b16 %v1883, %v1881
        %v2244 = vpack.c.b16 %v1884, %v1882
        %v2245 = vpack.c.b16 %v1887, %v1885
        %v2246 = vpack.c.b16 %v1888, %v1886
        %v2247 = vpack.c.b16 %v1891, %v1889
        %v2248 = vpack.c.b16 %v1892, %v1890
        %v2249 = vpack.c.b16 %v1895, %v1893
        %v2250 = vpack.c.b16 %v1896, %v1894
        %v2251 = vpack.c.b16 %v1899, %v1897
        %v2252 = vpack.c.b16 %v1900, %v1898
        %v2253 = vpack.c.b16 %v1903, %v1901
        %v2254 = vpack.c.b16 %v1904, %v1902
        %v2255 = vpack.c.b16 %v1907, %v1905
        %v2256 = vpack.c.b16 %v1908, %v1906
        %v2257 = vpack.c.b16 %v1911, %v1909
        %v2258 = vpack.c.b16 %v1912, %v1910
        %v2259 = vpack.c.b16 %v1915, %v1913
        %v2260 = vpack.c.b16 %v1916, %v1914
        %v2261 = vpack.c.b16 %v1919, %v1917
        %v2262 = vpack.c.b16 %v1920, %v1918
        %v2263 = vpack.c.b16 %v1923, %v1921
        %v2264 = vpack.c.b16 %v1924, %v1922
        %v2265 = vpack.c.b16 %v1927, %v1925
        %v2266 = vpack.c.b16 %v1928, %v1926
        %v2267 = vpack.c.b16 %v1931, %v1929
        %v2268 = vpack.c.b16 %v1932, %v1930
        %v2269 = vpack.c.b16 %v1935, %v1933
        %v2270 = vpack.c.b16 %v1936, %v1934
        %v2271 = vpack.c.b16 %v1939, %v1937
        %v2272 = vpack.c.b16 %v1940, %v1938
        %v2273 = vpack.c.b16 %v1943, %v1941
        %v2274 = vpack.c.b16 %v1944, %v1942
        %v2275 = vpack.c.b16 %v1947, %v1945
        %v2276 = vpack.c.b16 %v1948, %v1946
        %v2277 = vpack.c.b16 %v1951, %v1949
        %v2278 = vpack.c.b16 %v1952, %v1950
        %v2279 = vpack.c.b16 %v1955, %v1953
        %v2280 = vpack.c.b16 %v1956, %v1954
        %v2281 = vpack.c.b16 %v1959, %v1957
        %v2282 = vpack.c.b16 %v1960, %v1958
        %v2283 = vpack.c.b16 %v1963, %v1961
        %v2284 = vpack.c.b16 %v1964, %v1962
        %v2285 = vpack.c.b16 %v1967, %v1965
        %v2286 = vpack.c.b16 %v1968, %v1966
        %v2287 = vpack.c.b16 %v1971, %v1969
        %v2288 = vpack.c.b16 %v1972, %v1970
        %v2289 = vpack.c.b16 %v1975, %v1973
        %v2290 = vpack.c.b16 %v1976, %v1974
        %v2291 = vpack.c.b16 %v1979, %v1977
        %v2292 = vpack.c.b16 %v1980, %v1978
        %v2293 = vpack.c.b16 %v1983, %v1981
        %v2294 = vpack.c.b16 %v1984, %v1982
        %v2295 = vpack.c.b16 %v1987, %v1985
        %v2296 = vpack.c.b16 %v1988, %v1986
        %v2297 = vpack.c.b16 %v1991, %v1989
        %v2298 = vpack.c.b16 %v1992, %v1990
        %v2299 = vpack.c.b16 %v1995, %v1993
        %v2300 = vpack.c.b16 %v1996, %v1994
        %v2301 = vpack.c.b16 %v1999, %v1997
        %v2302 = vpack.c.b16 %v2000, %v1998
        %v2303 = vpack.c.b16 %v2003, %v2001
        %v2304 = vpack.c.b16 %v2004, %v2002
        %v2305 = vpack.c.b16 %v2007, %v2005
        %v2306 = vpack.c.b16 %v2008, %v2006
        %v2307 = vpack.c.b16 %v2011, %v2009
        %v2308 = vpack.c.b16 %v2012, %v2010
        %v2309 = vpack.c.b16 %v2015, %v2013
        %v2310 = vpack.c.b16 %v2016, %v2014
        %v2311 = vpack.c.b16 %v2019, %v2017
        %v2312 = vpack.c.b16 %v2020, %v2018
        %v2313 = vpack.c.b16 %v2023, %v2021
        %v2314 = vpack.c.b16 %v2024, %v2022
        %v2315 = vpack.c.b16 %v2027, %v2025
        %v2316 = vpack.c.b16 %v2028, %v2026
        %v2317 = vpack.c.b16 %v2031, %v2029
        %v2318 = vpack.c.b16 %v2032, %v2030
        %v2319 = vpack.c.b16 %v2035, %v2033
        %v2320 = vpack.c.b16 %v2036, %v2034
        %v2321 = vpack.c.b16 %v2039, %v2037
        %v2322 = vpack.c.b16 %v2040, %v2038
        %v2323 = vpack.c.b16 %v2043, %v2041
        %v2324 = vpack.c.b16 %v2044, %v2042
        %v2325 = vpack.c.b16 %v2047, %v2045
        %v2326 = vpack.c.b16 %v2048, %v2046
        %v2327 = vpack.c.b16 %v2051, %v2049
        %v2328 = vpack.c.b16 %v2052, %v2050
        %v2329 = vpack.c.b16 %v2055, %v2053
        %v2330 = vpack.c.b16 %v2056, %v2054
        %v2331 = vpack.c.b16 %v2059, %v2057
        %v2332 = vpack.c.b16 %v2060, %v2058
        %v2333 = vpack.c.b16 %v2063, %v2061
        %v2334 = vpack.c.b16 %v2064, %v2062
        %v2335 = vpack.c.b16 %v2067, %v2065
        %v2336 = vpack.c.b16 %v2068, %v2066
        %v2337 = vpack.c.b16 %v2071, %v2069
        %v2338 = vpack.c.b16 %v2072, %v2070
        %v2339 = vpack.c.b16 %v2075, %v2073
        %v2340 = vpack.c.b16 %v2076, %v2074
        %v2341 = vpack.c.b16 %v2079, %v2077
        %v2342 = vpack.c.b16 %v2080, %v2078
        %v2343 = vpack.c.b16 %v2083, %v2081
        %v2344 = vpack.c.b16 %v2084, %v2082
        %v2345 = vpack.c.b16 %v2087, %v2085
        %v2346 = vpack.c.b16 %v2088, %v2086
        %v2347 = vpack.c.b16 %v2091, %v2089
        %v2348 = vpack.c.b16 %v2092, %v2090
        %v2349 = vpack.c.b16 %v2095, %v2093
        %v2350 = vpack.c.b16 %v2096, %v2094
        %v2351 = vpack.c.b16 %v2099, %v2097
        %v2352 = vpack.c.b16 %v2100, %v2098
        %v2353 = vpack.c.b16 %v2103, %v2101
        %v2354 = vpack.c.b16 %v2104, %v2102
        %v2355 = vpack.c.b16 %v2107, %v2105
        %v2356 = vpack.c.b16 %v2108, %v2106
        %v2357 = vpack.c.b16 %v2111, %v2109
        %v2358 = vpack.c.b16 %v2112, %v2110
        %v2359 = vpack.c.b16 %v2115, %v2113
        %v2360 = vpack.c.b16 %v2116, %v2114
        %v2361 = vpack.c.b16 %v2119, %v2117
        %v2362 = vpack.c.b16 %v2120, %v2118
        %v2363 = vpack.c.b16 %v2123, %v2121
        %v2364 = vpack.c.b16 %v2124, %v2122
        %2605 = vmatpush.bf16.msra.mxu0 %v2139
        %2606 = vmatpush.bf16.msra.mxu0 %v2137
        %2607 = vmatpush.bf16.msra.mxu0 %v2135
        %2608 = vmatpush.bf16.msra.mxu0 %v2133
        %2609 = vmatpush.bf16.msra.mxu0 %v2131
        %2610 = vmatpush.bf16.msra.mxu0 %v2129
        %2611 = vmatpush.bf16.msra.mxu0 %v2127
        %2612 = vmatpush.bf16.msra.mxu0 %v2125
        %2613 = vmatmul.bf16.gmra.mxu0 %v1144
        %v2614 = vpop.f32.mrf.mxu0
        %v2615 = vadd.f32 %v1401, %v2614
        %v2616 = vpop.f32.mrf.mxu0
        %2617 = vdwg.mxu0
        %2618 = vmatpush.bf16.msra.mxu0 %v2155
        %2619 = vmatpush.bf16.msra.mxu0 %v2153
        %2620 = vmatpush.bf16.msra.mxu0 %v2151
        %2621 = vmatpush.bf16.msra.mxu0 %v2149
        %2622 = vmatpush.bf16.msra.mxu0 %v2147
        %2623 = vmatpush.bf16.msra.mxu0 %v2145
        %2624 = vmatpush.bf16.msra.mxu0 %v2143
        %2625 = vmatpush.bf16.msra.mxu0 %v2141
        %2626 = vmatmul.bf16.gmra.mxu0 %v1145
        %v2627 = vpop.f32.mrf.mxu0
        %v2628 = vadd.f32 %v2615, %v2627
        %v2629 = vpop.f32.mrf.mxu0
        %2630 = vdwg.mxu0
        %2631 = vmatpush.bf16.msra.mxu0 %v2171
        %2632 = vmatpush.bf16.msra.mxu0 %v2169
        %2633 = vmatpush.bf16.msra.mxu0 %v2167
        %2634 = vmatpush.bf16.msra.mxu0 %v2165
        %2635 = vmatpush.bf16.msra.mxu0 %v2163
        %2636 = vmatpush.bf16.msra.mxu0 %v2161
        %2637 = vmatpush.bf16.msra.mxu0 %v2159
        %2638 = vmatpush.bf16.msra.mxu0 %v2157
        %2639 = vmatmul.bf16.gmra.mxu0 %v1146
        %v2640 = vpop.f32.mrf.mxu0
        %v2641 = vadd.f32 %v2628, %v2640
        %v2642 = vpop.f32.mrf.mxu0
        %2643 = vdwg.mxu0
        %2644 = vmatpush.bf16.msra.mxu0 %v2187
        %2645 = vmatpush.bf16.msra.mxu0 %v2185
        %2646 = vmatpush.bf16.msra.mxu0 %v2183
        %2647 = vmatpush.bf16.msra.mxu0 %v2181
        %2648 = vmatpush.bf16.msra.mxu0 %v2179
        %2649 = vmatpush.bf16.msra.mxu0 %v2177
        %2650 = vmatpush.bf16.msra.mxu0 %v2175
        %2651 = vmatpush.bf16.msra.mxu0 %v2173
        %2652 = vmatmul.bf16.gmra.mxu0 %v1147
        %v2653 = vpop.f32.mrf.mxu0
        %v2654 = vadd.f32 %v2641, %v2653
        %v2655 = vpop.f32.mrf.mxu0
        %2656 = vdwg.mxu0
        %2657 = vmatpush.bf16.msra.mxu0 %v2203
        %2658 = vmatpush.bf16.msra.mxu0 %v2201
        %2659 = vmatpush.bf16.msra.mxu0 %v2199
        %2660 = vmatpush.bf16.msra.mxu0 %v2197
        %2661 = vmatpush.bf16.msra.mxu0 %v2195
        %2662 = vmatpush.bf16.msra.mxu0 %v2193
        %2663 = vmatpush.bf16.msra.mxu0 %v2191
        %2664 = vmatpush.bf16.msra.mxu0 %v2189
        %2665 = vmatmul.bf16.gmra.mxu0 %v1148
        %v2666 = vpop.f32.mrf.mxu0
        %v2667 = vadd.f32 %v2654, %v2666
        %v2668 = vpop.f32.mrf.mxu0
        %2669 = vdwg.mxu0
        %2670 = vmatpush.bf16.msra.mxu0 %v2219
        %2671 = vmatpush.bf16.msra.mxu0 %v2217
        %2672 = vmatpush.bf16.msra.mxu0 %v2215
        %2673 = vmatpush.bf16.msra.mxu0 %v2213
        %2674 = vmatpush.bf16.msra.mxu0 %v2211
        %2675 = vmatpush.bf16.msra.mxu0 %v2209
        %2676 = vmatpush.bf16.msra.mxu0 %v2207
        %2677 = vmatpush.bf16.msra.mxu0 %v2205
        %2678 = vmatmul.bf16.gmra.mxu0 %v1149
        %v2679 = vpop.f32.mrf.mxu0
        %v2680 = vadd.f32 %v2667, %v2679
        %v2681 = vpop.f32.mrf.mxu0
        %2682 = vdwg.mxu0
        %2683 = vmatpush.bf16.msra.mxu0 %v2235
        %2684 = vmatpush.bf16.msra.mxu0 %v2233
        %2685 = vmatpush.bf16.msra.mxu0 %v2231
        %2686 = vmatpush.bf16.msra.mxu0 %v2229
        %2687 = vmatpush.bf16.msra.mxu0 %v2227
        %2688 = vmatpush.bf16.msra.mxu0 %v2225
        %2689 = vmatpush.bf16.msra.mxu0 %v2223
        %2690 = vmatpush.bf16.msra.mxu0 %v2221
        %2691 = vmatmul.bf16.gmra.mxu0 %v1150
        %v2692 = vpop.f32.mrf.mxu0
        %v2693 = vadd.f32 %v2680, %v2692
        %v2694 = vpop.f32.mrf.mxu0
        %2695 = vdwg.mxu0
        %2696 = vmatpush.bf16.msra.mxu0 %v2251
        %2697 = vmatpush.bf16.msra.mxu0 %v2249
        %2698 = vmatpush.bf16.msra.mxu0 %v2247
        %2699 = vmatpush.bf16.msra.mxu0 %v2245
        %2700 = vmatpush.bf16.msra.mxu0 %v2243
        %2701 = vmatpush.bf16.msra.mxu0 %v2241
        %2702 = vmatpush.bf16.msra.mxu0 %v2239
        %2703 = vmatpush.bf16.msra.mxu0 %v2237
        %2704 = vmatmul.bf16.gmra.mxu0 %v1151
        %v2705 = vpop.f32.mrf.mxu0
        %v2706 = vadd.f32 %v2693, %v2705
        %v2707 = vpop.f32.mrf.mxu0
        %2708 = vdwg.mxu0
        %2709 = vmatpush.bf16.msra.mxu0 %v2267
        %2710 = vmatpush.bf16.msra.mxu0 %v2265
        %2711 = vmatpush.bf16.msra.mxu0 %v2263
        %2712 = vmatpush.bf16.msra.mxu0 %v2261
        %2713 = vmatpush.bf16.msra.mxu0 %v2259
        %2714 = vmatpush.bf16.msra.mxu0 %v2257
        %2715 = vmatpush.bf16.msra.mxu0 %v2255
        %2716 = vmatpush.bf16.msra.mxu0 %v2253
        %2717 = vmatmul.bf16.gmra.mxu0 %v1152
        %v2718 = vpop.f32.mrf.mxu0
        %v2719 = vadd.f32 %v2706, %v2718
        %v2720 = vpop.f32.mrf.mxu0
        %2721 = vdwg.mxu0
        %2722 = vmatpush.bf16.msra.mxu0 %v2283
        %2723 = vmatpush.bf16.msra.mxu0 %v2281
        %2724 = vmatpush.bf16.msra.mxu0 %v2279
        %2725 = vmatpush.bf16.msra.mxu0 %v2277
        %2726 = vmatpush.bf16.msra.mxu0 %v2275
        %2727 = vmatpush.bf16.msra.mxu0 %v2273
        %2728 = vmatpush.bf16.msra.mxu0 %v2271
        %2729 = vmatpush.bf16.msra.mxu0 %v2269
        %2730 = vmatmul.bf16.gmra.mxu0 %v1153
        %v2731 = vpop.f32.mrf.mxu0
        %v2732 = vadd.f32 %v2719, %v2731
        %v2733 = vpop.f32.mrf.mxu0
        %2734 = vdwg.mxu0
        %2735 = vmatpush.bf16.msra.mxu0 %v2299
        %2736 = vmatpush.bf16.msra.mxu0 %v2297
        %2737 = vmatpush.bf16.msra.mxu0 %v2295
        %2738 = vmatpush.bf16.msra.mxu0 %v2293
        %2739 = vmatpush.bf16.msra.mxu0 %v2291
        %2740 = vmatpush.bf16.msra.mxu0 %v2289
        %2741 = vmatpush.bf16.msra.mxu0 %v2287
        %2742 = vmatpush.bf16.msra.mxu0 %v2285
        %2743 = vmatmul.bf16.gmra.mxu0 %v1154
        %v2744 = vpop.f32.mrf.mxu0
        %v2745 = vadd.f32 %v2732, %v2744
        %v2746 = vpop.f32.mrf.mxu0
        %2747 = vdwg.mxu0
        %2748 = vmatpush.bf16.msra.mxu0 %v2315
        %2749 = vmatpush.bf16.msra.mxu0 %v2313
        %2750 = vmatpush.bf16.msra.mxu0 %v2311
        %2751 = vmatpush.bf16.msra.mxu0 %v2309
        %2752 = vmatpush.bf16.msra.mxu0 %v2307
        %2753 = vmatpush.bf16.msra.mxu0 %v2305
        %2754 = vmatpush.bf16.msra.mxu0 %v2303
        %2755 = vmatpush.bf16.msra.mxu0 %v2301
        %2756 = vmatmul.bf16.gmra.mxu0 %v1155
        %v2757 = vpop.f32.mrf.mxu0
        %v2758 = vadd.f32 %v2745, %v2757
        %v2759 = vpop.f32.mrf.mxu0
        %2760 = vdwg.mxu0
        %2761 = vmatpush.bf16.msra.mxu0 %v2331
        %2762 = vmatpush.bf16.msra.mxu0 %v2329
        %2763 = vmatpush.bf16.msra.mxu0 %v2327
        %2764 = vmatpush.bf16.msra.mxu0 %v2325
        %2765 = vmatpush.bf16.msra.mxu0 %v2323
        %2766 = vmatpush.bf16.msra.mxu0 %v2321
        %2767 = vmatpush.bf16.msra.mxu0 %v2319
        %2768 = vmatpush.bf16.msra.mxu0 %v2317
        %2769 = vmatmul.bf16.gmra.mxu0 %v1156
        %v2770 = vpop.f32.mrf.mxu0
        %v2771 = vadd.f32 %v2758, %v2770
        %v2772 = vpop.f32.mrf.mxu0
        %2773 = vdwg.mxu0
        %2774 = vmatpush.bf16.msra.mxu0 %v2347
        %2775 = vmatpush.bf16.msra.mxu0 %v2345
        %2776 = vmatpush.bf16.msra.mxu0 %v2343
        %2777 = vmatpush.bf16.msra.mxu0 %v2341
        %2778 = vmatpush.bf16.msra.mxu0 %v2339
        %2779 = vmatpush.bf16.msra.mxu0 %v2337
        %2780 = vmatpush.bf16.msra.mxu0 %v2335
        %2781 = vmatpush.bf16.msra.mxu0 %v2333
        %2782 = vmatmul.bf16.gmra.mxu0 %v1157
        %v2783 = vpop.f32.mrf.mxu0
        %v2784 = vadd.f32 %v2771, %v2783
        %v2785 = vpop.f32.mrf.mxu0
        %2786 = vdwg.mxu0
        %2787 = vmatpush.bf16.msra.mxu0 %v2363
        %2788 = vmatpush.bf16.msra.mxu0 %v2361
        %2789 = vmatpush.bf16.msra.mxu0 %v2359
        %2790 = vmatpush.bf16.msra.mxu0 %v2357
        %2791 = vmatpush.bf16.msra.mxu0 %v2355
        %2792 = vmatpush.bf16.msra.mxu0 %v2353
        %2793 = vmatpush.bf16.msra.mxu0 %v2351
        %2794 = vmatpush.bf16.msra.mxu0 %v2349
        %2795 = vmatmul.bf16.gmra.mxu0 %v1158
        %v2796 = vpop.f32.mrf.mxu0
        %v2797 = vadd.f32 %v2784, %v2796
        %v2798 = vpop.f32.mrf.mxu0
        %2799 = vdwg.mxu0
        %2800 = vmatpush.bf16.msra.mxu0 %v2140
        %2801 = vmatpush.bf16.msra.mxu0 %v2138
        %2802 = vmatpush.bf16.msra.mxu0 %v2136
        %2803 = vmatpush.bf16.msra.mxu0 %v2134
        %2804 = vmatpush.bf16.msra.mxu0 %v2132
        %2805 = vmatpush.bf16.msra.mxu0 %v2130
        %2806 = vmatpush.bf16.msra.mxu0 %v2128
        %2807 = vmatpush.bf16.msra.mxu0 %v2126
        %2808 = vmatmul.bf16.gmra.mxu0 %v1144
        %v2809 = vpop.f32.mrf.mxu0
        %v2810 = vadd.f32 %v1402, %v2809
        %v2811 = vpop.f32.mrf.mxu0
        %2812 = vdwg.mxu0
        %2813 = vmatpush.bf16.msra.mxu0 %v2156
        %2814 = vmatpush.bf16.msra.mxu0 %v2154
        %2815 = vmatpush.bf16.msra.mxu0 %v2152
        %2816 = vmatpush.bf16.msra.mxu0 %v2150
        %2817 = vmatpush.bf16.msra.mxu0 %v2148
        %2818 = vmatpush.bf16.msra.mxu0 %v2146
        %2819 = vmatpush.bf16.msra.mxu0 %v2144
        %2820 = vmatpush.bf16.msra.mxu0 %v2142
        %2821 = vmatmul.bf16.gmra.mxu0 %v1145
        %v2822 = vpop.f32.mrf.mxu0
        %v2823 = vadd.f32 %v2810, %v2822
        %v2824 = vpop.f32.mrf.mxu0
        %2825 = vdwg.mxu0
        %2826 = vmatpush.bf16.msra.mxu0 %v2172
        %2827 = vmatpush.bf16.msra.mxu0 %v2170
        %2828 = vmatpush.bf16.msra.mxu0 %v2168
        %2829 = vmatpush.bf16.msra.mxu0 %v2166
        %2830 = vmatpush.bf16.msra.mxu0 %v2164
        %2831 = vmatpush.bf16.msra.mxu0 %v2162
        %2832 = vmatpush.bf16.msra.mxu0 %v2160
        %2833 = vmatpush.bf16.msra.mxu0 %v2158
        %2834 = vmatmul.bf16.gmra.mxu0 %v1146
        %v2835 = vpop.f32.mrf.mxu0
        %v2836 = vadd.f32 %v2823, %v2835
        %v2837 = vpop.f32.mrf.mxu0
        %2838 = vdwg.mxu0
        %2839 = vmatpush.bf16.msra.mxu0 %v2188
        %2840 = vmatpush.bf16.msra.mxu0 %v2186
        %2841 = vmatpush.bf16.msra.mxu0 %v2184
        %2842 = vmatpush.bf16.msra.mxu0 %v2182
        %2843 = vmatpush.bf16.msra.mxu0 %v2180
        %2844 = vmatpush.bf16.msra.mxu0 %v2178
        %2845 = vmatpush.bf16.msra.mxu0 %v2176
        %2846 = vmatpush.bf16.msra.mxu0 %v2174
        %2847 = vmatmul.bf16.gmra.mxu0 %v1147
        %v2848 = vpop.f32.mrf.mxu0
        %v2849 = vadd.f32 %v2836, %v2848
        %v2850 = vpop.f32.mrf.mxu0
        %2851 = vdwg.mxu0
        %2852 = vmatpush.bf16.msra.mxu0 %v2204
        %2853 = vmatpush.bf16.msra.mxu0 %v2202
        %2854 = vmatpush.bf16.msra.mxu0 %v2200
        %2855 = vmatpush.bf16.msra.mxu0 %v2198
        %2856 = vmatpush.bf16.msra.mxu0 %v2196
        %2857 = vmatpush.bf16.msra.mxu0 %v2194
        %2858 = vmatpush.bf16.msra.mxu0 %v2192
        %2859 = vmatpush.bf16.msra.mxu0 %v2190
        %2860 = vmatmul.bf16.gmra.mxu0 %v1148
        %v2861 = vpop.f32.mrf.mxu0
        %v2862 = vadd.f32 %v2849, %v2861
        %v2863 = vpop.f32.mrf.mxu0
        %2864 = vdwg.mxu0
        %2865 = vmatpush.bf16.msra.mxu0 %v2220
        %2866 = vmatpush.bf16.msra.mxu0 %v2218
        %2867 = vmatpush.bf16.msra.mxu0 %v2216
        %2868 = vmatpush.bf16.msra.mxu0 %v2214
        %2869 = vmatpush.bf16.msra.mxu0 %v2212
        %2870 = vmatpush.bf16.msra.mxu0 %v2210
        %2871 = vmatpush.bf16.msra.mxu0 %v2208
        %2872 = vmatpush.bf16.msra.mxu0 %v2206
        %2873 = vmatmul.bf16.gmra.mxu0 %v1149
        %v2874 = vpop.f32.mrf.mxu0
        %v2875 = vadd.f32 %v2862, %v2874
        %v2876 = vpop.f32.mrf.mxu0
        %2877 = vdwg.mxu0
        %2878 = vmatpush.bf16.msra.mxu0 %v2236
        %2879 = vmatpush.bf16.msra.mxu0 %v2234
        %2880 = vmatpush.bf16.msra.mxu0 %v2232
        %2881 = vmatpush.bf16.msra.mxu0 %v2230
        %2882 = vmatpush.bf16.msra.mxu0 %v2228
        %2883 = vmatpush.bf16.msra.mxu0 %v2226
        %2884 = vmatpush.bf16.msra.mxu0 %v2224
        %2885 = vmatpush.bf16.msra.mxu0 %v2222
        %2886 = vmatmul.bf16.gmra.mxu0 %v1150
        %v2887 = vpop.f32.mrf.mxu0
        %v2888 = vadd.f32 %v2875, %v2887
        %v2889 = vpop.f32.mrf.mxu0
        %2890 = vdwg.mxu0
        %2891 = vmatpush.bf16.msra.mxu0 %v2252
        %2892 = vmatpush.bf16.msra.mxu0 %v2250
        %2893 = vmatpush.bf16.msra.mxu0 %v2248
        %2894 = vmatpush.bf16.msra.mxu0 %v2246
        %2895 = vmatpush.bf16.msra.mxu0 %v2244
        %2896 = vmatpush.bf16.msra.mxu0 %v2242
        %2897 = vmatpush.bf16.msra.mxu0 %v2240
        %2898 = vmatpush.bf16.msra.mxu0 %v2238
        %2899 = vmatmul.bf16.gmra.mxu0 %v1151
        %v2900 = vpop.f32.mrf.mxu0
        %v2901 = vadd.f32 %v2888, %v2900
        %v2902 = vpop.f32.mrf.mxu0
        %2903 = vdwg.mxu0
        %2904 = vmatpush.bf16.msra.mxu0 %v2268
        %2905 = vmatpush.bf16.msra.mxu0 %v2266
        %2906 = vmatpush.bf16.msra.mxu0 %v2264
        %2907 = vmatpush.bf16.msra.mxu0 %v2262
        %2908 = vmatpush.bf16.msra.mxu0 %v2260
        %2909 = vmatpush.bf16.msra.mxu0 %v2258
        %2910 = vmatpush.bf16.msra.mxu0 %v2256
        %2911 = vmatpush.bf16.msra.mxu0 %v2254
        %2912 = vmatmul.bf16.gmra.mxu0 %v1152
        %v2913 = vpop.f32.mrf.mxu0
        %v2914 = vadd.f32 %v2901, %v2913
        %v2915 = vpop.f32.mrf.mxu0
        %2916 = vdwg.mxu0
        %2917 = vmatpush.bf16.msra.mxu0 %v2284
        %2918 = vmatpush.bf16.msra.mxu0 %v2282
        %2919 = vmatpush.bf16.msra.mxu0 %v2280
        %2920 = vmatpush.bf16.msra.mxu0 %v2278
        %2921 = vmatpush.bf16.msra.mxu0 %v2276
        %2922 = vmatpush.bf16.msra.mxu0 %v2274
        %2923 = vmatpush.bf16.msra.mxu0 %v2272
        %2924 = vmatpush.bf16.msra.mxu0 %v2270
        %2925 = vmatmul.bf16.gmra.mxu0 %v1153
        %v2926 = vpop.f32.mrf.mxu0
        %v2927 = vadd.f32 %v2914, %v2926
        %v2928 = vpop.f32.mrf.mxu0
        %2929 = vdwg.mxu0
        %2930 = vmatpush.bf16.msra.mxu0 %v2300
        %2931 = vmatpush.bf16.msra.mxu0 %v2298
        %2932 = vmatpush.bf16.msra.mxu0 %v2296
        %2933 = vmatpush.bf16.msra.mxu0 %v2294
        %2934 = vmatpush.bf16.msra.mxu0 %v2292
        %2935 = vmatpush.bf16.msra.mxu0 %v2290
        %2936 = vmatpush.bf16.msra.mxu0 %v2288
        %2937 = vmatpush.bf16.msra.mxu0 %v2286
        %2938 = vmatmul.bf16.gmra.mxu0 %v1154
        %v2939 = vpop.f32.mrf.mxu0
        %v2940 = vadd.f32 %v2927, %v2939
        %v2941 = vpop.f32.mrf.mxu0
        %2942 = vdwg.mxu0
        %2943 = vmatpush.bf16.msra.mxu0 %v2316
        %2944 = vmatpush.bf16.msra.mxu0 %v2314
        %2945 = vmatpush.bf16.msra.mxu0 %v2312
        %2946 = vmatpush.bf16.msra.mxu0 %v2310
        %2947 = vmatpush.bf16.msra.mxu0 %v2308
        %2948 = vmatpush.bf16.msra.mxu0 %v2306
        %2949 = vmatpush.bf16.msra.mxu0 %v2304
        %2950 = vmatpush.bf16.msra.mxu0 %v2302
        %2951 = vmatmul.bf16.gmra.mxu0 %v1155
        %v2952 = vpop.f32.mrf.mxu0
        %v2953 = vadd.f32 %v2940, %v2952
        %v2954 = vpop.f32.mrf.mxu0
        %2955 = vdwg.mxu0
        %2956 = vmatpush.bf16.msra.mxu0 %v2332
        %2957 = vmatpush.bf16.msra.mxu0 %v2330
        %2958 = vmatpush.bf16.msra.mxu0 %v2328
        %2959 = vmatpush.bf16.msra.mxu0 %v2326
        %2960 = vmatpush.bf16.msra.mxu0 %v2324
        %2961 = vmatpush.bf16.msra.mxu0 %v2322
        %2962 = vmatpush.bf16.msra.mxu0 %v2320
        %2963 = vmatpush.bf16.msra.mxu0 %v2318
        %2964 = vmatmul.bf16.gmra.mxu0 %v1156
        %v2965 = vpop.f32.mrf.mxu0
        %v2966 = vadd.f32 %v2953, %v2965
        %v2967 = vpop.f32.mrf.mxu0
        %2968 = vdwg.mxu0
        %2969 = vmatpush.bf16.msra.mxu0 %v2348
        %2970 = vmatpush.bf16.msra.mxu0 %v2346
        %2971 = vmatpush.bf16.msra.mxu0 %v2344
        %2972 = vmatpush.bf16.msra.mxu0 %v2342
        %2973 = vmatpush.bf16.msra.mxu0 %v2340
        %2974 = vmatpush.bf16.msra.mxu0 %v2338
        %2975 = vmatpush.bf16.msra.mxu0 %v2336
        %2976 = vmatpush.bf16.msra.mxu0 %v2334
        %2977 = vmatmul.bf16.gmra.mxu0 %v1157
        %v2978 = vpop.f32.mrf.mxu0
        %v2979 = vadd.f32 %v2966, %v2978
        %v2980 = vpop.f32.mrf.mxu0
        %2981 = vdwg.mxu0
        %2982 = vmatpush.bf16.msra.mxu0 %v2364
        %2983 = vmatpush.bf16.msra.mxu0 %v2362
        %2984 = vmatpush.bf16.msra.mxu0 %v2360
        %2985 = vmatpush.bf16.msra.mxu0 %v2358
        %2986 = vmatpush.bf16.msra.mxu0 %v2356
        %2987 = vmatpush.bf16.msra.mxu0 %v2354
        %2988 = vmatpush.bf16.msra.mxu0 %v2352
        %2989 = vmatpush.bf16.msra.mxu0 %v2350
        %2990 = vmatmul.bf16.gmra.mxu0 %v1158
        %v2991 = vpop.f32.mrf.mxu0
        %v2992 = vadd.f32 %v2979, %v2991
        %v2993 = vpop.f32.mrf.mxu0
        %2994 = vdwg.mxu0
        %v2995 = vmax.f32 %v2797, 0.0
        %v2996 = vmax.f32 %v2992, 0.0
        %2997 = vst [vmem:[#allocation4] sm:$0x3f] %v2995
        %2998 = vst [vmem:[#allocation4 + $0x8] sm:$0x3f] %v2996
        %v3001 = vrot.slane %v2995, 1
        %v3002 = vrot.slane %v2996, 1
        %3005 = vst [vmem:[#allocation4 + $0x10] sm:$0x3f] %v3001
        %3006 = vst [vmem:[#allocation4 + $0x18] sm:$0x3f] %v3002
        %v3007 = vrot.slane %v2995, 2
        %v3008 = vrot.slane %v2996, 2
        %3011 = vst [vmem:[#allocation4 + $0x20] sm:$0x3f] %v3007
        %3012 = vst [vmem:[#allocation4 + $0x28] sm:$0x3f] %v3008
        %v3013 = vld [vmem:[#allocation4] sm:$0x3f]
        %v3014 = vld [vmem:[#allocation4 + $0x8] sm:$0x3f]
        %v3015 = vld [vmem:[#allocation4 + $0x10] sm:$0x3f]
        %v3016 = vld [vmem:[#allocation4 + $0x18] sm:$0x3f]
        %v3017 = vld [vmem:[#allocation4 + $0x20] sm:$0x3f]
        %v3018 = vld [vmem:[#allocation4 + $0x28] sm:$0x3f]
        %v3019 = vpack.c.bf16 %v3013, %v3013
        %v3020 = vpack.c.bf16 %v3014, %v3014
        %v3021 = vpack.c.bf16 %v3015, %v3015
        %v3022 = vpack.c.bf16 %v3016, %v3016
        %v3023 = vpack.c.bf16 %v3017, %v3017
        %v3024 = vpack.c.bf16 %v3018, %v3018
        %v3025 = vld [vmem:[%s6] sm:$0xff]
        %v3026 = vld [vmem:[%s6 + $0x8] sm:$0xff]
        %v3027 = vld [vmem:[%s6 + $0x10] sm:$0xff]
        %v3028 = vld [vmem:[%s6 + $0x18] sm:$0xff]
        %v3029 = vld [vmem:[%s6 + $0x20] sm:$0xff]
        %v3030 = vld [vmem:[%s6 + $0x28] sm:$0xff]
        %v3031 = vld [vmem:[%s6 + $0x30] sm:$0xff]
        %v3032 = vld [vmem:[%s6 + $0x38] sm:$0xff]
        %v3033 = vld [vmem:[%s6 + $0x40] sm:$0xff]
        %v3034 = vld [vmem:[%s6 + $0x48] sm:$0xff]
        %v3035 = vld [vmem:[%s6 + $0x50] sm:$0xff]
        %v3036 = vld [vmem:[%s6 + $0x58] sm:$0xff]
        %v3037 = vld [vmem:[%s6 + $0x60] sm:$0xff]
        %v3038 = vld [vmem:[%s6 + $0x68] sm:$0xff]
        %v3039 = vld [vmem:[%s6 + $0x70] sm:$0xff]
        %v3040 = vld [vmem:[%s6 + $0x78] sm:$0xff]
        %v3041 = vld [vmem:[%s6 + $0x80] sm:$0xff]
        %v3042 = vld [vmem:[%s6 + $0x88] sm:$0xff]
        %v3043 = vld [vmem:[%s6 + $0x90] sm:$0xff]
        %v3044 = vld [vmem:[%s6 + $0x98] sm:$0xff]
        %v3045 = vld [vmem:[%s6 + $0xa0] sm:$0xff]
        %v3046 = vld [vmem:[%s6 + $0xa8] sm:$0xff]
        %v3047 = vld [vmem:[%s6 + $0xb0] sm:$0xff]
        %v3048 = vld [vmem:[%s6 + $0xb8] sm:$0xff]
        %v3049 = vld [vmem:[%s6 + $0xc0] sm:$0xff]
        %v3050 = vld [vmem:[%s6 + $0xc8] sm:$0xff]
        %v3051 = vld [vmem:[%s6 + $0xd0] sm:$0xff]
        %v3052 = vld [vmem:[%s6 + $0xd8] sm:$0xff]
        %v3053 = vld [vmem:[%s6 + $0xe0] sm:$0xff]
        %v3054 = vld [vmem:[%s6 + $0xe8] sm:$0xff]
        %v3055 = vld [vmem:[%s6 + $0xf0] sm:$0xff]
        %v3056 = vld [vmem:[%s6 + $0xf8] sm:$0xff]
        %v3057 = vld [vmem:[%s6 + $0x100] sm:$0xff]
        %v3058 = vld [vmem:[%s6 + $0x108] sm:$0xff]
        %v3059 = vld [vmem:[%s6 + $0x110] sm:$0xff]
        %v3060 = vld [vmem:[%s6 + $0x118] sm:$0xff]
        %v3061 = vld [vmem:[%s6 + $0x120] sm:$0xff]
        %v3062 = vld [vmem:[%s6 + $0x128] sm:$0xff]
        %v3063 = vld [vmem:[%s6 + $0x130] sm:$0xff]
        %v3064 = vld [vmem:[%s6 + $0x138] sm:$0xff]
        %v3065 = vld [vmem:[%s6 + $0x140] sm:$0xff]
        %v3066 = vld [vmem:[%s6 + $0x148] sm:$0xff]
        %v3067 = vld [vmem:[%s6 + $0x150] sm:$0xff]
        %v3068 = vld [vmem:[%s6 + $0x158] sm:$0xff]
        %v3069 = vld [vmem:[%s6 + $0x160] sm:$0xff]
        %v3070 = vld [vmem:[%s6 + $0x168] sm:$0xff]
        %v3071 = vld [vmem:[%s6 + $0x170] sm:$0xff]
        %v3072 = vld [vmem:[%s6 + $0x178] sm:$0xff]
        %v3073 = vld [vmem:[%s6 + $0x180] sm:$0xff]
        %v3074 = vld [vmem:[%s6 + $0x188] sm:$0xff]
        %v3075 = vld [vmem:[%s6 + $0x190] sm:$0xff]
        %v3076 = vld [vmem:[%s6 + $0x198] sm:$0xff]
        %v3077 = vld [vmem:[%s6 + $0x1a0] sm:$0xff]
        %v3078 = vld [vmem:[%s6 + $0x1a8] sm:$0xff]
        %v3079 = vld [vmem:[%s6 + $0x1b0] sm:$0xff]
        %v3080 = vld [vmem:[%s6 + $0x1b8] sm:$0xff]
        %v3081 = vld [vmem:[%s6 + $0x1c0] sm:$0xff]
        %v3082 = vld [vmem:[%s6 + $0x1c8] sm:$0xff]
        %v3083 = vld [vmem:[%s6 + $0x1d0] sm:$0xff]
        %v3084 = vld [vmem:[%s6 + $0x1d8] sm:$0xff]
        %v3085 = vld [vmem:[%s6 + $0x1e0] sm:$0xff]
        %v3086 = vld [vmem:[%s6 + $0x1e8] sm:$0xff]
        %v3087 = vld [vmem:[%s6 + $0x1f0] sm:$0xff]
        %v3088 = vld [vmem:[%s6 + $0x1f8] sm:$0xff]
        %v3089 = vld [vmem:[%s6 + $0x200] sm:$0xff]
        %v3090 = vld [vmem:[%s6 + $0x208] sm:$0xff]
        %v3091 = vld [vmem:[%s6 + $0x210] sm:$0xff]
        %v3092 = vld [vmem:[%s6 + $0x218] sm:$0xff]
        %v3093 = vld [vmem:[%s6 + $0x220] sm:$0xff]
        %v3094 = vld [vmem:[%s6 + $0x228] sm:$0xff]
        %v3095 = vld [vmem:[%s6 + $0x230] sm:$0xff]
        %v3096 = vld [vmem:[%s6 + $0x238] sm:$0xff]
        %v3097 = vld [vmem:[%s6 + $0x240] sm:$0xff]
        %v3098 = vld [vmem:[%s6 + $0x248] sm:$0xff]
        %v3099 = vld [vmem:[%s6 + $0x250] sm:$0xff]
        %v3100 = vld [vmem:[%s6 + $0x258] sm:$0xff]
        %v3101 = vld [vmem:[%s6 + $0x260] sm:$0xff]
        %v3102 = vld [vmem:[%s6 + $0x268] sm:$0xff]
        %v3103 = vld [vmem:[%s6 + $0x270] sm:$0xff]
        %v3104 = vld [vmem:[%s6 + $0x278] sm:$0xff]
        %v3105 = vld [vmem:[%s6 + $0x280] sm:$0xff]
        %v3106 = vld [vmem:[%s6 + $0x288] sm:$0xff]
        %v3107 = vld [vmem:[%s6 + $0x290] sm:$0xff]
        %v3108 = vld [vmem:[%s6 + $0x298] sm:$0xff]
        %v3109 = vld [vmem:[%s6 + $0x2a0] sm:$0xff]
        %v3110 = vld [vmem:[%s6 + $0x2a8] sm:$0xff]
        %v3111 = vld [vmem:[%s6 + $0x2b0] sm:$0xff]
        %v3112 = vld [vmem:[%s6 + $0x2b8] sm:$0xff]
        %v3113 = vld [vmem:[%s6 + $0x2c0] sm:$0xff]
        %v3114 = vld [vmem:[%s6 + $0x2c8] sm:$0xff]
        %v3115 = vld [vmem:[%s6 + $0x2d0] sm:$0xff]
        %v3116 = vld [vmem:[%s6 + $0x2d8] sm:$0xff]
        %v3117 = vld [vmem:[%s6 + $0x2e0] sm:$0xff]
        %v3118 = vld [vmem:[%s6 + $0x2e8] sm:$0xff]
        %v3119 = vld [vmem:[%s6 + $0x2f0] sm:$0xff]
        %v3120 = vld [vmem:[%s6 + $0x2f8] sm:$0xff]
        %v3121 = vld [vmem:[%s7] sm:$0x3]
        %v3123 = vperm.slane %v3121, 0
        %v3124 = vperm.slane %v3121, 1
        %v3223 = vunpack.c.l.b16 %v3025
        %v3224 = vunpack.c.h.b16 %v3025
        %v3225 = vunpack.c.l.b16 %v3026
        %v3226 = vunpack.c.h.b16 %v3026
        %v3227 = vunpack.c.l.b16 %v3027
        %v3228 = vunpack.c.h.b16 %v3027
        %v3229 = vunpack.c.l.b16 %v3028
        %v3230 = vunpack.c.h.b16 %v3028
        %v3231 = vunpack.c.l.b16 %v3029
        %v3232 = vunpack.c.h.b16 %v3029
        %v3233 = vunpack.c.l.b16 %v3030
        %v3234 = vunpack.c.h.b16 %v3030
        %v3235 = vunpack.c.l.b16 %v3031
        %v3236 = vunpack.c.h.b16 %v3031
        %v3237 = vunpack.c.l.b16 %v3032
        %v3238 = vunpack.c.h.b16 %v3032
        %v3239 = vunpack.c.l.b16 %v3033
        %v3240 = vunpack.c.h.b16 %v3033
        %v3241 = vunpack.c.l.b16 %v3034
        %v3242 = vunpack.c.h.b16 %v3034
        %v3243 = vunpack.c.l.b16 %v3035
        %v3244 = vunpack.c.h.b16 %v3035
        %v3245 = vunpack.c.l.b16 %v3036
        %v3246 = vunpack.c.h.b16 %v3036
        %v3247 = vunpack.c.l.b16 %v3037
        %v3248 = vunpack.c.h.b16 %v3037
        %v3249 = vunpack.c.l.b16 %v3038
        %v3250 = vunpack.c.h.b16 %v3038
        %v3251 = vunpack.c.l.b16 %v3039
        %v3252 = vunpack.c.h.b16 %v3039
        %v3253 = vunpack.c.l.b16 %v3040
        %v3254 = vunpack.c.h.b16 %v3040
        %v3255 = vunpack.c.l.b16 %v3041
        %v3256 = vunpack.c.h.b16 %v3041
        %v3257 = vunpack.c.l.b16 %v3042
        %v3258 = vunpack.c.h.b16 %v3042
        %v3259 = vunpack.c.l.b16 %v3043
        %v3260 = vunpack.c.h.b16 %v3043
        %v3261 = vunpack.c.l.b16 %v3044
        %v3262 = vunpack.c.h.b16 %v3044
        %v3263 = vunpack.c.l.b16 %v3045
        %v3264 = vunpack.c.h.b16 %v3045
        %v3265 = vunpack.c.l.b16 %v3046
        %v3266 = vunpack.c.h.b16 %v3046
        %v3267 = vunpack.c.l.b16 %v3047
        %v3268 = vunpack.c.h.b16 %v3047
        %v3269 = vunpack.c.l.b16 %v3048
        %v3270 = vunpack.c.h.b16 %v3048
        %v3271 = vunpack.c.l.b16 %v3049
        %v3272 = vunpack.c.h.b16 %v3049
        %v3273 = vunpack.c.l.b16 %v3050
        %v3274 = vunpack.c.h.b16 %v3050
        %v3275 = vunpack.c.l.b16 %v3051
        %v3276 = vunpack.c.h.b16 %v3051
        %v3277 = vunpack.c.l.b16 %v3052
        %v3278 = vunpack.c.h.b16 %v3052
        %v3279 = vunpack.c.l.b16 %v3053
        %v3280 = vunpack.c.h.b16 %v3053
        %v3281 = vunpack.c.l.b16 %v3054
        %v3282 = vunpack.c.h.b16 %v3054
        %v3283 = vunpack.c.l.b16 %v3055
        %v3284 = vunpack.c.h.b16 %v3055
        %v3285 = vunpack.c.l.b16 %v3056
        %v3286 = vunpack.c.h.b16 %v3056
        %v3287 = vunpack.c.l.b16 %v3057
        %v3288 = vunpack.c.h.b16 %v3057
        %v3289 = vunpack.c.l.b16 %v3058
        %v3290 = vunpack.c.h.b16 %v3058
        %v3291 = vunpack.c.l.b16 %v3059
        %v3292 = vunpack.c.h.b16 %v3059
        %v3293 = vunpack.c.l.b16 %v3060
        %v3294 = vunpack.c.h.b16 %v3060
        %v3295 = vunpack.c.l.b16 %v3061
        %v3296 = vunpack.c.h.b16 %v3061
        %v3297 = vunpack.c.l.b16 %v3062
        %v3298 = vunpack.c.h.b16 %v3062
        %v3299 = vunpack.c.l.b16 %v3063
        %v3300 = vunpack.c.h.b16 %v3063
        %v3301 = vunpack.c.l.b16 %v3064
        %v3302 = vunpack.c.h.b16 %v3064
        %v3303 = vunpack.c.l.b16 %v3065
        %v3304 = vunpack.c.h.b16 %v3065
        %v3305 = vunpack.c.l.b16 %v3066
        %v3306 = vunpack.c.h.b16 %v3066
        %v3307 = vunpack.c.l.b16 %v3067
        %v3308 = vunpack.c.h.b16 %v3067
        %v3309 = vunpack.c.l.b16 %v3068
        %v3310 = vunpack.c.h.b16 %v3068
        %v3311 = vunpack.c.l.b16 %v3069
        %v3312 = vunpack.c.h.b16 %v3069
        %v3313 = vunpack.c.l.b16 %v3070
        %v3314 = vunpack.c.h.b16 %v3070
        %v3315 = vunpack.c.l.b16 %v3071
        %v3316 = vunpack.c.h.b16 %v3071
        %v3317 = vunpack.c.l.b16 %v3072
        %v3318 = vunpack.c.h.b16 %v3072
        %v3319 = vunpack.c.l.b16 %v3073
        %v3320 = vunpack.c.h.b16 %v3073
        %v3321 = vunpack.c.l.b16 %v3074
        %v3322 = vunpack.c.h.b16 %v3074
        %v3323 = vunpack.c.l.b16 %v3075
        %v3324 = vunpack.c.h.b16 %v3075
        %v3325 = vunpack.c.l.b16 %v3076
        %v3326 = vunpack.c.h.b16 %v3076
        %v3327 = vunpack.c.l.b16 %v3077
        %v3328 = vunpack.c.h.b16 %v3077
        %v3329 = vunpack.c.l.b16 %v3078
        %v3330 = vunpack.c.h.b16 %v3078
        %v3331 = vunpack.c.l.b16 %v3079
        %v3332 = vunpack.c.h.b16 %v3079
        %v3333 = vunpack.c.l.b16 %v3080
        %v3334 = vunpack.c.h.b16 %v3080
        %v3335 = vunpack.c.l.b16 %v3081
        %v3336 = vunpack.c.h.b16 %v3081
        %v3337 = vunpack.c.l.b16 %v3082
        %v3338 = vunpack.c.h.b16 %v3082
        %v3339 = vunpack.c.l.b16 %v3083
        %v3340 = vunpack.c.h.b16 %v3083
        %v3341 = vunpack.c.l.b16 %v3084
        %v3342 = vunpack.c.h.b16 %v3084
        %v3343 = vunpack.c.l.b16 %v3085
        %v3344 = vunpack.c.h.b16 %v3085
        %v3345 = vunpack.c.l.b16 %v3086
        %v3346 = vunpack.c.h.b16 %v3086
        %v3347 = vunpack.c.l.b16 %v3087
        %v3348 = vunpack.c.h.b16 %v3087
        %v3349 = vunpack.c.l.b16 %v3088
        %v3350 = vunpack.c.h.b16 %v3088
        %v3351 = vunpack.c.l.b16 %v3089
        %v3352 = vunpack.c.h.b16 %v3089
        %v3353 = vunpack.c.l.b16 %v3090
        %v3354 = vunpack.c.h.b16 %v3090
        %v3355 = vunpack.c.l.b16 %v3091
        %v3356 = vunpack.c.h.b16 %v3091
        %v3357 = vunpack.c.l.b16 %v3092
        %v3358 = vunpack.c.h.b16 %v3092
        %v3359 = vunpack.c.l.b16 %v3093
        %v3360 = vunpack.c.h.b16 %v3093
        %v3361 = vunpack.c.l.b16 %v3094
        %v3362 = vunpack.c.h.b16 %v3094
        %v3363 = vunpack.c.l.b16 %v3095
        %v3364 = vunpack.c.h.b16 %v3095
        %v3365 = vunpack.c.l.b16 %v3096
        %v3366 = vunpack.c.h.b16 %v3096
        %v3367 = vunpack.c.l.b16 %v3097
        %v3368 = vunpack.c.h.b16 %v3097
        %v3369 = vunpack.c.l.b16 %v3098
        %v3370 = vunpack.c.h.b16 %v3098
        %v3371 = vunpack.c.l.b16 %v3099
        %v3372 = vunpack.c.h.b16 %v3099
        %v3373 = vunpack.c.l.b16 %v3100
        %v3374 = vunpack.c.h.b16 %v3100
        %v3375 = vunpack.c.l.b16 %v3101
        %v3376 = vunpack.c.h.b16 %v3101
        %v3377 = vunpack.c.l.b16 %v3102
        %v3378 = vunpack.c.h.b16 %v3102
        %v3379 = vunpack.c.l.b16 %v3103
        %v3380 = vunpack.c.h.b16 %v3103
        %v3381 = vunpack.c.l.b16 %v3104
        %v3382 = vunpack.c.h.b16 %v3104
        %v3383 = vunpack.c.l.b16 %v3105
        %v3384 = vunpack.c.h.b16 %v3105
        %v3385 = vunpack.c.l.b16 %v3106
        %v3386 = vunpack.c.h.b16 %v3106
        %v3387 = vunpack.c.l.b16 %v3107
        %v3388 = vunpack.c.h.b16 %v3107
        %v3389 = vunpack.c.l.b16 %v3108
        %v3390 = vunpack.c.h.b16 %v3108
        %v3391 = vunpack.c.l.b16 %v3109
        %v3392 = vunpack.c.h.b16 %v3109
        %v3393 = vunpack.c.l.b16 %v3110
        %v3394 = vunpack.c.h.b16 %v3110
        %v3395 = vunpack.c.l.b16 %v3111
        %v3396 = vunpack.c.h.b16 %v3111
        %v3397 = vunpack.c.l.b16 %v3112
        %v3398 = vunpack.c.h.b16 %v3112
        %v3399 = vunpack.c.l.b16 %v3113
        %v3400 = vunpack.c.h.b16 %v3113
        %v3401 = vunpack.c.l.b16 %v3114
        %v3402 = vunpack.c.h.b16 %v3114
        %v3403 = vunpack.c.l.b16 %v3115
        %v3404 = vunpack.c.h.b16 %v3115
        %v3405 = vunpack.c.l.b16 %v3116
        %v3406 = vunpack.c.h.b16 %v3116
        %v3407 = vunpack.c.l.b16 %v3117
        %v3408 = vunpack.c.h.b16 %v3117
        %v3409 = vunpack.c.l.b16 %v3118
        %v3410 = vunpack.c.h.b16 %v3118
        %v3411 = vunpack.c.l.b16 %v3119
        %v3412 = vunpack.c.h.b16 %v3119
        %v3413 = vunpack.c.l.b16 %v3120
        %v3414 = vunpack.c.h.b16 %v3120
        %v3415 = vpack.c.b16 %v3225, %v3223
        %v3416 = vpack.c.b16 %v3226, %v3224
        %v3417 = vpack.c.b16 %v3229, %v3227
        %v3418 = vpack.c.b16 %v3230, %v3228
        %v3419 = vpack.c.b16 %v3233, %v3231
        %v3420 = vpack.c.b16 %v3234, %v3232
        %v3421 = vpack.c.b16 %v3237, %v3235
        %v3422 = vpack.c.b16 %v3238, %v3236
        %v3423 = vpack.c.b16 %v3241, %v3239
        %v3424 = vpack.c.b16 %v3242, %v3240
        %v3425 = vpack.c.b16 %v3245, %v3243
        %v3426 = vpack.c.b16 %v3246, %v3244
        %v3427 = vpack.c.b16 %v3249, %v3247
        %v3428 = vpack.c.b16 %v3250, %v3248
        %v3429 = vpack.c.b16 %v3253, %v3251
        %v3430 = vpack.c.b16 %v3254, %v3252
        %v3431 = vpack.c.b16 %v3257, %v3255
        %v3432 = vpack.c.b16 %v3258, %v3256
        %v3433 = vpack.c.b16 %v3261, %v3259
        %v3434 = vpack.c.b16 %v3262, %v3260
        %v3435 = vpack.c.b16 %v3265, %v3263
        %v3436 = vpack.c.b16 %v3266, %v3264
        %v3437 = vpack.c.b16 %v3269, %v3267
        %v3438 = vpack.c.b16 %v3270, %v3268
        %v3439 = vpack.c.b16 %v3273, %v3271
        %v3440 = vpack.c.b16 %v3274, %v3272
        %v3441 = vpack.c.b16 %v3277, %v3275
        %v3442 = vpack.c.b16 %v3278, %v3276
        %v3443 = vpack.c.b16 %v3281, %v3279
        %v3444 = vpack.c.b16 %v3282, %v3280
        %v3445 = vpack.c.b16 %v3285, %v3283
        %v3446 = vpack.c.b16 %v3286, %v3284
        %v3447 = vpack.c.b16 %v3289, %v3287
        %v3448 = vpack.c.b16 %v3290, %v3288
        %v3449 = vpack.c.b16 %v3293, %v3291
        %v3450 = vpack.c.b16 %v3294, %v3292
        %v3451 = vpack.c.b16 %v3297, %v3295
        %v3452 = vpack.c.b16 %v3298, %v3296
        %v3453 = vpack.c.b16 %v3301, %v3299
        %v3454 = vpack.c.b16 %v3302, %v3300
        %v3455 = vpack.c.b16 %v3305, %v3303
        %v3456 = vpack.c.b16 %v3306, %v3304
        %v3457 = vpack.c.b16 %v3309, %v3307
        %v3458 = vpack.c.b16 %v3310, %v3308
        %v3459 = vpack.c.b16 %v3313, %v3311
        %v3460 = vpack.c.b16 %v3314, %v3312
        %v3461 = vpack.c.b16 %v3317, %v3315
        %v3462 = vpack.c.b16 %v3318, %v3316
        %v3463 = vpack.c.b16 %v3321, %v3319
        %v3464 = vpack.c.b16 %v3322, %v3320
        %v3465 = vpack.c.b16 %v3325, %v3323
        %v3466 = vpack.c.b16 %v3326, %v3324
        %v3467 = vpack.c.b16 %v3329, %v3327
        %v3468 = vpack.c.b16 %v3330, %v3328
        %v3469 = vpack.c.b16 %v3333, %v3331
        %v3470 = vpack.c.b16 %v3334, %v3332
        %v3471 = vpack.c.b16 %v3337, %v3335
        %v3472 = vpack.c.b16 %v3338, %v3336
        %v3473 = vpack.c.b16 %v3341, %v3339
        %v3474 = vpack.c.b16 %v3342, %v3340
        %v3475 = vpack.c.b16 %v3345, %v3343
        %v3476 = vpack.c.b16 %v3346, %v3344
        %v3477 = vpack.c.b16 %v3349, %v3347
        %v3478 = vpack.c.b16 %v3350, %v3348
        %v3479 = vpack.c.b16 %v3353, %v3351
        %v3480 = vpack.c.b16 %v3354, %v3352
        %v3481 = vpack.c.b16 %v3357, %v3355
        %v3482 = vpack.c.b16 %v3358, %v3356
        %v3483 = vpack.c.b16 %v3361, %v3359
        %v3484 = vpack.c.b16 %v3362, %v3360
        %v3485 = vpack.c.b16 %v3365, %v3363
        %v3486 = vpack.c.b16 %v3366, %v3364
        %v3487 = vpack.c.b16 %v3369, %v3367
        %v3488 = vpack.c.b16 %v3370, %v3368
        %v3489 = vpack.c.b16 %v3373, %v3371
        %v3490 = vpack.c.b16 %v3374, %v3372
        %v3491 = vpack.c.b16 %v3377, %v3375
        %v3492 = vpack.c.b16 %v3378, %v3376
        %v3493 = vpack.c.b16 %v3381, %v3379
        %v3494 = vpack.c.b16 %v3382, %v3380
        %v3495 = vpack.c.b16 %v3385, %v3383
        %v3496 = vpack.c.b16 %v3386, %v3384
        %v3497 = vpack.c.b16 %v3389, %v3387
        %v3498 = vpack.c.b16 %v3390, %v3388
        %v3499 = vpack.c.b16 %v3393, %v3391
        %v3500 = vpack.c.b16 %v3394, %v3392
        %v3501 = vpack.c.b16 %v3397, %v3395
        %v3502 = vpack.c.b16 %v3398, %v3396
        %v3503 = vpack.c.b16 %v3401, %v3399
        %v3504 = vpack.c.b16 %v3402, %v3400
        %v3505 = vpack.c.b16 %v3405, %v3403
        %v3506 = vpack.c.b16 %v3406, %v3404
        %v3507 = vpack.c.b16 %v3409, %v3407
        %v3508 = vpack.c.b16 %v3410, %v3408
        %v3509 = vpack.c.b16 %v3413, %v3411
        %v3510 = vpack.c.b16 %v3414, %v3412
        %3607 = vmatpush.bf16.msra.mxu0 %v3429
        %3608 = vmatpush.bf16.msra.mxu0 %v3427
        %3609 = vmatpush.bf16.msra.mxu0 %v3425
        %3610 = vmatpush.bf16.msra.mxu0 %v3423
        %3611 = vmatpush.bf16.msra.mxu0 %v3421
        %3612 = vmatpush.bf16.msra.mxu0 %v3419
        %3613 = vmatpush.bf16.msra.mxu0 %v3417
        %3614 = vmatpush.bf16.msra.mxu0 %v3415
        %3615 = vmatmul.bf16.gmra.mxu0 %v3019
        %v3616 = vpop.f32.mrf.mxu0
        %v3617 = vadd.f32 %v3123, %v3616
        %v3618 = vpop.f32.mrf.mxu0
        %3619 = vdwg.mxu0
        %3620 = vmatpush.bf16.msra.mxu0 %v3445
        %3621 = vmatpush.bf16.msra.mxu0 %v3443
        %3622 = vmatpush.bf16.msra.mxu0 %v3441
        %3623 = vmatpush.bf16.msra.mxu0 %v3439
        %3624 = vmatpush.bf16.msra.mxu0 %v3437
        %3625 = vmatpush.bf16.msra.mxu0 %v3435
        %3626 = vmatpush.bf16.msra.mxu0 %v3433
        %3627 = vmatpush.bf16.msra.mxu0 %v3431
        %3628 = vmatmul.bf16.gmra.mxu0 %v3020
        %v3629 = vpop.f32.mrf.mxu0
        %v3630 = vadd.f32 %v3617, %v3629
        %v3631 = vpop.f32.mrf.mxu0
        %3632 = vdwg.mxu0
        %3633 = vmatpush.bf16.msra.mxu0 %v3461
        %3634 = vmatpush.bf16.msra.mxu0 %v3459
        %3635 = vmatpush.bf16.msra.mxu0 %v3457
        %3636 = vmatpush.bf16.msra.mxu0 %v3455
        %3637 = vmatpush.bf16.msra.mxu0 %v3453
        %3638 = vmatpush.bf16.msra.mxu0 %v3451
        %3639 = vmatpush.bf16.msra.mxu0 %v3449
        %3640 = vmatpush.bf16.msra.mxu0 %v3447
        %3641 = vmatmul.bf16.gmra.mxu0 %v3021
        %v3642 = vpop.f32.mrf.mxu0
        %v3643 = vadd.f32 %v3630, %v3642
        %v3644 = vpop.f32.mrf.mxu0
        %3645 = vdwg.mxu0
        %3646 = vmatpush.bf16.msra.mxu0 %v3477
        %3647 = vmatpush.bf16.msra.mxu0 %v3475
        %3648 = vmatpush.bf16.msra.mxu0 %v3473
        %3649 = vmatpush.bf16.msra.mxu0 %v3471
        %3650 = vmatpush.bf16.msra.mxu0 %v3469
        %3651 = vmatpush.bf16.msra.mxu0 %v3467
        %3652 = vmatpush.bf16.msra.mxu0 %v3465
        %3653 = vmatpush.bf16.msra.mxu0 %v3463
        %3654 = vmatmul.bf16.gmra.mxu0 %v3022
        %v3655 = vpop.f32.mrf.mxu0
        %v3656 = vadd.f32 %v3643, %v3655
        %v3657 = vpop.f32.mrf.mxu0
        %3658 = vdwg.mxu0
        %3659 = vmatpush.bf16.msra.mxu0 %v3493
        %3660 = vmatpush.bf16.msra.mxu0 %v3491
        %3661 = vmatpush.bf16.msra.mxu0 %v3489
        %3662 = vmatpush.bf16.msra.mxu0 %v3487
        %3663 = vmatpush.bf16.msra.mxu0 %v3485
        %3664 = vmatpush.bf16.msra.mxu0 %v3483
        %3665 = vmatpush.bf16.msra.mxu0 %v3481
        %3666 = vmatpush.bf16.msra.mxu0 %v3479
        %3667 = vmatmul.bf16.gmra.mxu0 %v3023
        %v3668 = vpop.f32.mrf.mxu0
        %v3669 = vadd.f32 %v3656, %v3668
        %v3670 = vpop.f32.mrf.mxu0
        %3671 = vdwg.mxu0
        %3672 = vmatpush.bf16.msra.mxu0 %v3509
        %3673 = vmatpush.bf16.msra.mxu0 %v3507
        %3674 = vmatpush.bf16.msra.mxu0 %v3505
        %3675 = vmatpush.bf16.msra.mxu0 %v3503
        %3676 = vmatpush.bf16.msra.mxu0 %v3501
        %3677 = vmatpush.bf16.msra.mxu0 %v3499
        %3678 = vmatpush.bf16.msra.mxu0 %v3497
        %3679 = vmatpush.bf16.msra.mxu0 %v3495
        %3680 = vmatmul.bf16.gmra.mxu0 %v3024
        %v3681 = vpop.f32.mrf.mxu0
        %v3682 = vadd.f32 %v3669, %v3681
        %v3683 = vpop.f32.mrf.mxu0
        %3684 = vdwg.mxu0
        %3685 = vmatpush.bf16.msra.mxu0 %v3430
        %3686 = vmatpush.bf16.msra.mxu0 %v3428
        %3687 = vmatpush.bf16.msra.mxu0 %v3426
        %3688 = vmatpush.bf16.msra.mxu0 %v3424
        %3689 = vmatpush.bf16.msra.mxu0 %v3422
        %3690 = vmatpush.bf16.msra.mxu0 %v3420
        %3691 = vmatpush.bf16.msra.mxu0 %v3418
        %3692 = vmatpush.bf16.msra.mxu0 %v3416
        %3693 = vmatmul.bf16.gmra.mxu0 %v3019
        %v3694 = vpop.f32.mrf.mxu0
        %v3695 = vadd.f32 %v3124, %v3694
        %v3696 = vpop.f32.mrf.mxu0
        %3697 = vdwg.mxu0
        %3698 = vmatpush.bf16.msra.mxu0 %v3446
        %3699 = vmatpush.bf16.msra.mxu0 %v3444
        %3700 = vmatpush.bf16.msra.mxu0 %v3442
        %3701 = vmatpush.bf16.msra.mxu0 %v3440
        %3702 = vmatpush.bf16.msra.mxu0 %v3438
        %3703 = vmatpush.bf16.msra.mxu0 %v3436
        %3704 = vmatpush.bf16.msra.mxu0 %v3434
        %3705 = vmatpush.bf16.msra.mxu0 %v3432
        %3706 = vmatmul.bf16.gmra.mxu0 %v3020
        %v3707 = vpop.f32.mrf.mxu0
        %v3708 = vadd.f32 %v3695, %v3707
        %v3709 = vpop.f32.mrf.mxu0
        %3710 = vdwg.mxu0
        %3711 = vmatpush.bf16.msra.mxu0 %v3462
        %3712 = vmatpush.bf16.msra.mxu0 %v3460
        %3713 = vmatpush.bf16.msra.mxu0 %v3458
        %3714 = vmatpush.bf16.msra.mxu0 %v3456
        %3715 = vmatpush.bf16.msra.mxu0 %v3454
        %3716 = vmatpush.bf16.msra.mxu0 %v3452
        %3717 = vmatpush.bf16.msra.mxu0 %v3450
        %3718 = vmatpush.bf16.msra.mxu0 %v3448
        %3719 = vmatmul.bf16.gmra.mxu0 %v3021
        %v3720 = vpop.f32.mrf.mxu0
        %v3721 = vadd.f32 %v3708, %v3720
        %v3722 = vpop.f32.mrf.mxu0
        %3723 = vdwg.mxu0
        %3724 = vmatpush.bf16.msra.mxu0 %v3478
        %3725 = vmatpush.bf16.msra.mxu0 %v3476
        %3726 = vmatpush.bf16.msra.mxu0 %v3474
        %3727 = vmatpush.bf16.msra.mxu0 %v3472
        %3728 = vmatpush.bf16.msra.mxu0 %v3470
        %3729 = vmatpush.bf16.msra.mxu0 %v3468
        %3730 = vmatpush.bf16.msra.mxu0 %v3466
        %3731 = vmatpush.bf16.msra.mxu0 %v3464
        %3732 = vmatmul.bf16.gmra.mxu0 %v3022
        %v3733 = vpop.f32.mrf.mxu0
        %v3734 = vadd.f32 %v3721, %v3733
        %v3735 = vpop.f32.mrf.mxu0
        %3736 = vdwg.mxu0
        %3737 = vmatpush.bf16.msra.mxu0 %v3494
        %3738 = vmatpush.bf16.msra.mxu0 %v3492
        %3739 = vmatpush.bf16.msra.mxu0 %v3490
        %3740 = vmatpush.bf16.msra.mxu0 %v3488
        %3741 = vmatpush.bf16.msra.mxu0 %v3486
        %3742 = vmatpush.bf16.msra.mxu0 %v3484
        %3743 = vmatpush.bf16.msra.mxu0 %v3482
        %3744 = vmatpush.bf16.msra.mxu0 %v3480
        %3745 = vmatmul.bf16.gmra.mxu0 %v3023
        %v3746 = vpop.f32.mrf.mxu0
        %v3747 = vadd.f32 %v3734, %v3746
        %v3748 = vpop.f32.mrf.mxu0
        %3749 = vdwg.mxu0
        %3750 = vmatpush.bf16.msra.mxu0 %v3510
        %3751 = vmatpush.bf16.msra.mxu0 %v3508
        %3752 = vmatpush.bf16.msra.mxu0 %v3506
        %3753 = vmatpush.bf16.msra.mxu0 %v3504
        %3754 = vmatpush.bf16.msra.mxu0 %v3502
        %3755 = vmatpush.bf16.msra.mxu0 %v3500
        %3756 = vmatpush.bf16.msra.mxu0 %v3498
        %3757 = vmatpush.bf16.msra.mxu0 %v3496
        %3758 = vmatmul.bf16.gmra.mxu0 %v3024
        %v3759 = vpop.f32.mrf.mxu0
        %v3760 = vadd.f32 %v3747, %v3759
        %v3761 = vpop.f32.mrf.mxu0
        %3762 = vdwg.mxu0
        %v3763 = vmax.f32 %v3682, 0.0
        %v3764 = vmax.f32 %v3760, 0.0
        %v3765 = vpack.c.bf16 %v3763, %v3763
        %v3766 = vpack.c.bf16 %v3764, %v3764
        %v3767 = vld [vmem:[%s10] sm:$0xff]
        %v3768 = vld [vmem:[%s10 + $0x8] sm:$0xff]
        %v3769 = vld [vmem:[%s10 + $0x10] sm:$0xff]
        %v3770 = vld [vmem:[%s10 + $0x18] sm:$0xff]
        %v3771 = vld [vmem:[%s10 + $0x20] sm:$0xff]
        %v3772 = vld [vmem:[%s10 + $0x28] sm:$0xff]
        %v3773 = vld [vmem:[%s10 + $0x30] sm:$0xff]
        %v3774 = vld [vmem:[%s10 + $0x38] sm:$0xff]
        %v3775 = vld [vmem:[%s10 + $0x40] sm:$0xff]
        %v3776 = vld [vmem:[%s10 + $0x48] sm:$0xff]
        %v3777 = vld [vmem:[%s10 + $0x50] sm:$0xff]
        %v3778 = vld [vmem:[%s10 + $0x58] sm:$0xff]
        %v3779 = vld [vmem:[%s10 + $0x60] sm:$0xff]
        %v3780 = vld [vmem:[%s10 + $0x68] sm:$0xff]
        %v3781 = vld [vmem:[%s10 + $0x70] sm:$0xff]
        %v3782 = vld [vmem:[%s10 + $0x78] sm:$0xff]
        %v3783 = vld [vmem:[%s10 + $0x80] sm:$0xff]
        %v3784 = vld [vmem:[%s10 + $0x88] sm:$0xff]
        %v3785 = vld [vmem:[%s10 + $0x90] sm:$0xff]
        %v3786 = vld [vmem:[%s10 + $0x98] sm:$0xff]
        %v3787 = vld [vmem:[%s10 + $0xa0] sm:$0xff]
        %v3788 = vld [vmem:[%s10 + $0xa8] sm:$0xff]
        %v3789 = vld [vmem:[%s10 + $0xb0] sm:$0xff]
        %v3790 = vld [vmem:[%s10 + $0xb8] sm:$0xff]
        %v3791 = vld [vmem:[%s10 + $0xc0] sm:$0xff]
        %v3792 = vld [vmem:[%s10 + $0xc8] sm:$0xff]
        %v3793 = vld [vmem:[%s10 + $0xd0] sm:$0xff]
        %v3794 = vld [vmem:[%s10 + $0xd8] sm:$0xff]
        %v3795 = vld [vmem:[%s10 + $0xe0] sm:$0xff]
        %v3796 = vld [vmem:[%s10 + $0xe8] sm:$0xff]
        %v3797 = vld [vmem:[%s10 + $0xf0] sm:$0xff]
        %v3798 = vld [vmem:[%s10 + $0xf8] sm:$0xff]
        %v3799 = vld [vmem:[%s10 + $0x100] sm:$0xff]
        %v3800 = vld [vmem:[%s10 + $0x108] sm:$0xff]
        %v3801 = vld [vmem:[%s10 + $0x110] sm:$0xff]
        %v3802 = vld [vmem:[%s10 + $0x118] sm:$0xff]
        %v3803 = vld [vmem:[%s10 + $0x120] sm:$0xff]
        %v3804 = vld [vmem:[%s10 + $0x128] sm:$0xff]
        %v3805 = vld [vmem:[%s10 + $0x130] sm:$0xff]
        %v3806 = vld [vmem:[%s10 + $0x138] sm:$0xff]
        %v3807 = vld [vmem:[%s10 + $0x140] sm:$0xff]
        %v3808 = vld [vmem:[%s10 + $0x148] sm:$0xff]
        %v3809 = vld [vmem:[%s10 + $0x150] sm:$0xff]
        %v3810 = vld [vmem:[%s10 + $0x158] sm:$0xff]
        %v3811 = vld [vmem:[%s10 + $0x160] sm:$0xff]
        %v3812 = vld [vmem:[%s10 + $0x168] sm:$0xff]
        %v3813 = vld [vmem:[%s10 + $0x170] sm:$0xff]
        %v3814 = vld [vmem:[%s10 + $0x178] sm:$0xff]
        %v3815 = vld [vmem:[%s10 + $0x180] sm:$0xff]
        %v3816 = vld [vmem:[%s10 + $0x188] sm:$0xff]
        %v3817 = vld [vmem:[%s10 + $0x190] sm:$0xff]
        %v3818 = vld [vmem:[%s10 + $0x198] sm:$0xff]
        %v3819 = vld [vmem:[%s10 + $0x1a0] sm:$0xff]
        %v3820 = vld [vmem:[%s10 + $0x1a8] sm:$0xff]
        %v3821 = vld [vmem:[%s10 + $0x1b0] sm:$0xff]
        %v3822 = vld [vmem:[%s10 + $0x1b8] sm:$0xff]
        %v3823 = vld [vmem:[%s10 + $0x1c0] sm:$0xff]
        %v3824 = vld [vmem:[%s10 + $0x1c8] sm:$0xff]
        %v3825 = vld [vmem:[%s10 + $0x1d0] sm:$0xff]
        %v3826 = vld [vmem:[%s10 + $0x1d8] sm:$0xff]
        %v3827 = vld [vmem:[%s10 + $0x1e0] sm:$0xff]
        %v3828 = vld [vmem:[%s10 + $0x1e8] sm:$0xff]
        %v3829 = vld [vmem:[%s10 + $0x1f0] sm:$0xff]
        %v3830 = vld [vmem:[%s10 + $0x1f8] sm:$0xff]
        %v3831 = vld [vmem:[%s10 + $0x200] sm:$0xff]
        %v3832 = vld [vmem:[%s10 + $0x208] sm:$0xff]
        %v3833 = vld [vmem:[%s10 + $0x210] sm:$0xff]
        %v3834 = vld [vmem:[%s10 + $0x218] sm:$0xff]
        %v3835 = vld [vmem:[%s10 + $0x220] sm:$0xff]
        %v3836 = vld [vmem:[%s10 + $0x228] sm:$0xff]
        %v3837 = vld [vmem:[%s10 + $0x230] sm:$0xff]
        %v3838 = vld [vmem:[%s10 + $0x238] sm:$0xff]
        %v3839 = vld [vmem:[%s10 + $0x240] sm:$0xff]
        %v3840 = vld [vmem:[%s10 + $0x248] sm:$0xff]
        %v3841 = vld [vmem:[%s10 + $0x250] sm:$0xff]
        %v3842 = vld [vmem:[%s10 + $0x258] sm:$0xff]
        %v3843 = vld [vmem:[%s10 + $0x260] sm:$0xff]
        %v3844 = vld [vmem:[%s10 + $0x268] sm:$0xff]
        %v3845 = vld [vmem:[%s10 + $0x270] sm:$0xff]
        %v3846 = vld [vmem:[%s10 + $0x278] sm:$0xff]
        %v3847 = vld [vmem:[%s10 + $0x280] sm:$0xff]
        %v3848 = vld [vmem:[%s10 + $0x288] sm:$0xff]
        %v3849 = vld [vmem:[%s10 + $0x290] sm:$0xff]
        %v3850 = vld [vmem:[%s10 + $0x298] sm:$0xff]
        %v3851 = vld [vmem:[%s10 + $0x2a0] sm:$0xff]
        %v3852 = vld [vmem:[%s10 + $0x2a8] sm:$0xff]
        %v3853 = vld [vmem:[%s10 + $0x2b0] sm:$0xff]
        %v3854 = vld [vmem:[%s10 + $0x2b8] sm:$0xff]
        %v3855 = vld [vmem:[%s10 + $0x2c0] sm:$0xff]
        %v3856 = vld [vmem:[%s10 + $0x2c8] sm:$0xff]
        %v3857 = vld [vmem:[%s10 + $0x2d0] sm:$0xff]
        %v3858 = vld [vmem:[%s10 + $0x2d8] sm:$0xff]
        %v3859 = vld [vmem:[%s10 + $0x2e0] sm:$0xff]
        %v3860 = vld [vmem:[%s10 + $0x2e8] sm:$0xff]
        %v3861 = vld [vmem:[%s10 + $0x2f0] sm:$0xff]
        %v3862 = vld [vmem:[%s10 + $0x2f8] sm:$0xff]
        %v3863 = vld [vmem:[%s10 + $0x300] sm:$0xff]
        %v3864 = vld [vmem:[%s10 + $0x308] sm:$0xff]
        %v3865 = vld [vmem:[%s10 + $0x310] sm:$0xff]
        %v3866 = vld [vmem:[%s10 + $0x318] sm:$0xff]
        %v3867 = vld [vmem:[%s10 + $0x320] sm:$0xff]
        %v3868 = vld [vmem:[%s10 + $0x328] sm:$0xff]
        %v3869 = vld [vmem:[%s10 + $0x330] sm:$0xff]
        %v3870 = vld [vmem:[%s10 + $0x338] sm:$0xff]
        %v3871 = vld [vmem:[%s10 + $0x340] sm:$0xff]
        %v3872 = vld [vmem:[%s10 + $0x348] sm:$0xff]
        %v3873 = vld [vmem:[%s10 + $0x350] sm:$0xff]
        %v3874 = vld [vmem:[%s10 + $0x358] sm:$0xff]
        %v3875 = vld [vmem:[%s10 + $0x360] sm:$0xff]
        %v3876 = vld [vmem:[%s10 + $0x368] sm:$0xff]
        %v3877 = vld [vmem:[%s10 + $0x370] sm:$0xff]
        %v3878 = vld [vmem:[%s10 + $0x378] sm:$0xff]
        %v3879 = vld [vmem:[%s10 + $0x380] sm:$0xff]
        %v3880 = vld [vmem:[%s10 + $0x388] sm:$0xff]
        %v3881 = vld [vmem:[%s10 + $0x390] sm:$0xff]
        %v3882 = vld [vmem:[%s10 + $0x398] sm:$0xff]
        %v3883 = vld [vmem:[%s10 + $0x3a0] sm:$0xff]
        %v3884 = vld [vmem:[%s10 + $0x3a8] sm:$0xff]
        %v3885 = vld [vmem:[%s10 + $0x3b0] sm:$0xff]
        %v3886 = vld [vmem:[%s10 + $0x3b8] sm:$0xff]
        %v3887 = vld [vmem:[%s10 + $0x3c0] sm:$0xff]
        %v3888 = vld [vmem:[%s10 + $0x3c8] sm:$0xff]
        %v3889 = vld [vmem:[%s10 + $0x3d0] sm:$0xff]
        %v3890 = vld [vmem:[%s10 + $0x3d8] sm:$0xff]
        %v3891 = vld [vmem:[%s10 + $0x3e0] sm:$0xff]
        %v3892 = vld [vmem:[%s10 + $0x3e8] sm:$0xff]
        %v3893 = vld [vmem:[%s10 + $0x3f0] sm:$0xff]
        %v3894 = vld [vmem:[%s10 + $0x3f8] sm:$0xff]
        %v3895 = vld [vmem:[%s10 + $0x400] sm:$0xff]
        %v3896 = vld [vmem:[%s10 + $0x408] sm:$0xff]
        %v3897 = vld [vmem:[%s10 + $0x410] sm:$0xff]
        %v3898 = vld [vmem:[%s10 + $0x418] sm:$0xff]
        %v3899 = vld [vmem:[%s10 + $0x420] sm:$0xff]
        %v3900 = vld [vmem:[%s10 + $0x428] sm:$0xff]
        %v3901 = vld [vmem:[%s10 + $0x430] sm:$0xff]
        %v3902 = vld [vmem:[%s10 + $0x438] sm:$0xff]
        %v3903 = vld [vmem:[%s10 + $0x440] sm:$0xff]
        %v3904 = vld [vmem:[%s10 + $0x448] sm:$0xff]
        %v3905 = vld [vmem:[%s10 + $0x450] sm:$0xff]
        %v3906 = vld [vmem:[%s10 + $0x458] sm:$0xff]
        %v3907 = vld [vmem:[%s10 + $0x460] sm:$0xff]
        %v3908 = vld [vmem:[%s10 + $0x468] sm:$0xff]
        %v3909 = vld [vmem:[%s10 + $0x470] sm:$0xff]
        %v3910 = vld [vmem:[%s10 + $0x478] sm:$0xff]
        %v4055 = vunpack.c.l.b16 %v3767
        %v4056 = vunpack.c.h.b16 %v3767
        %v4057 = vunpack.c.l.b16 %v3768
        %v4058 = vunpack.c.h.b16 %v3768
        %v4059 = vunpack.c.l.b16 %v3769
        %v4060 = vunpack.c.h.b16 %v3769
        %v4061 = vunpack.c.l.b16 %v3770
        %v4062 = vunpack.c.h.b16 %v3770
        %v4063 = vunpack.c.l.b16 %v3771
        %v4064 = vunpack.c.h.b16 %v3771
        %v4065 = vunpack.c.l.b16 %v3772
        %v4066 = vunpack.c.h.b16 %v3772
        %v4067 = vunpack.c.l.b16 %v3773
        %v4068 = vunpack.c.h.b16 %v3773
        %v4069 = vunpack.c.l.b16 %v3774
        %v4070 = vunpack.c.h.b16 %v3774
        %v4071 = vunpack.c.l.b16 %v3775
        %v4072 = vunpack.c.h.b16 %v3775
        %v4073 = vunpack.c.l.b16 %v3776
        %v4074 = vunpack.c.h.b16 %v3776
        %v4075 = vunpack.c.l.b16 %v3777
        %v4076 = vunpack.c.h.b16 %v3777
        %v4077 = vunpack.c.l.b16 %v3778
        %v4078 = vunpack.c.h.b16 %v3778
        %v4079 = vunpack.c.l.b16 %v3779
        %v4080 = vunpack.c.h.b16 %v3779
        %v4081 = vunpack.c.l.b16 %v3780
        %v4082 = vunpack.c.h.b16 %v3780
        %v4083 = vunpack.c.l.b16 %v3781
        %v4084 = vunpack.c.h.b16 %v3781
        %v4085 = vunpack.c.l.b16 %v3782
        %v4086 = vunpack.c.h.b16 %v3782
        %v4087 = vunpack.c.l.b16 %v3783
        %v4088 = vunpack.c.h.b16 %v3783
        %v4089 = vunpack.c.l.b16 %v3784
        %v4090 = vunpack.c.h.b16 %v3784
        %v4091 = vunpack.c.l.b16 %v3785
        %v4092 = vunpack.c.h.b16 %v3785
        %v4093 = vunpack.c.l.b16 %v3786
        %v4094 = vunpack.c.h.b16 %v3786
        %v4095 = vunpack.c.l.b16 %v3787
        %v4096 = vunpack.c.h.b16 %v3787
        %v4097 = vunpack.c.l.b16 %v3788
        %v4098 = vunpack.c.h.b16 %v3788
        %v4099 = vunpack.c.l.b16 %v3789
        %v4100 = vunpack.c.h.b16 %v3789
        %v4101 = vunpack.c.l.b16 %v3790
        %v4102 = vunpack.c.h.b16 %v3790
        %v4103 = vunpack.c.l.b16 %v3791
        %v4104 = vunpack.c.h.b16 %v3791
        %v4105 = vunpack.c.l.b16 %v3792
        %v4106 = vunpack.c.h.b16 %v3792
        %v4107 = vunpack.c.l.b16 %v3793
        %v4108 = vunpack.c.h.b16 %v3793
        %v4109 = vunpack.c.l.b16 %v3794
        %v4110 = vunpack.c.h.b16 %v3794
        %v4111 = vunpack.c.l.b16 %v3795
        %v4112 = vunpack.c.h.b16 %v3795
        %v4113 = vunpack.c.l.b16 %v3796
        %v4114 = vunpack.c.h.b16 %v3796
        %v4115 = vunpack.c.l.b16 %v3797
        %v4116 = vunpack.c.h.b16 %v3797
        %v4117 = vunpack.c.l.b16 %v3798
        %v4118 = vunpack.c.h.b16 %v3798
        %v4119 = vunpack.c.l.b16 %v3799
        %v4120 = vunpack.c.h.b16 %v3799
        %v4121 = vunpack.c.l.b16 %v3800
        %v4122 = vunpack.c.h.b16 %v3800
        %v4123 = vunpack.c.l.b16 %v3801
        %v4124 = vunpack.c.h.b16 %v3801
        %v4125 = vunpack.c.l.b16 %v3802
        %v4126 = vunpack.c.h.b16 %v3802
        %v4127 = vunpack.c.l.b16 %v3803
        %v4128 = vunpack.c.h.b16 %v3803
        %v4129 = vunpack.c.l.b16 %v3804
        %v4130 = vunpack.c.h.b16 %v3804
        %v4131 = vunpack.c.l.b16 %v3805
        %v4132 = vunpack.c.h.b16 %v3805
        %v4133 = vunpack.c.l.b16 %v3806
        %v4134 = vunpack.c.h.b16 %v3806
        %v4135 = vunpack.c.l.b16 %v3807
        %v4136 = vunpack.c.h.b16 %v3807
        %v4137 = vunpack.c.l.b16 %v3808
        %v4138 = vunpack.c.h.b16 %v3808
        %v4139 = vunpack.c.l.b16 %v3809
        %v4140 = vunpack.c.h.b16 %v3809
        %v4141 = vunpack.c.l.b16 %v3810
        %v4142 = vunpack.c.h.b16 %v3810
        %v4143 = vunpack.c.l.b16 %v3811
        %v4144 = vunpack.c.h.b16 %v3811
        %v4145 = vunpack.c.l.b16 %v3812
        %v4146 = vunpack.c.h.b16 %v3812
        %v4147 = vunpack.c.l.b16 %v3813
        %v4148 = vunpack.c.h.b16 %v3813
        %v4149 = vunpack.c.l.b16 %v3814
        %v4150 = vunpack.c.h.b16 %v3814
        %v4151 = vunpack.c.l.b16 %v3815
        %v4152 = vunpack.c.h.b16 %v3815
        %v4153 = vunpack.c.l.b16 %v3816
        %v4154 = vunpack.c.h.b16 %v3816
        %v4155 = vunpack.c.l.b16 %v3817
        %v4156 = vunpack.c.h.b16 %v3817
        %v4157 = vunpack.c.l.b16 %v3818
        %v4158 = vunpack.c.h.b16 %v3818
        %v4159 = vunpack.c.l.b16 %v3819
        %v4160 = vunpack.c.h.b16 %v3819
        %v4161 = vunpack.c.l.b16 %v3820
        %v4162 = vunpack.c.h.b16 %v3820
        %v4163 = vunpack.c.l.b16 %v3821
        %v4164 = vunpack.c.h.b16 %v3821
        %v4165 = vunpack.c.l.b16 %v3822
        %v4166 = vunpack.c.h.b16 %v3822
        %v4167 = vunpack.c.l.b16 %v3823
        %v4168 = vunpack.c.h.b16 %v3823
        %v4169 = vunpack.c.l.b16 %v3824
        %v4170 = vunpack.c.h.b16 %v3824
        %v4171 = vunpack.c.l.b16 %v3825
        %v4172 = vunpack.c.h.b16 %v3825
        %v4173 = vunpack.c.l.b16 %v3826
        %v4174 = vunpack.c.h.b16 %v3826
        %v4175 = vunpack.c.l.b16 %v3827
        %v4176 = vunpack.c.h.b16 %v3827
        %v4177 = vunpack.c.l.b16 %v3828
        %v4178 = vunpack.c.h.b16 %v3828
        %v4179 = vunpack.c.l.b16 %v3829
        %v4180 = vunpack.c.h.b16 %v3829
        %v4181 = vunpack.c.l.b16 %v3830
        %v4182 = vunpack.c.h.b16 %v3830
        %v4183 = vunpack.c.l.b16 %v3831
        %v4184 = vunpack.c.h.b16 %v3831
        %v4185 = vunpack.c.l.b16 %v3832
        %v4186 = vunpack.c.h.b16 %v3832
        %v4187 = vunpack.c.l.b16 %v3833
        %v4188 = vunpack.c.h.b16 %v3833
        %v4189 = vunpack.c.l.b16 %v3834
        %v4190 = vunpack.c.h.b16 %v3834
        %v4191 = vunpack.c.l.b16 %v3835
        %v4192 = vunpack.c.h.b16 %v3835
        %v4193 = vunpack.c.l.b16 %v3836
        %v4194 = vunpack.c.h.b16 %v3836
        %v4195 = vunpack.c.l.b16 %v3837
        %v4196 = vunpack.c.h.b16 %v3837
        %v4197 = vunpack.c.l.b16 %v3838
        %v4198 = vunpack.c.h.b16 %v3838
        %v4199 = vunpack.c.l.b16 %v3839
        %v4200 = vunpack.c.h.b16 %v3839
        %v4201 = vunpack.c.l.b16 %v3840
        %v4202 = vunpack.c.h.b16 %v3840
        %v4203 = vunpack.c.l.b16 %v3841
        %v4204 = vunpack.c.h.b16 %v3841
        %v4205 = vunpack.c.l.b16 %v3842
        %v4206 = vunpack.c.h.b16 %v3842
        %v4207 = vunpack.c.l.b16 %v3843
        %v4208 = vunpack.c.h.b16 %v3843
        %v4209 = vunpack.c.l.b16 %v3844
        %v4210 = vunpack.c.h.b16 %v3844
        %v4211 = vunpack.c.l.b16 %v3845
        %v4212 = vunpack.c.h.b16 %v3845
        %v4213 = vunpack.c.l.b16 %v3846
        %v4214 = vunpack.c.h.b16 %v3846
        %v4215 = vunpack.c.l.b16 %v3847
        %v4216 = vunpack.c.h.b16 %v3847
        %v4217 = vunpack.c.l.b16 %v3848
        %v4218 = vunpack.c.h.b16 %v3848
        %v4219 = vunpack.c.l.b16 %v3849
        %v4220 = vunpack.c.h.b16 %v3849
        %v4221 = vunpack.c.l.b16 %v3850
        %v4222 = vunpack.c.h.b16 %v3850
        %v4223 = vunpack.c.l.b16 %v3851
        %v4224 = vunpack.c.h.b16 %v3851
        %v4225 = vunpack.c.l.b16 %v3852
        %v4226 = vunpack.c.h.b16 %v3852
        %v4227 = vunpack.c.l.b16 %v3853
        %v4228 = vunpack.c.h.b16 %v3853
        %v4229 = vunpack.c.l.b16 %v3854
        %v4230 = vunpack.c.h.b16 %v3854
        %v4231 = vunpack.c.l.b16 %v3855
        %v4232 = vunpack.c.h.b16 %v3855
        %v4233 = vunpack.c.l.b16 %v3856
        %v4234 = vunpack.c.h.b16 %v3856
        %v4235 = vunpack.c.l.b16 %v3857
        %v4236 = vunpack.c.h.b16 %v3857
        %v4237 = vunpack.c.l.b16 %v3858
        %v4238 = vunpack.c.h.b16 %v3858
        %v4239 = vunpack.c.l.b16 %v3859
        %v4240 = vunpack.c.h.b16 %v3859
        %v4241 = vunpack.c.l.b16 %v3860
        %v4242 = vunpack.c.h.b16 %v3860
        %v4243 = vunpack.c.l.b16 %v3861
        %v4244 = vunpack.c.h.b16 %v3861
        %v4245 = vunpack.c.l.b16 %v3862
        %v4246 = vunpack.c.h.b16 %v3862
        %v4247 = vunpack.c.l.b16 %v3863
        %v4248 = vunpack.c.h.b16 %v3863
        %v4249 = vunpack.c.l.b16 %v3864
        %v4250 = vunpack.c.h.b16 %v3864
        %v4251 = vunpack.c.l.b16 %v3865
        %v4252 = vunpack.c.h.b16 %v3865
        %v4253 = vunpack.c.l.b16 %v3866
        %v4254 = vunpack.c.h.b16 %v3866
        %v4255 = vunpack.c.l.b16 %v3867
        %v4256 = vunpack.c.h.b16 %v3867
        %v4257 = vunpack.c.l.b16 %v3868
        %v4258 = vunpack.c.h.b16 %v3868
        %v4259 = vunpack.c.l.b16 %v3869
        %v4260 = vunpack.c.h.b16 %v3869
        %v4261 = vunpack.c.l.b16 %v3870
        %v4262 = vunpack.c.h.b16 %v3870
        %v4263 = vunpack.c.l.b16 %v3871
        %v4264 = vunpack.c.h.b16 %v3871
        %v4265 = vunpack.c.l.b16 %v3872
        %v4266 = vunpack.c.h.b16 %v3872
        %v4267 = vunpack.c.l.b16 %v3873
        %v4268 = vunpack.c.h.b16 %v3873
        %v4269 = vunpack.c.l.b16 %v3874
        %v4270 = vunpack.c.h.b16 %v3874
        %v4271 = vunpack.c.l.b16 %v3875
        %v4272 = vunpack.c.h.b16 %v3875
        %v4273 = vunpack.c.l.b16 %v3876
        %v4274 = vunpack.c.h.b16 %v3876
        %v4275 = vunpack.c.l.b16 %v3877
        %v4276 = vunpack.c.h.b16 %v3877
        %v4277 = vunpack.c.l.b16 %v3878
        %v4278 = vunpack.c.h.b16 %v3878
        %v4279 = vunpack.c.l.b16 %v3879
        %v4280 = vunpack.c.h.b16 %v3879
        %v4281 = vunpack.c.l.b16 %v3880
        %v4282 = vunpack.c.h.b16 %v3880
        %v4283 = vunpack.c.l.b16 %v3881
        %v4284 = vunpack.c.h.b16 %v3881
        %v4285 = vunpack.c.l.b16 %v3882
        %v4286 = vunpack.c.h.b16 %v3882
        %v4287 = vunpack.c.l.b16 %v3883
        %v4288 = vunpack.c.h.b16 %v3883
        %v4289 = vunpack.c.l.b16 %v3884
        %v4290 = vunpack.c.h.b16 %v3884
        %v4291 = vunpack.c.l.b16 %v3885
        %v4292 = vunpack.c.h.b16 %v3885
        %v4293 = vunpack.c.l.b16 %v3886
        %v4294 = vunpack.c.h.b16 %v3886
        %v4295 = vunpack.c.l.b16 %v3887
        %v4296 = vunpack.c.h.b16 %v3887
        %v4297 = vunpack.c.l.b16 %v3888
        %v4298 = vunpack.c.h.b16 %v3888
        %v4299 = vunpack.c.l.b16 %v3889
        %v4300 = vunpack.c.h.b16 %v3889
        %v4301 = vunpack.c.l.b16 %v3890
        %v4302 = vunpack.c.h.b16 %v3890
        %v4303 = vunpack.c.l.b16 %v3891
        %v4304 = vunpack.c.h.b16 %v3891
        %v4305 = vunpack.c.l.b16 %v3892
        %v4306 = vunpack.c.h.b16 %v3892
        %v4307 = vunpack.c.l.b16 %v3893
        %v4308 = vunpack.c.h.b16 %v3893
        %v4309 = vunpack.c.l.b16 %v3894
        %v4310 = vunpack.c.h.b16 %v3894
        %v4311 = vunpack.c.l.b16 %v3895
        %v4312 = vunpack.c.h.b16 %v3895
        %v4313 = vunpack.c.l.b16 %v3896
        %v4314 = vunpack.c.h.b16 %v3896
        %v4315 = vunpack.c.l.b16 %v3897
        %v4316 = vunpack.c.h.b16 %v3897
        %v4317 = vunpack.c.l.b16 %v3898
        %v4318 = vunpack.c.h.b16 %v3898
        %v4319 = vunpack.c.l.b16 %v3899
        %v4320 = vunpack.c.h.b16 %v3899
        %v4321 = vunpack.c.l.b16 %v3900
        %v4322 = vunpack.c.h.b16 %v3900
        %v4323 = vunpack.c.l.b16 %v3901
        %v4324 = vunpack.c.h.b16 %v3901
        %v4325 = vunpack.c.l.b16 %v3902
        %v4326 = vunpack.c.h.b16 %v3902
        %v4327 = vunpack.c.l.b16 %v3903
        %v4328 = vunpack.c.h.b16 %v3903
        %v4329 = vunpack.c.l.b16 %v3904
        %v4330 = vunpack.c.h.b16 %v3904
        %v4331 = vunpack.c.l.b16 %v3905
        %v4332 = vunpack.c.h.b16 %v3905
        %v4333 = vunpack.c.l.b16 %v3906
        %v4334 = vunpack.c.h.b16 %v3906
        %v4335 = vunpack.c.l.b16 %v3907
        %v4336 = vunpack.c.h.b16 %v3907
        %v4337 = vunpack.c.l.b16 %v3908
        %v4338 = vunpack.c.h.b16 %v3908
        %v4339 = vunpack.c.l.b16 %v3909
        %v4340 = vunpack.c.h.b16 %v3909
        %v4341 = vunpack.c.l.b16 %v3910
        %v4342 = vunpack.c.h.b16 %v3910
        %v4343 = vpack.c.b16 %v4067, %v4055
        %v4344 = vpack.c.b16 %v4068, %v4056
        %v4345 = vpack.c.b16 %v4069, %v4057
        %v4346 = vpack.c.b16 %v4070, %v4058
        %v4347 = vpack.c.b16 %v4071, %v4059
        %v4348 = vpack.c.b16 %v4072, %v4060
        %v4349 = vpack.c.b16 %v4073, %v4061
        %v4350 = vpack.c.b16 %v4074, %v4062
        %v4351 = vpack.c.b16 %v4075, %v4063
        %v4352 = vpack.c.b16 %v4076, %v4064
        %v4353 = vpack.c.b16 %v4077, %v4065
        %v4354 = vpack.c.b16 %v4078, %v4066
        %v4355 = vpack.c.b16 %v4091, %v4079
        %v4356 = vpack.c.b16 %v4092, %v4080
        %v4357 = vpack.c.b16 %v4093, %v4081
        %v4358 = vpack.c.b16 %v4094, %v4082
        %v4359 = vpack.c.b16 %v4095, %v4083
        %v4360 = vpack.c.b16 %v4096, %v4084
        %v4361 = vpack.c.b16 %v4097, %v4085
        %v4362 = vpack.c.b16 %v4098, %v4086
        %v4363 = vpack.c.b16 %v4099, %v4087
        %v4364 = vpack.c.b16 %v4100, %v4088
        %v4365 = vpack.c.b16 %v4101, %v4089
        %v4366 = vpack.c.b16 %v4102, %v4090
        %v4367 = vpack.c.b16 %v4115, %v4103
        %v4368 = vpack.c.b16 %v4116, %v4104
        %v4369 = vpack.c.b16 %v4117, %v4105
        %v4370 = vpack.c.b16 %v4118, %v4106
        %v4371 = vpack.c.b16 %v4119, %v4107
        %v4372 = vpack.c.b16 %v4120, %v4108
        %v4373 = vpack.c.b16 %v4121, %v4109
        %v4374 = vpack.c.b16 %v4122, %v4110
        %v4375 = vpack.c.b16 %v4123, %v4111
        %v4376 = vpack.c.b16 %v4124, %v4112
        %v4377 = vpack.c.b16 %v4125, %v4113
        %v4378 = vpack.c.b16 %v4126, %v4114
        %v4379 = vpack.c.b16 %v4139, %v4127
        %v4380 = vpack.c.b16 %v4140, %v4128
        %v4381 = vpack.c.b16 %v4141, %v4129
        %v4382 = vpack.c.b16 %v4142, %v4130
        %v4383 = vpack.c.b16 %v4143, %v4131
        %v4384 = vpack.c.b16 %v4144, %v4132
        %v4385 = vpack.c.b16 %v4145, %v4133
        %v4386 = vpack.c.b16 %v4146, %v4134
        %v4387 = vpack.c.b16 %v4147, %v4135
        %v4388 = vpack.c.b16 %v4148, %v4136
        %v4389 = vpack.c.b16 %v4149, %v4137
        %v4390 = vpack.c.b16 %v4150, %v4138
        %v4391 = vpack.c.b16 %v4163, %v4151
        %v4392 = vpack.c.b16 %v4164, %v4152
        %v4393 = vpack.c.b16 %v4165, %v4153
        %v4394 = vpack.c.b16 %v4166, %v4154
        %v4395 = vpack.c.b16 %v4167, %v4155
        %v4396 = vpack.c.b16 %v4168, %v4156
        %v4397 = vpack.c.b16 %v4169, %v4157
        %v4398 = vpack.c.b16 %v4170, %v4158
        %v4399 = vpack.c.b16 %v4171, %v4159
        %v4400 = vpack.c.b16 %v4172, %v4160
        %v4401 = vpack.c.b16 %v4173, %v4161
        %v4402 = vpack.c.b16 %v4174, %v4162
        %v4403 = vpack.c.b16 %v4187, %v4175
        %v4404 = vpack.c.b16 %v4188, %v4176
        %v4405 = vpack.c.b16 %v4189, %v4177
        %v4406 = vpack.c.b16 %v4190, %v4178
        %v4407 = vpack.c.b16 %v4191, %v4179
        %v4408 = vpack.c.b16 %v4192, %v4180
        %v4409 = vpack.c.b16 %v4193, %v4181
        %v4410 = vpack.c.b16 %v4194, %v4182
        %v4411 = vpack.c.b16 %v4195, %v4183
        %v4412 = vpack.c.b16 %v4196, %v4184
        %v4413 = vpack.c.b16 %v4197, %v4185
        %v4414 = vpack.c.b16 %v4198, %v4186
        %v4415 = vpack.c.b16 %v4211, %v4199
        %v4416 = vpack.c.b16 %v4212, %v4200
        %v4417 = vpack.c.b16 %v4213, %v4201
        %v4418 = vpack.c.b16 %v4214, %v4202
        %v4419 = vpack.c.b16 %v4215, %v4203
        %v4420 = vpack.c.b16 %v4216, %v4204
        %v4421 = vpack.c.b16 %v4217, %v4205
        %v4422 = vpack.c.b16 %v4218, %v4206
        %v4423 = vpack.c.b16 %v4219, %v4207
        %v4424 = vpack.c.b16 %v4220, %v4208
        %v4425 = vpack.c.b16 %v4221, %v4209
        %v4426 = vpack.c.b16 %v4222, %v4210
        %v4427 = vpack.c.b16 %v4235, %v4223
        %v4428 = vpack.c.b16 %v4236, %v4224
        %v4429 = vpack.c.b16 %v4237, %v4225
        %v4430 = vpack.c.b16 %v4238, %v4226
        %v4431 = vpack.c.b16 %v4239, %v4227
        %v4432 = vpack.c.b16 %v4240, %v4228
        %v4433 = vpack.c.b16 %v4241, %v4229
        %v4434 = vpack.c.b16 %v4242, %v4230
        %v4435 = vpack.c.b16 %v4243, %v4231
        %v4436 = vpack.c.b16 %v4244, %v4232
        %v4437 = vpack.c.b16 %v4245, %v4233
        %v4438 = vpack.c.b16 %v4246, %v4234
        %v4439 = vpack.c.b16 %v4259, %v4247
        %v4440 = vpack.c.b16 %v4260, %v4248
        %v4441 = vpack.c.b16 %v4261, %v4249
        %v4442 = vpack.c.b16 %v4262, %v4250
        %v4443 = vpack.c.b16 %v4263, %v4251
        %v4444 = vpack.c.b16 %v4264, %v4252
        %v4445 = vpack.c.b16 %v4265, %v4253
        %v4446 = vpack.c.b16 %v4266, %v4254
        %v4447 = vpack.c.b16 %v4267, %v4255
        %v4448 = vpack.c.b16 %v4268, %v4256
        %v4449 = vpack.c.b16 %v4269, %v4257
        %v4450 = vpack.c.b16 %v4270, %v4258
        %v4451 = vpack.c.b16 %v4283, %v4271
        %v4452 = vpack.c.b16 %v4284, %v4272
        %v4453 = vpack.c.b16 %v4285, %v4273
        %v4454 = vpack.c.b16 %v4286, %v4274
        %v4455 = vpack.c.b16 %v4287, %v4275
        %v4456 = vpack.c.b16 %v4288, %v4276
        %v4457 = vpack.c.b16 %v4289, %v4277
        %v4458 = vpack.c.b16 %v4290, %v4278
        %v4459 = vpack.c.b16 %v4291, %v4279
        %v4460 = vpack.c.b16 %v4292, %v4280
        %v4461 = vpack.c.b16 %v4293, %v4281
        %v4462 = vpack.c.b16 %v4294, %v4282
        %v4463 = vpack.c.b16 %v4307, %v4295
        %v4464 = vpack.c.b16 %v4308, %v4296
        %v4465 = vpack.c.b16 %v4309, %v4297
        %v4466 = vpack.c.b16 %v4310, %v4298
        %v4467 = vpack.c.b16 %v4311, %v4299
        %v4468 = vpack.c.b16 %v4312, %v4300
        %v4469 = vpack.c.b16 %v4313, %v4301
        %v4470 = vpack.c.b16 %v4314, %v4302
        %v4471 = vpack.c.b16 %v4315, %v4303
        %v4472 = vpack.c.b16 %v4316, %v4304
        %v4473 = vpack.c.b16 %v4317, %v4305
        %v4474 = vpack.c.b16 %v4318, %v4306
        %v4475 = vpack.c.b16 %v4331, %v4319
        %v4476 = vpack.c.b16 %v4332, %v4320
        %v4477 = vpack.c.b16 %v4333, %v4321
        %v4478 = vpack.c.b16 %v4334, %v4322
        %v4479 = vpack.c.b16 %v4335, %v4323
        %v4480 = vpack.c.b16 %v4336, %v4324
        %v4481 = vpack.c.b16 %v4337, %v4325
        %v4482 = vpack.c.b16 %v4338, %v4326
        %v4483 = vpack.c.b16 %v4339, %v4327
        %v4484 = vpack.c.b16 %v4340, %v4328
        %v4485 = vpack.c.b16 %v4341, %v4329
        %v4486 = vpack.c.b16 %v4342, %v4330
        %v4632 = vsel %vm529, %v3766, 0
        %4634 = vmatpush.bf16.msra.mxu0 %v4427
        %4635 = vmatpush.bf16.msra.mxu0 %v4415
        %4636 = vmatpush.bf16.msra.mxu0 %v4403
        %4637 = vmatpush.bf16.msra.mxu0 %v4391
        %4638 = vmatpush.bf16.msra.mxu0 %v4379
        %4639 = vmatpush.bf16.msra.mxu0 %v4367
        %4640 = vmatpush.bf16.msra.mxu0 %v4355
        %4641 = vmatpush.bf16.msra.mxu0 %v4343
        %4642 = vmatmul.bf16.gmra.mxu0 %v3765
        %v4643 = vpop.f32.mrf.mxu0
        %v4644 = vadd.f32 0.0, %v4643
        %v4645 = vpop.f32.mrf.mxu0
        %4646 = vdwg.mxu0
        %4647 = vmatpush.bf16.msra.mxu0 0
        %4648 = vmatpush.bf16.msra.mxu0 0
        %4649 = vmatpush.bf16.msra.mxu0 0
        %4650 = vmatpush.bf16.msra.mxu0 0
        %4651 = vmatpush.bf16.msra.mxu0 %v4475
        %4652 = vmatpush.bf16.msra.mxu0 %v4463
        %4653 = vmatpush.bf16.msra.mxu0 %v4451
        %4654 = vmatpush.bf16.msra.mxu0 %v4439
        %4655 = vmatmul.bf16.gmra.mxu0 %v4632
        %v4656 = vpop.f32.mrf.mxu0
        %v4657 = vadd.f32 %v4644, %v4656
        %v4658 = vpop.f32.mrf.mxu0
        %4659 = vdwg.mxu0
        %4660 = vmatpush.bf16.msra.mxu0 %v4428
        %4661 = vmatpush.bf16.msra.mxu0 %v4416
        %4662 = vmatpush.bf16.msra.mxu0 %v4404
        %4663 = vmatpush.bf16.msra.mxu0 %v4392
        %4664 = vmatpush.bf16.msra.mxu0 %v4380
        %4665 = vmatpush.bf16.msra.mxu0 %v4368
        %4666 = vmatpush.bf16.msra.mxu0 %v4356
        %4667 = vmatpush.bf16.msra.mxu0 %v4344
        %4668 = vmatmul.bf16.gmra.mxu0 %v3765
        %v4669 = vpop.f32.mrf.mxu0
        %v4670 = vadd.f32 0.0, %v4669
        %v4671 = vpop.f32.mrf.mxu0
        %4672 = vdwg.mxu0
        %4673 = vmatpush.bf16.msra.mxu0 0
        %4674 = vmatpush.bf16.msra.mxu0 0
        %4675 = vmatpush.bf16.msra.mxu0 0
        %4676 = vmatpush.bf16.msra.mxu0 0
        %4677 = vmatpush.bf16.msra.mxu0 %v4476
        %4678 = vmatpush.bf16.msra.mxu0 %v4464
        %4679 = vmatpush.bf16.msra.mxu0 %v4452
        %4680 = vmatpush.bf16.msra.mxu0 %v4440
        %4681 = vmatmul.bf16.gmra.mxu0 %v4632
        %v4682 = vpop.f32.mrf.mxu0
        %v4683 = vadd.f32 %v4670, %v4682
        %v4684 = vpop.f32.mrf.mxu0
        %4685 = vdwg.mxu0
        %4686 = vmatpush.bf16.msra.mxu0 %v4429
        %4687 = vmatpush.bf16.msra.mxu0 %v4417
        %4688 = vmatpush.bf16.msra.mxu0 %v4405
        %4689 = vmatpush.bf16.msra.mxu0 %v4393
        %4690 = vmatpush.bf16.msra.mxu0 %v4381
        %4691 = vmatpush.bf16.msra.mxu0 %v4369
        %4692 = vmatpush.bf16.msra.mxu0 %v4357
        %4693 = vmatpush.bf16.msra.mxu0 %v4345
        %4694 = vmatmul.bf16.gmra.mxu0 %v3765
        %v4695 = vpop.f32.mrf.mxu0
        %v4696 = vadd.f32 0.0, %v4695
        %v4697 = vpop.f32.mrf.mxu0
        %4698 = vdwg.mxu0
        %4699 = vmatpush.bf16.msra.mxu0 0
        %4700 = vmatpush.bf16.msra.mxu0 0
        %4701 = vmatpush.bf16.msra.mxu0 0
        %4702 = vmatpush.bf16.msra.mxu0 0
        %4703 = vmatpush.bf16.msra.mxu0 %v4477
        %4704 = vmatpush.bf16.msra.mxu0 %v4465
        %4705 = vmatpush.bf16.msra.mxu0 %v4453
        %4706 = vmatpush.bf16.msra.mxu0 %v4441
        %4707 = vmatmul.bf16.gmra.mxu0 %v4632
        %v4708 = vpop.f32.mrf.mxu0
        %v4709 = vadd.f32 %v4696, %v4708
        %v4710 = vpop.f32.mrf.mxu0
        %4711 = vdwg.mxu0
        %4712 = vmatpush.bf16.msra.mxu0 %v4430
        %4713 = vmatpush.bf16.msra.mxu0 %v4418
        %4714 = vmatpush.bf16.msra.mxu0 %v4406
        %4715 = vmatpush.bf16.msra.mxu0 %v4394
        %4716 = vmatpush.bf16.msra.mxu0 %v4382
        %4717 = vmatpush.bf16.msra.mxu0 %v4370
        %4718 = vmatpush.bf16.msra.mxu0 %v4358
        %4719 = vmatpush.bf16.msra.mxu0 %v4346
        %4720 = vmatmul.bf16.gmra.mxu0 %v3765
        %v4721 = vpop.f32.mrf.mxu0
        %v4722 = vadd.f32 0.0, %v4721
        %v4723 = vpop.f32.mrf.mxu0
        %4724 = vdwg.mxu0
        %4725 = vmatpush.bf16.msra.mxu0 0
        %4726 = vmatpush.bf16.msra.mxu0 0
        %4727 = vmatpush.bf16.msra.mxu0 0
        %4728 = vmatpush.bf16.msra.mxu0 0
        %4729 = vmatpush.bf16.msra.mxu0 %v4478
        %4730 = vmatpush.bf16.msra.mxu0 %v4466
        %4731 = vmatpush.bf16.msra.mxu0 %v4454
        %4732 = vmatpush.bf16.msra.mxu0 %v4442
        %4733 = vmatmul.bf16.gmra.mxu0 %v4632
        %v4734 = vpop.f32.mrf.mxu0
        %v4735 = vadd.f32 %v4722, %v4734
        %v4736 = vpop.f32.mrf.mxu0
        %4737 = vdwg.mxu0
        %4738 = vmatpush.bf16.msra.mxu0 %v4431
        %4739 = vmatpush.bf16.msra.mxu0 %v4419
        %4740 = vmatpush.bf16.msra.mxu0 %v4407
        %4741 = vmatpush.bf16.msra.mxu0 %v4395
        %4742 = vmatpush.bf16.msra.mxu0 %v4383
        %4743 = vmatpush.bf16.msra.mxu0 %v4371
        %4744 = vmatpush.bf16.msra.mxu0 %v4359
        %4745 = vmatpush.bf16.msra.mxu0 %v4347
        %4746 = vmatmul.bf16.gmra.mxu0 %v3765
        %v4747 = vpop.f32.mrf.mxu0
        %v4748 = vadd.f32 0.0, %v4747
        %v4749 = vpop.f32.mrf.mxu0
        %4750 = vdwg.mxu0
        %4751 = vmatpush.bf16.msra.mxu0 0
        %4752 = vmatpush.bf16.msra.mxu0 0
        %4753 = vmatpush.bf16.msra.mxu0 0
        %4754 = vmatpush.bf16.msra.mxu0 0
        %4755 = vmatpush.bf16.msra.mxu0 %v4479
        %4756 = vmatpush.bf16.msra.mxu0 %v4467
        %4757 = vmatpush.bf16.msra.mxu0 %v4455
        %4758 = vmatpush.bf16.msra.mxu0 %v4443
        %4759 = vmatmul.bf16.gmra.mxu0 %v4632
        %v4760 = vpop.f32.mrf.mxu0
        %v4761 = vadd.f32 %v4748, %v4760
        %v4762 = vpop.f32.mrf.mxu0
        %4763 = vdwg.mxu0
        %4764 = vmatpush.bf16.msra.mxu0 %v4432
        %4765 = vmatpush.bf16.msra.mxu0 %v4420
        %4766 = vmatpush.bf16.msra.mxu0 %v4408
        %4767 = vmatpush.bf16.msra.mxu0 %v4396
        %4768 = vmatpush.bf16.msra.mxu0 %v4384
        %4769 = vmatpush.bf16.msra.mxu0 %v4372
        %4770 = vmatpush.bf16.msra.mxu0 %v4360
        %4771 = vmatpush.bf16.msra.mxu0 %v4348
        %4772 = vmatmul.bf16.gmra.mxu0 %v3765
        %v4773 = vpop.f32.mrf.mxu0
        %v4774 = vadd.f32 0.0, %v4773
        %v4775 = vpop.f32.mrf.mxu0
        %4776 = vdwg.mxu0
        %4777 = vmatpush.bf16.msra.mxu0 0
        %4778 = vmatpush.bf16.msra.mxu0 0
        %4779 = vmatpush.bf16.msra.mxu0 0
        %4780 = vmatpush.bf16.msra.mxu0 0
        %4781 = vmatpush.bf16.msra.mxu0 %v4480
        %4782 = vmatpush.bf16.msra.mxu0 %v4468
        %4783 = vmatpush.bf16.msra.mxu0 %v4456
        %4784 = vmatpush.bf16.msra.mxu0 %v4444
        %4785 = vmatmul.bf16.gmra.mxu0 %v4632
        %v4786 = vpop.f32.mrf.mxu0
        %v4787 = vadd.f32 %v4774, %v4786
        %v4788 = vpop.f32.mrf.mxu0
        %4789 = vdwg.mxu0
        %4790 = vmatpush.bf16.msra.mxu0 %v4433
        %4791 = vmatpush.bf16.msra.mxu0 %v4421
        %4792 = vmatpush.bf16.msra.mxu0 %v4409
        %4793 = vmatpush.bf16.msra.mxu0 %v4397
        %4794 = vmatpush.bf16.msra.mxu0 %v4385
        %4795 = vmatpush.bf16.msra.mxu0 %v4373
        %4796 = vmatpush.bf16.msra.mxu0 %v4361
        %4797 = vmatpush.bf16.msra.mxu0 %v4349
        %4798 = vmatmul.bf16.gmra.mxu0 %v3765
        %v4799 = vpop.f32.mrf.mxu0
        %v4800 = vadd.f32 0.0, %v4799
        %v4801 = vpop.f32.mrf.mxu0
        %4802 = vdwg.mxu0
        %4803 = vmatpush.bf16.msra.mxu0 0
        %4804 = vmatpush.bf16.msra.mxu0 0
        %4805 = vmatpush.bf16.msra.mxu0 0
        %4806 = vmatpush.bf16.msra.mxu0 0
        %4807 = vmatpush.bf16.msra.mxu0 %v4481
        %4808 = vmatpush.bf16.msra.mxu0 %v4469
        %4809 = vmatpush.bf16.msra.mxu0 %v4457
        %4810 = vmatpush.bf16.msra.mxu0 %v4445
        %4811 = vmatmul.bf16.gmra.mxu0 %v4632
        %v4812 = vpop.f32.mrf.mxu0
        %v4813 = vadd.f32 %v4800, %v4812
        %v4814 = vpop.f32.mrf.mxu0
        %4815 = vdwg.mxu0
        %4816 = vmatpush.bf16.msra.mxu0 %v4434
        %4817 = vmatpush.bf16.msra.mxu0 %v4422
        %4818 = vmatpush.bf16.msra.mxu0 %v4410
        %4819 = vmatpush.bf16.msra.mxu0 %v4398
        %4820 = vmatpush.bf16.msra.mxu0 %v4386
        %4821 = vmatpush.bf16.msra.mxu0 %v4374
        %4822 = vmatpush.bf16.msra.mxu0 %v4362
        %4823 = vmatpush.bf16.msra.mxu0 %v4350
        %4824 = vmatmul.bf16.gmra.mxu0 %v3765
        %v4825 = vpop.f32.mrf.mxu0
        %v4826 = vadd.f32 0.0, %v4825
        %v4827 = vpop.f32.mrf.mxu0
        %4828 = vdwg.mxu0
        %4829 = vmatpush.bf16.msra.mxu0 0
        %4830 = vmatpush.bf16.msra.mxu0 0
        %4831 = vmatpush.bf16.msra.mxu0 0
        %4832 = vmatpush.bf16.msra.mxu0 0
        %4833 = vmatpush.bf16.msra.mxu0 %v4482
        %4834 = vmatpush.bf16.msra.mxu0 %v4470
        %4835 = vmatpush.bf16.msra.mxu0 %v4458
        %4836 = vmatpush.bf16.msra.mxu0 %v4446
        %4837 = vmatmul.bf16.gmra.mxu0 %v4632
        %v4838 = vpop.f32.mrf.mxu0
        %v4839 = vadd.f32 %v4826, %v4838
        %v4840 = vpop.f32.mrf.mxu0
        %4841 = vdwg.mxu0
        %4842 = vmatpush.bf16.msra.mxu0 %v4435
        %4843 = vmatpush.bf16.msra.mxu0 %v4423
        %4844 = vmatpush.bf16.msra.mxu0 %v4411
        %4845 = vmatpush.bf16.msra.mxu0 %v4399
        %4846 = vmatpush.bf16.msra.mxu0 %v4387
        %4847 = vmatpush.bf16.msra.mxu0 %v4375
        %4848 = vmatpush.bf16.msra.mxu0 %v4363
        %4849 = vmatpush.bf16.msra.mxu0 %v4351
        %4850 = vmatmul.bf16.gmra.mxu0 %v3765
        %v4851 = vpop.f32.mrf.mxu0
        %v4852 = vadd.f32 0.0, %v4851
        %v4853 = vpop.f32.mrf.mxu0
        %4854 = vdwg.mxu0
        %4855 = vmatpush.bf16.msra.mxu0 0
        %4856 = vmatpush.bf16.msra.mxu0 0
        %4857 = vmatpush.bf16.msra.mxu0 0
        %4858 = vmatpush.bf16.msra.mxu0 0
        %4859 = vmatpush.bf16.msra.mxu0 %v4483
        %4860 = vmatpush.bf16.msra.mxu0 %v4471
        %4861 = vmatpush.bf16.msra.mxu0 %v4459
        %4862 = vmatpush.bf16.msra.mxu0 %v4447
        %4863 = vmatmul.bf16.gmra.mxu0 %v4632
        %v4864 = vpop.f32.mrf.mxu0
        %v4865 = vadd.f32 %v4852, %v4864
        %v4866 = vpop.f32.mrf.mxu0
        %4867 = vdwg.mxu0
        %4868 = vmatpush.bf16.msra.mxu0 %v4436
        %4869 = vmatpush.bf16.msra.mxu0 %v4424
        %4870 = vmatpush.bf16.msra.mxu0 %v4412
        %4871 = vmatpush.bf16.msra.mxu0 %v4400
        %4872 = vmatpush.bf16.msra.mxu0 %v4388
        %4873 = vmatpush.bf16.msra.mxu0 %v4376
        %4874 = vmatpush.bf16.msra.mxu0 %v4364
        %4875 = vmatpush.bf16.msra.mxu0 %v4352
        %4876 = vmatmul.bf16.gmra.mxu0 %v3765
        %v4877 = vpop.f32.mrf.mxu0
        %v4878 = vadd.f32 0.0, %v4877
        %v4879 = vpop.f32.mrf.mxu0
        %4880 = vdwg.mxu0
        %4881 = vmatpush.bf16.msra.mxu0 0
        %4882 = vmatpush.bf16.msra.mxu0 0
        %4883 = vmatpush.bf16.msra.mxu0 0
        %4884 = vmatpush.bf16.msra.mxu0 0
        %4885 = vmatpush.bf16.msra.mxu0 %v4484
        %4886 = vmatpush.bf16.msra.mxu0 %v4472
        %4887 = vmatpush.bf16.msra.mxu0 %v4460
        %4888 = vmatpush.bf16.msra.mxu0 %v4448
        %4889 = vmatmul.bf16.gmra.mxu0 %v4632
        %v4890 = vpop.f32.mrf.mxu0
        %v4891 = vadd.f32 %v4878, %v4890
        %v4892 = vpop.f32.mrf.mxu0
        %4893 = vdwg.mxu0
        %4894 = vmatpush.bf16.msra.mxu0 %v4437
        %4895 = vmatpush.bf16.msra.mxu0 %v4425
        %4896 = vmatpush.bf16.msra.mxu0 %v4413
        %4897 = vmatpush.bf16.msra.mxu0 %v4401
        %4898 = vmatpush.bf16.msra.mxu0 %v4389
        %4899 = vmatpush.bf16.msra.mxu0 %v4377
        %4900 = vmatpush.bf16.msra.mxu0 %v4365
        %4901 = vmatpush.bf16.msra.mxu0 %v4353
        %4902 = vmatmul.bf16.gmra.mxu0 %v3765
        %v4903 = vpop.f32.mrf.mxu0
        %v4904 = vadd.f32 0.0, %v4903
        %v4905 = vpop.f32.mrf.mxu0
        %4906 = vdwg.mxu0
        %4907 = vmatpush.bf16.msra.mxu0 0
        %4908 = vmatpush.bf16.msra.mxu0 0
        %4909 = vmatpush.bf16.msra.mxu0 0
        %4910 = vmatpush.bf16.msra.mxu0 0
        %4911 = vmatpush.bf16.msra.mxu0 %v4485
        %4912 = vmatpush.bf16.msra.mxu0 %v4473
        %4913 = vmatpush.bf16.msra.mxu0 %v4461
        %4914 = vmatpush.bf16.msra.mxu0 %v4449
        %4915 = vmatmul.bf16.gmra.mxu0 %v4632
        %v4916 = vpop.f32.mrf.mxu0
        %v4917 = vadd.f32 %v4904, %v4916
        %v4918 = vpop.f32.mrf.mxu0
        %4919 = vdwg.mxu0
        %4920 = vmatpush.bf16.msra.mxu0 %v4438
        %4921 = vmatpush.bf16.msra.mxu0 %v4426
        %4922 = vmatpush.bf16.msra.mxu0 %v4414
        %4923 = vmatpush.bf16.msra.mxu0 %v4402
        %4924 = vmatpush.bf16.msra.mxu0 %v4390
        %4925 = vmatpush.bf16.msra.mxu0 %v4378
        %4926 = vmatpush.bf16.msra.mxu0 %v4366
        %4927 = vmatpush.bf16.msra.mxu0 %v4354
        %4928 = vmatmul.bf16.gmra.mxu0 %v3765
        %v4929 = vpop.f32.mrf.mxu0
        %v4930 = vadd.f32 0.0, %v4929
        %v4931 = vpop.f32.mrf.mxu0
        %4932 = vdwg.mxu0
        %4933 = vmatpush.bf16.msra.mxu0 0
        %4934 = vmatpush.bf16.msra.mxu0 0
        %4935 = vmatpush.bf16.msra.mxu0 0
        %4936 = vmatpush.bf16.msra.mxu0 0
        %4937 = vmatpush.bf16.msra.mxu0 %v4486
        %4938 = vmatpush.bf16.msra.mxu0 %v4474
        %4939 = vmatpush.bf16.msra.mxu0 %v4462
        %4940 = vmatpush.bf16.msra.mxu0 %v4450
        %4941 = vmatmul.bf16.gmra.mxu0 %v4632
        %v4942 = vpop.f32.mrf.mxu0
        %v4943 = vadd.f32 %v4930, %v4942
        %v4944 = vpop.f32.mrf.mxu0
        %4945 = vdwg.mxu0
        %v4946 = vld [vmem:[%s12] sm:$0x3]
        %v4949 = vrot.slane %v4683, 7
        %vm4950 = vcmask 1040384
        %v4951 = vsel %vm4950, %v4657, %v4949
        %v4953 = vadd.f32 %v4946, %v4951
        %4956 = vst [vmem:[#allocation1] sm:$0xff] %v4709
        %4957 = vst [vmem:[#allocation1 + $0x9] sm:$0xff] %v4735
        %s4958 = scalar_lea.vmem [#allocation1], 1
        %v4959 = vld [vmem:[%s4958] ss:$9 sm:$0xff]
        %v4961 = vadd.f32 %v4953, %v4959
        %4964 = vst [vmem:[#allocation1] sm:$0xff] %v4761
        %4965 = vst [vmem:[#allocation1 + $0x9] sm:$0xff] %v4787
        %s4966 = scalar_lea.vmem [#allocation1], 2
        %v4967 = vld [vmem:[%s4966] ss:$9 sm:$0xff]
        %v4969 = vadd.f32 %v4961, %v4967
        %4972 = vst [vmem:[#allocation1] sm:$0xff] %v4813
        %4973 = vst [vmem:[#allocation1 + $0x9] sm:$0xff] %v4839
        %s4974 = scalar_lea.vmem [#allocation1], 3
        %v4975 = vld [vmem:[%s4974] ss:$9 sm:$0xff]
        %v4977 = vadd.f32 %v4969, %v4975
        %4980 = vst [vmem:[#allocation1] sm:$0xff] %v4865
        %4981 = vst [vmem:[#allocation1 + $0x9] sm:$0xff] %v4891
        %s4982 = scalar_lea.vmem [#allocation1], 4
        %v4983 = vld [vmem:[%s4982] ss:$9 sm:$0xff]
        %v4985 = vadd.f32 %v4977, %v4983
        %4988 = vst [vmem:[#allocation1] sm:$0xff] %v4917
        %4989 = vst [vmem:[#allocation1 + $0x9] sm:$0xff] %v4943
        %s4990 = scalar_lea.vmem [#allocation1], 5
        %v4991 = vld [vmem:[%s4990] ss:$9 sm:$0xff]
        %v4993 = vadd.f32 %v4985, %v4991
        %v4994 = vld [vmem:[%s522] sm:$0x1]
        %v4995 = vpack.c.bf16 %v4994, %v4994
        %v4996 = vld [vmem:[%s8] sm:$0xf]
        %v4997 = vld [vmem:[%s9] sm:$0x1]
        %vm4998 = vcmask 56320
        %v5000 = vsel %vm4998, %v4995, 0
        %vm5002 = vcmask 1042432
        %vm5003 = vcmask 1043456
        %v5004 = vsel %vm5002, 4294967295, 65535
        %v5005 = vsel %vm5003, %v5004, 0
        %v5007 = vand.u32 %v4996, %v5005
        %5009 = vmatpush.bf16.msra.mxu0 0
        %5010 = vmatpush.bf16.msra.mxu0 0
        %5011 = vmatpush.bf16.msra.mxu0 0
        %5012 = vmatpush.bf16.msra.mxu0 0
        %5013 = vmatpush.bf16.msra.mxu0 0
        %5014 = vmatpush.bf16.msra.mxu0 0
        %5015 = vmatpush.bf16.msra.mxu0 0
        %5016 = vmatpush.bf16.msra.mxu0 %v5007
        %5017 = vmatmul.bf16.gmra.mxu0 %v5000
        %v5018 = vpop.f32.mrf.mxu0
        %v5019 = vadd.f32 %v4997, %v5018
        %v5020 = vpop.f32.mrf.mxu0
        %5021 = vdwg.mxu0
        %v5022 = vmax.f32 %v5019, 0.0
        %v5023 = vpack.c.bf16 %v5022, %v5022
        %v5024 = vld [vmem:[%s11] sm:$0xff]
        %v5026 = vunpack.c.l.b16 %v5024
        %v5027 = vunpack.c.h.b16 %v5024
        %v5028 = vpack.c.b16 %v5026, %v5026
        %v5029 = vpack.c.b16 %v5027, %v5027
        %v5031 = vsel %vm4998, %v5023, 0
        %v5034 = vand.u32 %v5028, %v5005
        %v5037 = vand.u32 %v5029, %v5005
        %5039 = vmatpush.bf16.msra.mxu0 0
        %5040 = vmatpush.bf16.msra.mxu0 0
        %5041 = vmatpush.bf16.msra.mxu0 0
        %5042 = vmatpush.bf16.msra.mxu0 0
        %5043 = vmatpush.bf16.msra.mxu0 0
        %5044 = vmatpush.bf16.msra.mxu0 0
        %5045 = vmatpush.bf16.msra.mxu0 0
        %5046 = vmatpush.bf16.msra.mxu0 %v5034
        %5047 = vmatmul.bf16.gmra.mxu0 %v5031
        %v5048 = vpop.f32.mrf.mxu0
        %v5049 = vadd.f32 0.0, %v5048
        %v5050 = vpop.f32.mrf.mxu0
        %5051 = vdwg.mxu0
        %5052 = vmatpush.bf16.msra.mxu0 0
        %5053 = vmatpush.bf16.msra.mxu0 0
        %5054 = vmatpush.bf16.msra.mxu0 0
        %5055 = vmatpush.bf16.msra.mxu0 0
        %5056 = vmatpush.bf16.msra.mxu0 0
        %5057 = vmatpush.bf16.msra.mxu0 0
        %5058 = vmatpush.bf16.msra.mxu0 0
        %5059 = vmatpush.bf16.msra.mxu0 %v5037
        %5060 = vmatmul.bf16.gmra.mxu0 %v5031
        %v5061 = vpop.f32.mrf.mxu0
        %v5062 = vadd.f32 0.0, %v5061
        %v5063 = vpop.f32.mrf.mxu0
        %5064 = vdwg.mxu0
        %v5067 = vrot.slane %v5062, 7
        %v5068 = vsel %vm4950, %v5049, %v5067
        %v5070 = vadd.f32 %v4993, %v5068
        %v5071 = vmax.f32 %v5070, 0.0
        %v5073 = vperm.slane %v5071, 0
        %v5074 = vperm.slane %v5071, 1
        %v5077 = vpack.c.bf16 %v5073, %v5073
        %v5078 = vpack.c.bf16 %v5074, %v5074
        %v5079 = vld [vmem:[%s13] sm:$0xf]
        %v5080 = vld [vmem:[%s13 + $0x4] sm:$0xf]
        %v5081 = vld [vmem:[%s13 + $0x8] sm:$0xf]
        %v5082 = vld [vmem:[%s13 + $0xc] sm:$0xf]
        %v5083 = vld [vmem:[%s13 + $0x10] sm:$0xf]
        %v5084 = vld [vmem:[%s13 + $0x14] sm:$0xf]
        %v5085 = vld [vmem:[%s13 + $0x18] sm:$0xf]
        %v5086 = vld [vmem:[%s13 + $0x1c] sm:$0xf]
        %v5087 = vld [vmem:[%s13 + $0x20] sm:$0xf]
        %v5088 = vld [vmem:[%s13 + $0x24] sm:$0xf]
        %v5089 = vld [vmem:[%s13 + $0x28] sm:$0xf]
        %v5090 = vld [vmem:[%s13 + $0x2c] sm:$0xf]
        %v5091 = vld [vmem:[%s13 + $0x30] sm:$0xf]
        %v5092 = vld [vmem:[%s13 + $0x34] sm:$0xf]
        %v5093 = vld [vmem:[%s13 + $0x38] sm:$0xf]
        %v5094 = vld [vmem:[%s13 + $0x3c] sm:$0xf]
        %v5095 = vld [vmem:[%s13 + $0x40] sm:$0xf]
        %v5096 = vld [vmem:[%s13 + $0x44] sm:$0xf]
        %v5097 = vld [vmem:[%s13 + $0x48] sm:$0xf]
        %v5098 = vld [vmem:[%s13 + $0x4c] sm:$0xf]
        %v5099 = vld [vmem:[%s13 + $0x50] sm:$0xf]
        %v5100 = vld [vmem:[%s13 + $0x54] sm:$0xf]
        %v5101 = vld [vmem:[%s13 + $0x58] sm:$0xf]
        %v5102 = vld [vmem:[%s13 + $0x5c] sm:$0xf]
        %v5103 = vld [vmem:[%s13 + $0x60] sm:$0xf]
        %v5104 = vld [vmem:[%s13 + $0x64] sm:$0xf]
        %v5105 = vld [vmem:[%s13 + $0x68] sm:$0xf]
        %v5106 = vld [vmem:[%s13 + $0x6c] sm:$0xf]
        %v5107 = vld [vmem:[%s13 + $0x70] sm:$0xf]
        %v5108 = vld [vmem:[%s13 + $0x74] sm:$0xf]
        %v5109 = vld [vmem:[%s13 + $0x78] sm:$0xf]
        %v5110 = vld [vmem:[%s13 + $0x7c] sm:$0xf]
        %v5111 = vld [vmem:[%s14] sm:$0x1]
        %v5144 = vunpack.c.l.b16 %v5079
        %v5145 = vunpack.c.l.b16 %v5080
        %v5146 = vunpack.c.l.b16 %v5081
        %v5147 = vunpack.c.l.b16 %v5082
        %v5148 = vunpack.c.l.b16 %v5083
        %v5149 = vunpack.c.l.b16 %v5084
        %v5150 = vunpack.c.l.b16 %v5085
        %v5151 = vunpack.c.l.b16 %v5086
        %v5152 = vunpack.c.l.b16 %v5087
        %v5153 = vunpack.c.l.b16 %v5088
        %v5154 = vunpack.c.l.b16 %v5089
        %v5155 = vunpack.c.l.b16 %v5090
        %v5156 = vunpack.c.l.b16 %v5091
        %v5157 = vunpack.c.l.b16 %v5092
        %v5158 = vunpack.c.l.b16 %v5093
        %v5159 = vunpack.c.l.b16 %v5094
        %v5160 = vunpack.c.l.b16 %v5095
        %v5161 = vunpack.c.l.b16 %v5096
        %v5162 = vunpack.c.l.b16 %v5097
        %v5163 = vunpack.c.l.b16 %v5098
        %v5164 = vunpack.c.l.b16 %v5099
        %v5165 = vunpack.c.l.b16 %v5100
        %v5166 = vunpack.c.l.b16 %v5101
        %v5167 = vunpack.c.l.b16 %v5102
        %v5168 = vunpack.c.l.b16 %v5103
        %v5169 = vunpack.c.l.b16 %v5104
        %v5170 = vunpack.c.l.b16 %v5105
        %v5171 = vunpack.c.l.b16 %v5106
        %v5172 = vunpack.c.l.b16 %v5107
        %v5173 = vunpack.c.l.b16 %v5108
        %v5174 = vunpack.c.l.b16 %v5109
        %v5175 = vunpack.c.l.b16 %v5110
        %v5176 = vpack.c.b16 %v5145, %v5144
        %v5177 = vpack.c.b16 %v5147, %v5146
        %v5178 = vpack.c.b16 %v5149, %v5148
        %v5179 = vpack.c.b16 %v5151, %v5150
        %v5180 = vpack.c.b16 %v5153, %v5152
        %v5181 = vpack.c.b16 %v5155, %v5154
        %v5182 = vpack.c.b16 %v5157, %v5156
        %v5183 = vpack.c.b16 %v5159, %v5158
        %v5184 = vpack.c.b16 %v5161, %v5160
        %v5185 = vpack.c.b16 %v5163, %v5162
        %v5186 = vpack.c.b16 %v5165, %v5164
        %v5187 = vpack.c.b16 %v5167, %v5166
        %v5188 = vpack.c.b16 %v5169, %v5168
        %v5189 = vpack.c.b16 %v5171, %v5170
        %v5190 = vpack.c.b16 %v5173, %v5172
        %v5191 = vpack.c.b16 %v5175, %v5174
        %5208 = vmatpush.bf16.msra.mxu0 %v5183
        %5209 = vmatpush.bf16.msra.mxu0 %v5182
        %5210 = vmatpush.bf16.msra.mxu0 %v5181
        %5211 = vmatpush.bf16.msra.mxu0 %v5180
        %5212 = vmatpush.bf16.msra.mxu0 %v5179
        %5213 = vmatpush.bf16.msra.mxu0 %v5178
        %5214 = vmatpush.bf16.msra.mxu0 %v5177
        %5215 = vmatpush.bf16.msra.mxu0 %v5176
        %5216 = vmatmul.bf16.gmra.mxu0 %v5077
        %v5217 = vpop.f32.mrf.mxu0
        %v5218 = vadd.f32 %v5111, %v5217
        %v5219 = vpop.f32.mrf.mxu0
        %5220 = vdwg.mxu0
        %5221 = vmatpush.bf16.msra.mxu0 %v5191
        %5222 = vmatpush.bf16.msra.mxu0 %v5190
        %5223 = vmatpush.bf16.msra.mxu0 %v5189
        %5224 = vmatpush.bf16.msra.mxu0 %v5188
        %5225 = vmatpush.bf16.msra.mxu0 %v5187
        %5226 = vmatpush.bf16.msra.mxu0 %v5186
        %5227 = vmatpush.bf16.msra.mxu0 %v5185
        %5228 = vmatpush.bf16.msra.mxu0 %v5184
        %5229 = vmatmul.bf16.gmra.mxu0 %v5078
        %v5230 = vpop.f32.mrf.mxu0
        %v5231 = vadd.f32 %v5218, %v5230
        %v5232 = vpop.f32.mrf.mxu0
        %5233 = vdwg.mxu0
        %v5234 = vmax.f32 %v5231, 0.0
        %vm5235 = vcmask 32768
        %5236 = vst.msk [vmem:[%s514] sm:$0x1] %vm5235, %v5234
        %s5237 = sand.u32 %s363, 1
        %s5238 = scalar_lea.sflag [#allocation7], %s5237
        %s5239 = sand.u32 %s363, 1
        %s5240 = scalar_lea.vmem [#allocation8], %s5239
        // Predicated region
        $region85: #{forward.1} parent=79 // pred_check
          %p5241 = pneg %p373
        $region86: #{forward.1} parent=79 // pred_check_branch
          %5243 = sbr.rel (%p5241) target = $region88
        $region87: #{forward.1} parent=79 // pred_region
          %5245 = vsyncadd %s5238, 0
          %s5246 = scalar_lea.hbm %s15, %s30
          %s5248 = sshll.u32 %s5240, 4
          %s5249 = int_to_ptr.vmem [resolvable:$true] %s5248
          %s5250 = sshll.u32 %s5246, 4
          %s5251 = int_to_ptr.hbm [resolvable:$true] %s5250
          %5253 = dma.vmem_to_hbm [thread:$0]  %s5249, 16, %s5251, %s5238
        $region88: #{forward.1} parent=79 // pred_fallthru
          _
      $region80: #{forward.1} parent=5 // pred_fallthru
        _
      %p5254 = scmp.le.s32.totalorder 2, %s25
      // Predicated region
      $region89: #{forward.1} parent=5 // pred_check
        %p5255 = pneg %p5254
      $region90: #{forward.1} parent=5 // pred_check_branch
        %5257 = sbr.rel (%p5255) target = $region92
      $region91: #{forward.1} parent=5 // pred_region
        %s5258 = ssub.s32 %s25, 2
        // Predicated region
        $region93: #{forward.1} parent=91 // pred_check
          %p5259 = pneg %p379
        $region94: #{forward.1} parent=91 // pred_check_branch
          %5261 = sbr.rel (%p5259) target = $region96
        $region95: #{forward.1} parent=91 // pred_region
          %s5262 = sand.u32 %s364, 1
          %s5263 = scalar_lea.sflag [#allocation7], %s5262
          %s5264 = sand.u32 %s364, 1
          %s5265 = scalar_lea.vmem [#allocation8], %s5264
          %5267 = dma.done %s5263, 16
        $region96: #{forward.1} parent=91 // pred_fallthru
          _
      $region92: #{forward.1} parent=5 // pred_fallthru
        _
    $region6: #{forward.1} parent=1 // loop_footer
      %s29 = sadd.s32 1, %s25
    $region7: #{forward.1} parent=1 // loop_footer_branch
      %24 = sbr.rel target = $region3
    $region8: #{forward.1} parent=1 // loop_exit
      _
    %5268 = vsyncpa [#allocation6], 1
    %s5269 = scalar_lea.sflag [#allocation6], 1
    %5270 = vsyncpa %s5269, 1
    %5271 = vsyncpa [#allocation7], 1
    %s5272 = scalar_lea.sflag [#allocation7], 1
    %5273 = vsyncpa %s5272, 1

</llo_original>
